<compile_context>
chip_gen: v5e
topology: v5e:2x2
jax: 0.10.0
libtpu: 0.0.40
codegen_flags: <defaults>
</compile_context>

<pallas_src>
import numpy as np
import jax
import jax.numpy as jnp
from jax.experimental import pallas as pl
from jax.experimental.pallas import tpu as pltpu

EPS = 1e-5
CLASS_NUM = 10
BRANCH_CH = 64
KPAD = 128                       # lane-dense padded width of the class-logit output
VMEM_LIMIT = 32 * 1024 * 1024    # portable scoped-VMEM request (v7x has 64 MiB physical)
HI = jax.lax.Precision.HIGHEST   # keep MXU in f32 mode so the check vs the f32 reference
                                 # is tight (production would use DEFAULT precision)


# ------------------------------------------------------------------ kernels
def _conv_kernel(x1, w1, x2, w2, x3, w3, x4, w4, o1, o2, o3, o4):
    """Per-branch fused 1x1 convs: (Hin*Win*N, Cin) @ (Cin, 64)."""
    for x_r, w_r, o_r in ((x1, w1, o1), (x2, w2, o2), (x3, w3, o3), (x4, w4, o4)):
        o_r[...] = jnp.dot(x_r[...], w_r[...],
                           preferred_element_type=jnp.float32, precision=HI)


def _upsample_relu_kernel(bias_ref,
                          f1, ah1, aw1, f2, ah2, aw2, f3, ah3, aw3, f4, ah4, aw4,
                          h_ref, s1_ref, s2_ref):
    """One tile of TH output rows (ho) for all 4 branches.

    f*    : (Hin_k, Win_k*N*64)   branch features, (wi, n, c) packed in lanes
    ah*   : (TH, Hin_k)           A_h rows of this tile
    aw*   : (Wout, Win_k)         full A_w
    bias  : (1, N*64)             (sum_k b_k @ Wl1_k + bl1) tiled over the batch lanes
    h     : (TH*Wout, N*64)       post-ReLU features (lane-dense)
    s1/s2 : (8, N*64)             per-tile column sums / sums of squares (8 equal rows)
    """
    th, wout = ah1.shape[0], aw1.shape[0]
    nc = bias_ref.shape[1]

    acc = None
    for f_r, ah_r, aw_r in ((f1, ah1, aw1), (f2, ah2, aw2),
                            (f3, ah3, aw3), (f4, ah4, aw4)):
        win = aw_r.shape[1]
        # H-direction bilinear resize == (TH, Hin) @ (Hin, Win*N*64) matmul.
        u = jnp.dot(ah_r[...], f_r[...],
                    preferred_element_type=jnp.float32, precision=HI)    # (TH, Win*NC)
        if win == 1:
            # 1-wide input: A_w is an all-ones column -> pure broadcast along Wout.
            v = jnp.broadcast_to(u[:, None, :], (th, wout, nc))
        else:
            u3 = u.reshape(th, win, nc)                                  # lanes -> (wi, nc)
            aw_full = jnp.broadcast_to(aw_r[...][None, :, :], (th, wout, win))
            # W-direction resize == batched (per output row) matmul on the MXU.
            v = jnp.einsum('tow,twc->toc', aw_full, u3,
                           preferred_element_type=jnp.float32, precision=HI)
        acc = v if acc is None else acc + v                              # (TH, Wout, NC)

    h = jnp.maximum(acc.reshape(th * wout, nc) + bias_ref[...], 0.0)
    h_ref[...] = h

    # BatchNorm partial statistics on the MXU (column sums; 8 identical rows keep the
    # output block (8,128)-aligned).
    ones = jnp.ones((8, h.shape[0]), jnp.float32)
    s1_ref[...] = jnp.dot(ones, h, preferred_element_type=jnp.float32, precision=HI)
    s2_ref[...] = jnp.dot(ones, h * h, preferred_element_type=jnp.float32, precision=HI)


def _bn_linear2_kernel(s1_ref, s2_ref, pavg_ref, gamma_ref, beta_ref,
                       w2_ref, b2_ref, h_ref, o_ref):
    """BatchNorm2d (training-mode batch statistics) + padded 1x1 conv to classes.

    s1/s2 : (T, N*64)   per-tile partial sums from the previous kernel
    pavg  : (N*64, 64)  structural matrix folding the N lane groups + 1/(N*H*W)
    h     : (TR, 64)    rows = (ho, wo, n), lanes = channel
    out   : (TR, 128)   lane-dense padded logits
    """
    s1 = jnp.sum(s1_ref[...], axis=0, keepdims=True)            # (1, N*64)
    s2 = jnp.sum(s2_ref[...], axis=0, keepdims=True)
    mean = jnp.dot(s1, pavg_ref[...], preferred_element_type=jnp.float32, precision=HI)
    ex2 = jnp.dot(s2, pavg_ref[...], preferred_element_type=jnp.float32, precision=HI)
    var = ex2 - mean * mean                                      # biased batch variance
    inv = jax.lax.rsqrt(var + EPS)
    scale = gamma_ref[...] * inv                                 # (1, 64)
    shift = beta_ref[...] - mean * scale
    hn = h_ref[...] * scale + shift                              # (TR, 64) fused mul-add
    o_ref[...] = jnp.dot(hn, w2_ref[...],
                         preferred_element_type=jnp.float32, precision=HI) + b2_ref[...]


# ------------------------------------------------------------------ glue / wrapper
def bilinear_matrix(out_size, in_size):
    """torch Upsample(mode='bilinear', align_corners=True) along one axis as a matrix."""
    a = np.zeros((out_size, in_size), np.float32)
    if in_size == 1:
        a[:, 0] = 1.0
        return jnp.asarray(a)
    src = np.arange(out_size, dtype=np.float64) * (in_size - 1) / (out_size - 1)
    i0 = np.clip(np.floor(src).astype(np.int64), 0, in_size - 1)
    i1 = np.clip(i0 + 1, 0, in_size - 1)
    frac = (src - i0).astype(np.float32)
    for o in range(out_size):
        a[o, i0[o]] += 1.0 - frac[o]
        a[o, i1[o]] += frac[o]
    return jnp.asarray(a)


def _tile_size(total, preferred):
    for t in (preferred, preferred // 2, preferred // 4, preferred // 8):
        if t and total % t == 0:
            return t
    return total


def all_mlp_decoder_forward(x1, x2, x3, x4, params, class_num=CLASS_NUM):
    """NCHW inputs -> NCHW logits, matching AllMLPDecoder.forward."""
    n = x1.shape[0]
    h_out, w_out = 4 * x1.shape[2], 4 * x1.shape[3]
    assert (8 * x2.shape[2], 16 * x3.shape[2], 32 * x4.shape[2]) == (h_out,) * 3
    nc = n * BRANCH_CH
    xs = (x1, x2, x3, x4)
    ws = (params["w1"], params["w2"], params["w3"], params["w4"])
    bs = (params["b1"], params["b2"], params["b3"], params["b4"])

    # ---- wrapper-side weight folding: branch conv -> its linear1 chunk --------------
    wl1, bl1 = params["wl1"], params["bl1"]
    wf, bias_tot = [], bl1
    for k, (w, b) in enumerate(zip(ws, bs)):
        chunk = wl1[k * BRANCH_CH:(k + 1) * BRANCH_CH, :]
        wf.append(jnp.dot(w, chunk, precision=HI))                       # (Cin_k, 64)
        bias_tot = bias_tot + jnp.dot(b, chunk, precision=HI)
    bias_t = jnp.tile(bias_tot, (1, n))                                  # (1, N*64)

    # ---- layout plumbing: channels-last, batch packed toward the lanes --------------
    x2d = [jnp.transpose(x, (2, 3, 0, 1)).reshape(-1, x.shape[1]) for x in xs]
    ahs = [bilinear_matrix(h_out, x.shape[2]) for x in xs]
    aws = [bilinear_matrix(w_out, x.shape[3]) for x in xs]

    vmem = pl.BlockSpec(memory_space=pltpu.MemorySpace.VMEM)

    # ---- call 1: per-branch fused 1x1 convs (tiny, grid-less) -----------------------
    conv_outs = pl.pallas_call(
        _conv_kernel,
        out_shape=tuple(jax.ShapeDtypeStruct((x.shape[0], BRANCH_CH), jnp.float32)
                        for x in x2d),
        in_specs=[vmem] * 8,
        out_specs=tuple([vmem] * 4),
        compiler_params=pltpu.CompilerParams(vmem_limit_bytes=VMEM_LIMIT),
    )(x2d[0], wf[0], x2d[1], wf[1], x2d[2], wf[2], x2d[3], wf[3])

    # free HBM reshape: (Hin*Win*N, 64) -> (Hin, Win*N*64), lanes ordered (wi, n, c)
    f2 = [f.reshape(x.shape[2], x.shape[3] * nc) for f, x in zip(conv_outs, xs)]

    # ---- call 2: separable upsample + fused bias + ReLU + BN partial sums -----------
    th = _tile_size(h_out, 16)
    num_tiles = h_out // th
    p_out = h_out * w_out

    in_specs = [pl.BlockSpec((1, nc), lambda t: (0, 0))]
    operands = [bias_t]
    for f, ah, aw in zip(f2, ahs, aws):
        in_specs += [
            pl.BlockSpec(f.shape, lambda t: (0, 0)),
            pl.BlockSpec((th, ah.shape[1]), lambda t: (t, 0)),
            pl.BlockSpec(aw.shape, lambda t: (0, 0)),
        ]
        operands += [f, ah, aw]

    h, s1buf, s2buf = pl.pallas_call(
        _upsample_relu_kernel,
        grid=(num_tiles,),
        out_shape=(jax.ShapeDtypeStruct((p_out, nc), jnp.float32),
                   jax.ShapeDtypeStruct((num_tiles * 8, nc), jnp.float32),
                   jax.ShapeDtypeStruct((num_tiles * 8, nc), jnp.float32)),
        in_specs=in_specs,
        out_specs=(pl.BlockSpec((th * w_out, nc), lambda t: (t, 0)),
                   pl.BlockSpec((8, nc), lambda t: (t, 0)),
                   pl.BlockSpec((8, nc), lambda t: (t, 0))),
        compiler_params=pltpu.CompilerParams(
            dimension_semantics=("parallel",),
            vmem_limit_bytes=VMEM_LIMIT),
    )(*operands)

    # glue (free): pick one of the 8 identical stats rows per tile
    s1p = s1buf.reshape(num_tiles, 8, nc)[:, 0, :]                       # (T, N*64)
    s2p = s2buf.reshape(num_tiles, 8, nc)[:, 0, :]
    # glue (free): (Pout, N*64) -> (Pout*N, 64); rows = (ho, wo, n), lanes = channel
    h2 = h.reshape(p_out * n, BRANCH_CH)

    # structural constants for the in-kernel BN reduction / padded projection
    pavg = jnp.asarray(np.tile(np.eye(BRANCH_CH, dtype=np.float32), (n, 1))
                       / float(n * p_out))                               # (N*64, 64)
    w2p = jnp.zeros((BRANCH_CH, KPAD), jnp.float32).at[:, :class_num].set(params["wl2"])
    b2p = jnp.zeros((1, KPAD), jnp.float32).at[:, :class_num].set(params["bl2"])

    rows = p_out * n
    tr = _tile_size(rows, 2048)           # >=2 tiles/core -> prefetch/writeback overlap
    num_row_tiles = rows // tr

    # ---- call 3: BatchNorm (batch statistics) + padded linear2 ----------------------
    out2 = pl.pallas_call(
        _bn_linear2_kernel,
        grid=(num_row_tiles,),
        out_shape=jax.ShapeDtypeStruct((rows, KPAD), jnp.float32),
        in_specs=[
            pl.BlockSpec(s1p.shape, lambda r: (0, 0)),
            pl.BlockSpec(s2p.shape, lambda r: (0, 0)),
            pl.BlockSpec(pavg.shape, lambda r: (0, 0)),
            pl.BlockSpec(params["gamma"].shape, lambda r: (0, 0)),
            pl.BlockSpec(params["beta"].shape, lambda r: (0, 0)),
            pl.BlockSpec(w2p.shape, lambda r: (0, 0)),
            pl.BlockSpec(b2p.shape, lambda r: (0, 0)),
            pl.BlockSpec((tr, BRANCH_CH), lambda r: (r, 0)),
        ],
        out_specs=pl.BlockSpec((tr, KPAD), lambda r: (r, 0)),
        compiler_params=pltpu.CompilerParams(
            dimension_semantics=("parallel",),
            vmem_limit_bytes=VMEM_LIMIT),
    )(s1p, s2p, pavg, params["gamma"], params["beta"], w2p, b2p, h2)

    # un-pad + NCHW permute (wrapper-side layout plumbing only)
    out = out2.reshape(h_out, w_out, n, KPAD)
    out = jnp.transpose(out, (2, 3, 0, 1))[:, :class_num]
    return out


# ------------------------------------------------------------------ params / reference
def init_params(key, class_num=CLASS_NUM):
    ks = jax.random.split(key, 16)

    def w(k, shape, fan_in):
        return jax.random.normal(k, shape, jnp.float32) / np.sqrt(float(fan_in))

    def b(k, width):
        return 0.1 * jax.random.normal(k, (1, width), jnp.float32)

    return dict(
        w1=w(ks[0], (4, 64), 4), b1=b(ks[1], 64),
        w2=w(ks[2], (8, 64), 8), b2=b(ks[3], 64),
        w3=w(ks[4], (16, 64), 16), b3=b(ks[5], 64),
        w4=w(ks[6], (32, 64), 32), b4=b(ks[7], 64),
        wl1=w(ks[8], (256, 64), 256), bl1=b(ks[9], 64),
        gamma=1.0 + 0.1 * jax.random.normal(ks[10], (1, 64), jnp.float32),
        beta=0.1 * jax.random.normal(ks[11], (1, 64), jnp.float32),
        wl2=w(ks[12], (64, class_num), 64),
        bl2=0.1 * jax.random.normal(ks[13], (1, class_num), jnp.float32),
    )


def reference_forward(x1, x2, x3, x4, p, class_num=CLASS_NUM):
    """Pure-JAX reference mirroring the PyTorch module (unfused, non-separable algebra)."""
    hp = HI
    h_out, w_out = 4 * x1.shape[2], 4 * x1.shape[3]

    def branch(x, w, b):
        xf = jnp.transpose(x, (0, 2, 3, 1))                              # (N,H,W,C)
        f = jnp.einsum('nhwc,ck->nhwk', xf, w, precision=hp) + b.reshape(1, 1, 1, -1)
        ah = bilinear_matrix(h_out, x.shape[2])
        aw = bilinear_matrix(w_out, x.shape[3])
        f = jnp.einsum('oh,nhwk->nowk', ah, f, precision=hp)
        f = jnp.einsum('pw,nowk->nopk', aw, f, precision=hp)
        return f                                                          # (N,Ho,Wo,64)

    feat = jnp.concatenate(
        [branch(x1, p["w1"], p["b1"]), branch(x2, p["w2"], p["b2"]),
         branch(x3, p["w3"], p["b3"]), branch(x4, p["w4"], p["b4"])], axis=-1)
    h = jnp.einsum('nhwc,ck->nhwk', feat, p["wl1"], precision=hp) + p["bl1"].reshape(1, 1, 1, -1)
    h = jnp.maximum(h, 0.0)
    mean = jnp.mean(h, axis=(0, 1, 2), keepdims=True)
    var = jnp.mean((h - mean) ** 2, axis=(0, 1, 2), keepdims=True)        # biased
    h = (h - mean) / jnp.sqrt(var + EPS) * p["gamma"].reshape(1, 1, 1, -1) \
        + p["beta"].reshape(1, 1, 1, -1)
    y = jnp.einsum('nhwk,kc->nhwc', h, p["wl2"], precision=hp) + p["bl2"].reshape(1, 1, 1, -1)
    return jnp.transpose(y, (0, 3, 1, 2))


# ------------------------------------------------------------------ main
if __name__ == "__main__":
    key = jax.random.PRNGKey(0)
    k = jax.random.split(key, 5)
    # Spatial sizes chosen so 4*H1 == 8*H2 == 16*H3 == 32*H4 (required by the concat);
    # channels are fixed by the module (4, 8, 16, 32).
    x1 = jax.random.normal(k[0], (2, 4, 16, 16), jnp.float32)
    x2 = jax.random.normal(k[1], (2, 8, 8, 8), jnp.float32)
    x3 = jax.random.normal(k[2], (2, 16, 4, 4), jnp.float32)
    x4 = jax.random.normal(k[3], (2, 32, 2, 2), jnp.float32)
    params = init_params(k[4])

    out = jax.block_until_ready(all_mlp_decoder_forward(x1, x2, x3, x4, params))
    assert out.shape == (2, CLASS_NUM, 64, 64), out.shape

    ref = jax.block_until_ready(reference_forward(x1, x2, x3, x4, params))
    max_err = float(jnp.max(jnp.abs(out - ref)))
    # Tolerance leaves margin for MXU bf16-pass rounding differences vs the f32 reference
    # (amplified slightly by the BatchNorm normalization); structural bugs give O(1) errors.
    if not bool(jnp.allclose(out, ref, atol=5e-2, rtol=5e-2)):
        raise AssertionError(f"kernel/reference mismatch, max abs err = {max_err}")
    print("KERNEL_OK")
</pallas_src>

<mosaic_0001>
module attributes {stable_mosaic.version = 11 : i64} {
  func.func @_conv_kernel(%arg0: memref<512x4xf32, #tpu.memory_space<vmem>>, %arg1: memref<4x64xf32, #tpu.memory_space<vmem>>, %arg2: memref<128x8xf32, #tpu.memory_space<vmem>>, %arg3: memref<8x64xf32, #tpu.memory_space<vmem>>, %arg4: memref<32x16xf32, #tpu.memory_space<vmem>>, %arg5: memref<16x64xf32, #tpu.memory_space<vmem>>, %arg6: memref<8x32xf32, #tpu.memory_space<vmem>>, %arg7: memref<32x64xf32, #tpu.memory_space<vmem>>, %arg8: memref<512x64xf32, #tpu.memory_space<vmem>>, %arg9: memref<128x64xf32, #tpu.memory_space<vmem>>, %arg10: memref<32x64xf32, #tpu.memory_space<vmem>>, %arg11: memref<8x64xf32, #tpu.memory_space<vmem>>) attributes {dimension_semantics = [], scalar_prefetch = 0 : i64, scratch_operands = 0 : i64, tpu.core_type = #tpu.core_type<tc>} {
    %c0 = arith.constant 0 : index
    %c0_0 = arith.constant 0 : index
    %0 = vector.load %arg0[%c0, %c0_0] : memref<512x4xf32, #tpu.memory_space<vmem>>, vector<512x4xf32>
    %c0_1 = arith.constant 0 : index
    %c0_2 = arith.constant 0 : index
    %1 = vector.load %arg1[%c0_1, %c0_2] : memref<4x64xf32, #tpu.memory_space<vmem>>, vector<4x64xf32>
    %cst = arith.constant dense<0.000000e+00> : vector<512x64xf32>
    %2 = tpu.matmul %0, %1, %cst {dimension_numbers = #tpu.dot_dimension_numbers<[1], [0], [0], [1], [0, 0, 1, 1], [], []>, precision = #tpu.contract_precision<fp32>} : vector<512x4xf32>, vector<4x64xf32>, vector<512x64xf32> -> vector<512x64xf32>
    %c0_3 = arith.constant 0 : index
    %c0_4 = arith.constant 0 : index
    %3 = vector.load %arg8[%c0_3, %c0_4] : memref<512x64xf32, #tpu.memory_space<vmem>>, vector<512x64xf32>
    tpu.vector_store %arg8[%c0_3, %c0_4], %2 {strides = array<i32>} : memref<512x64xf32, #tpu.memory_space<vmem>>, vector<512x64xf32>,
    %c0_5 = arith.constant 0 : index
    %c0_6 = arith.constant 0 : index
    %4 = vector.load %arg2[%c0_5, %c0_6] : memref<128x8xf32, #tpu.memory_space<vmem>>, vector<128x8xf32>
    %c0_7 = arith.constant 0 : index
    %c0_8 = arith.constant 0 : index
    %5 = vector.load %arg3[%c0_7, %c0_8] : memref<8x64xf32, #tpu.memory_space<vmem>>, vector<8x64xf32>
    %cst_9 = arith.constant dense<0.000000e+00> : vector<128x64xf32>
    %6 = tpu.matmul %4, %5, %cst_9 {dimension_numbers = #tpu.dot_dimension_numbers<[1], [0], [0], [1], [0, 0, 1, 1], [], []>, precision = #tpu.contract_precision<fp32>} : vector<128x8xf32>, vector<8x64xf32>, vector<128x64xf32> -> vector<128x64xf32>
    %c0_10 = arith.constant 0 : index
    %c0_11 = arith.constant 0 : index
    %7 = vector.load %arg9[%c0_10, %c0_11] : memref<128x64xf32, #tpu.memory_space<vmem>>, vector<128x64xf32>
    tpu.vector_store %arg9[%c0_10, %c0_11], %6 {strides = array<i32>} : memref<128x64xf32, #tpu.memory_space<vmem>>, vector<128x64xf32>,
    %c0_12 = arith.constant 0 : index
    %c0_13 = arith.constant 0 : index
    %8 = vector.load %arg4[%c0_12, %c0_13] : memref<32x16xf32, #tpu.memory_space<vmem>>, vector<32x16xf32>
    %c0_14 = arith.constant 0 : index
    %c0_15 = arith.constant 0 : index
    %9 = vector.load %arg5[%c0_14, %c0_15] : memref<16x64xf32, #tpu.memory_space<vmem>>, vector<16x64xf32>
    %cst_16 = arith.constant dense<0.000000e+00> : vector<32x64xf32>
    %10 = tpu.matmul %8, %9, %cst_16 {dimension_numbers = #tpu.dot_dimension_numbers<[1], [0], [0], [1], [0, 0, 1, 1], [], []>, precision = #tpu.contract_precision<fp32>} : vector<32x16xf32>, vector<16x64xf32>, vector<32x64xf32> -> vector<32x64xf32>
    %c0_17 = arith.constant 0 : index
    %c0_18 = arith.constant 0 : index
    %11 = vector.load %arg10[%c0_17, %c0_18] : memref<32x64xf32, #tpu.memory_space<vmem>>, vector<32x64xf32>
    tpu.vector_store %arg10[%c0_17, %c0_18], %10 {strides = array<i32>} : memref<32x64xf32, #tpu.memory_space<vmem>>, vector<32x64xf32>,
    %c0_19 = arith.constant 0 : index
    %c0_20 = arith.constant 0 : index
    %12 = vector.load %arg6[%c0_19, %c0_20] : memref<8x32xf32, #tpu.memory_space<vmem>>, vector<8x32xf32>
    %c0_21 = arith.constant 0 : index
    %c0_22 = arith.constant 0 : index
    %13 = vector.load %arg7[%c0_21, %c0_22] : memref<32x64xf32, #tpu.memory_space<vmem>>, vector<32x64xf32>
    %cst_23 = arith.constant dense<0.000000e+00> : vector<8x64xf32>
    %14 = tpu.matmul %12, %13, %cst_23 {dimension_numbers = #tpu.dot_dimension_numbers<[1], [0], [0], [1], [0, 0, 1, 1], [], []>, precision = #tpu.contract_precision<fp32>} : vector<8x32xf32>, vector<32x64xf32>, vector<8x64xf32> -> vector<8x64xf32>
    %c0_24 = arith.constant 0 : index
    %c0_25 = arith.constant 0 : index
    %15 = vector.load %arg11[%c0_24, %c0_25] : memref<8x64xf32, #tpu.memory_space<vmem>>, vector<8x64xf32>
    tpu.vector_store %arg11[%c0_24, %c0_25], %14 {strides = array<i32>} : memref<8x64xf32, #tpu.memory_space<vmem>>, vector<8x64xf32>,
    return
  }
}

</mosaic_0001>

<llo_original>
// kernel: tpu_custom_call.1
$region0: #{tpu_custom_call.1}
  #allocation0 [shape = 'u32[]', space=smem, size = 0x4, offset = 0x4, fixed_abs, tag = 'smem constant byte address 0x4 - core index']
  #allocation1 [shape = 'u32[72,128]{1,0:T(1,128)}', space=vmem, size = 0x9000, scoped, tag = 'internal scratch']
  %s0 = inlined_call_operand.vmem [shape: f32[512,4], index: 0, kind: input, shape index: {}]
  %s1 = inlined_call_operand.vmem [shape: f32[4,64], index: 1, kind: input, shape index: {}]
  %s2 = inlined_call_operand.vmem [shape: f32[128,8], index: 2, kind: input, shape index: {}]
  %s3 = inlined_call_operand.vmem [shape: f32[8,64], index: 3, kind: input, shape index: {}]
  %s4 = inlined_call_operand.vmem [shape: f32[32,16], index: 4, kind: input, shape index: {}]
  %s5 = inlined_call_operand.vmem [shape: f32[16,64], index: 5, kind: input, shape index: {}]
  %s6 = inlined_call_operand.vmem [shape: f32[8,32], index: 6, kind: input, shape index: {}]
  %s7 = inlined_call_operand.vmem [shape: f32[32,64], index: 7, kind: input, shape index: {}]
  %s8 = inlined_call_operand.vmem [shape: f32[512,64], index: 8, kind: output, shape index: {0}]
  %s9 = inlined_call_operand.vmem [shape: f32[128,64], index: 9, kind: output, shape index: {1}]
  %s10 = inlined_call_operand.hbm [shape: f32[32,64], index: 10, kind: output, shape index: {2}]
  %s11 = inlined_call_operand.hbm [shape: f32[8,64], index: 11, kind: output, shape index: {3}]
  %12 = xla_tuple %s8, %s9, %s10, %s11
  %s13 = sld [smem:[#allocation0]]
  $region66: #{tpu_custom_call.1} parent=0
    _
  %s15 = ssub.s32 1, %s13
  %s16 = scalar_select 0, %s15, %s13
  $region1: #{tpu_custom_call.1} parent=0
    #allocation2 [shape = 'u8[16384]{0}', space=vmem, size = 0x4000, scoped, tag = 'output window, operand 2, single buffered']
    #allocation3 [shape = 's32[1]{0}', space=sflag, size = 0x4, scoped, tag = 'scoped memory for tpu_custom_call.1']
    #allocation4 [shape = 'u8[4096]{0}', space=vmem, size = 0x1000, scoped, tag = 'output window, operand 3, single buffered']
    #allocation5 [shape = 's32[1]{0}', space=sflag, size = 0x4, scoped, tag = 'scoped memory for tpu_custom_call.1']
    %17 = vsyncpa [#allocation3], 0
    %18 = vsyncpa [#allocation5], 0
    // Predicated region
    $region2: #{tpu_custom_call.1} parent=1 // pred_check
      _
    $region3: #{tpu_custom_call.1} parent=1 // pred_check_branch
      %20 = sbr.rel (0) target = $region5
    $region4: #{tpu_custom_call.1} parent=1 // pred_region
      _
    $region5: #{tpu_custom_call.1} parent=1 // pred_fallthru
      _
    // Predicated region
    $region6: #{tpu_custom_call.1} parent=1 // pred_check
      _
    $region7: #{tpu_custom_call.1} parent=1 // pred_check_branch
      %22 = sbr.rel (0) target = $region9
    $region8: #{tpu_custom_call.1} parent=1 // pred_region
      _
    $region9: #{tpu_custom_call.1} parent=1 // pred_fallthru
      _
    // Predicated region
    $region10: #{tpu_custom_call.1} parent=1 // pred_check
      _
    $region11: #{tpu_custom_call.1} parent=1 // pred_check_branch
      %24 = sbr.rel (0) target = $region13
    $region12: #{tpu_custom_call.1} parent=1 // pred_region
      _
    $region13: #{tpu_custom_call.1} parent=1 // pred_fallthru
      _
    // Predicated region
    $region14: #{tpu_custom_call.1} parent=1 // pred_check
      _
    $region15: #{tpu_custom_call.1} parent=1 // pred_check_branch
      %26 = sbr.rel (0) target = $region17
    $region16: #{tpu_custom_call.1} parent=1 // pred_region
      _
    $region17: #{tpu_custom_call.1} parent=1 // pred_fallthru
      _
    // Predicated region
    $region18: #{tpu_custom_call.1} parent=1 // pred_check
      _
    $region19: #{tpu_custom_call.1} parent=1 // pred_check_branch
      %28 = sbr.rel (0) target = $region21
    $region20: #{tpu_custom_call.1} parent=1 // pred_region
      _
    $region21: #{tpu_custom_call.1} parent=1 // pred_fallthru
      _
    // Predicated region
    $region22: #{tpu_custom_call.1} parent=1 // pred_check
      _
    $region23: #{tpu_custom_call.1} parent=1 // pred_check_branch
      %30 = sbr.rel (0) target = $region25
    $region24: #{tpu_custom_call.1} parent=1 // pred_region
      _
    $region25: #{tpu_custom_call.1} parent=1 // pred_fallthru
      _
    // Predicated region
    $region26: #{tpu_custom_call.1} parent=1 // pred_check
      _
    $region27: #{tpu_custom_call.1} parent=1 // pred_check_branch
      %32 = sbr.rel (0) target = $region29
    $region28: #{tpu_custom_call.1} parent=1 // pred_region
      _
    $region29: #{tpu_custom_call.1} parent=1 // pred_fallthru
      _
    // Predicated region
    $region30: #{tpu_custom_call.1} parent=1 // pred_check
      _
    $region31: #{tpu_custom_call.1} parent=1 // pred_check_branch
      %34 = sbr.rel (0) target = $region33
    $region32: #{tpu_custom_call.1} parent=1 // pred_region
      _
    $region33: #{tpu_custom_call.1} parent=1 // pred_fallthru
      _
    %v35 = vld [vmem:[%s0] sm:$0xff]
    %v36 = vld [vmem:[%s0 + $0x8] sm:$0xff]
    %v37 = vld [vmem:[%s0 + $0x10] sm:$0xff]
    %v38 = vld [vmem:[%s0 + $0x18] sm:$0xff]
    %v39 = vld [vmem:[%s0 + $0x20] sm:$0xff]
    %v40 = vld [vmem:[%s0 + $0x28] sm:$0xff]
    %v41 = vld [vmem:[%s0 + $0x30] sm:$0xff]
    %v42 = vld [vmem:[%s0 + $0x38] sm:$0xff]
    %v43 = vld [vmem:[%s0 + $0x40] sm:$0xff]
    %v44 = vld [vmem:[%s0 + $0x48] sm:$0xff]
    %v45 = vld [vmem:[%s0 + $0x50] sm:$0xff]
    %v46 = vld [vmem:[%s0 + $0x58] sm:$0xff]
    %v47 = vld [vmem:[%s0 + $0x60] sm:$0xff]
    %v48 = vld [vmem:[%s0 + $0x68] sm:$0xff]
    %v49 = vld [vmem:[%s0 + $0x70] sm:$0xff]
    %v50 = vld [vmem:[%s0 + $0x78] sm:$0xff]
    %v51 = vld [vmem:[%s0 + $0x80] sm:$0xff]
    %v52 = vld [vmem:[%s0 + $0x88] sm:$0xff]
    %v53 = vld [vmem:[%s0 + $0x90] sm:$0xff]
    %v54 = vld [vmem:[%s0 + $0x98] sm:$0xff]
    %v55 = vld [vmem:[%s0 + $0xa0] sm:$0xff]
    %v56 = vld [vmem:[%s0 + $0xa8] sm:$0xff]
    %v57 = vld [vmem:[%s0 + $0xb0] sm:$0xff]
    %v58 = vld [vmem:[%s0 + $0xb8] sm:$0xff]
    %v59 = vld [vmem:[%s0 + $0xc0] sm:$0xff]
    %v60 = vld [vmem:[%s0 + $0xc8] sm:$0xff]
    %v61 = vld [vmem:[%s0 + $0xd0] sm:$0xff]
    %v62 = vld [vmem:[%s0 + $0xd8] sm:$0xff]
    %v63 = vld [vmem:[%s0 + $0xe0] sm:$0xff]
    %v64 = vld [vmem:[%s0 + $0xe8] sm:$0xff]
    %v65 = vld [vmem:[%s0 + $0xf0] sm:$0xff]
    %v66 = vld [vmem:[%s0 + $0xf8] sm:$0xff]
    %v67 = vld [vmem:[%s0 + $0x100] sm:$0xff]
    %v68 = vld [vmem:[%s0 + $0x108] sm:$0xff]
    %v69 = vld [vmem:[%s0 + $0x110] sm:$0xff]
    %v70 = vld [vmem:[%s0 + $0x118] sm:$0xff]
    %v71 = vld [vmem:[%s0 + $0x120] sm:$0xff]
    %v72 = vld [vmem:[%s0 + $0x128] sm:$0xff]
    %v73 = vld [vmem:[%s0 + $0x130] sm:$0xff]
    %v74 = vld [vmem:[%s0 + $0x138] sm:$0xff]
    %v75 = vld [vmem:[%s0 + $0x140] sm:$0xff]
    %v76 = vld [vmem:[%s0 + $0x148] sm:$0xff]
    %v77 = vld [vmem:[%s0 + $0x150] sm:$0xff]
    %v78 = vld [vmem:[%s0 + $0x158] sm:$0xff]
    %v79 = vld [vmem:[%s0 + $0x160] sm:$0xff]
    %v80 = vld [vmem:[%s0 + $0x168] sm:$0xff]
    %v81 = vld [vmem:[%s0 + $0x170] sm:$0xff]
    %v82 = vld [vmem:[%s0 + $0x178] sm:$0xff]
    %v83 = vld [vmem:[%s0 + $0x180] sm:$0xff]
    %v84 = vld [vmem:[%s0 + $0x188] sm:$0xff]
    %v85 = vld [vmem:[%s0 + $0x190] sm:$0xff]
    %v86 = vld [vmem:[%s0 + $0x198] sm:$0xff]
    %v87 = vld [vmem:[%s0 + $0x1a0] sm:$0xff]
    %v88 = vld [vmem:[%s0 + $0x1a8] sm:$0xff]
    %v89 = vld [vmem:[%s0 + $0x1b0] sm:$0xff]
    %v90 = vld [vmem:[%s0 + $0x1b8] sm:$0xff]
    %v91 = vld [vmem:[%s0 + $0x1c0] sm:$0xff]
    %v92 = vld [vmem:[%s0 + $0x1c8] sm:$0xff]
    %v93 = vld [vmem:[%s0 + $0x1d0] sm:$0xff]
    %v94 = vld [vmem:[%s0 + $0x1d8] sm:$0xff]
    %v95 = vld [vmem:[%s0 + $0x1e0] sm:$0xff]
    %v96 = vld [vmem:[%s0 + $0x1e8] sm:$0xff]
    %v97 = vld [vmem:[%s0 + $0x1f0] sm:$0xff]
    %v98 = vld [vmem:[%s0 + $0x1f8] sm:$0xff]
    %v99 = vld [vmem:[%s1] sm:$0xf]
    %vm100 = vcmask 31744
    %v102 = vsel %vm100, %v35, 0
    %v105 = vsel %vm100, %v36, 0
    %v108 = vsel %vm100, %v37, 0
    %v111 = vsel %vm100, %v38, 0
    %v114 = vsel %vm100, %v39, 0
    %v117 = vsel %vm100, %v40, 0
    %v120 = vsel %vm100, %v41, 0
    %v123 = vsel %vm100, %v42, 0
    %v126 = vsel %vm100, %v43, 0
    %v129 = vsel %vm100, %v44, 0
    %v132 = vsel %vm100, %v45, 0
    %v135 = vsel %vm100, %v46, 0
    %v138 = vsel %vm100, %v47, 0
    %v141 = vsel %vm100, %v48, 0
    %v144 = vsel %vm100, %v49, 0
    %v147 = vsel %vm100, %v50, 0
    %v150 = vsel %vm100, %v51, 0
    %v153 = vsel %vm100, %v52, 0
    %v156 = vsel %vm100, %v53, 0
    %v159 = vsel %vm100, %v54, 0
    %v162 = vsel %vm100, %v55, 0
    %v165 = vsel %vm100, %v56, 0
    %v168 = vsel %vm100, %v57, 0
    %v171 = vsel %vm100, %v58, 0
    %v174 = vsel %vm100, %v59, 0
    %v177 = vsel %vm100, %v60, 0
    %v180 = vsel %vm100, %v61, 0
    %v183 = vsel %vm100, %v62, 0
    %v186 = vsel %vm100, %v63, 0
    %v189 = vsel %vm100, %v64, 0
    %v192 = vsel %vm100, %v65, 0
    %v195 = vsel %vm100, %v66, 0
    %v198 = vsel %vm100, %v67, 0
    %v201 = vsel %vm100, %v68, 0
    %v204 = vsel %vm100, %v69, 0
    %v207 = vsel %vm100, %v70, 0
    %v210 = vsel %vm100, %v71, 0
    %v213 = vsel %vm100, %v72, 0
    %v216 = vsel %vm100, %v73, 0
    %v219 = vsel %vm100, %v74, 0
    %v222 = vsel %vm100, %v75, 0
    %v225 = vsel %vm100, %v76, 0
    %v228 = vsel %vm100, %v77, 0
    %v231 = vsel %vm100, %v78, 0
    %v234 = vsel %vm100, %v79, 0
    %v237 = vsel %vm100, %v80, 0
    %v240 = vsel %vm100, %v81, 0
    %v243 = vsel %vm100, %v82, 0
    %v246 = vsel %vm100, %v83, 0
    %v249 = vsel %vm100, %v84, 0
    %v252 = vsel %vm100, %v85, 0
    %v255 = vsel %vm100, %v86, 0
    %v258 = vsel %vm100, %v87, 0
    %v261 = vsel %vm100, %v88, 0
    %v264 = vsel %vm100, %v89, 0
    %v267 = vsel %vm100, %v90, 0
    %v270 = vsel %vm100, %v91, 0
    %v273 = vsel %vm100, %v92, 0
    %v276 = vsel %vm100, %v93, 0
    %v279 = vsel %vm100, %v94, 0
    %v282 = vsel %vm100, %v95, 0
    %v285 = vsel %vm100, %v96, 0
    %v288 = vsel %vm100, %v97, 0
    %v291 = vsel %vm100, %v98, 0
    %vm293 = vcmask 1043456
    %v295 = vsel %vm293, %v99, 0
    %297 = vmatpush.msra.mxu0 0.0
    %298 = vmatpush.msra.mxu0 0.0
    %299 = vmatpush.msra.mxu0 0.0
    %300 = vmatpush.msra.mxu0 0.0
    %301 = vmatpush.msra.mxu0 0.0
    %302 = vmatpush.msra.mxu0 0.0
    %303 = vmatpush.msra.mxu0 0.0
    %304 = vmatpush.msra.mxu0 0.0
    %305 = vmatpush.msra.mxu0 0.0
    %306 = vmatpush.msra.mxu0 0.0
    %307 = vmatpush.msra.mxu0 0.0
    %308 = vmatpush.msra.mxu0 0.0
    %309 = vmatpush.msra.mxu0 0.0
    %310 = vmatpush.msra.mxu0 0.0
    %311 = vmatpush.msra.mxu0 0.0
    %v312 = vand.u32 %v295, 4294901760
    %313 = vmatpush.msra.mxu0 %v312
    %v314 = vand.u32 %v102, 4294901760
    %v315 = vsub.f32 %v102, %v314
    %v316 = vand.u32 %v315, 4294901760
    %v317 = vsub.f32 %v315, %v316
    %v318 = vand.u32 %v317, 4294901760
    %319 = vmatmul.f32.gmra.mxu0 %v318
    %v320 = vpop.f32.mrf.mxu0
    %v321 = vadd.f32 0.0, %v320
    %v322 = vand.u32 %v105, 4294901760
    %v323 = vsub.f32 %v105, %v322
    %v324 = vand.u32 %v323, 4294901760
    %v325 = vsub.f32 %v323, %v324
    %v326 = vand.u32 %v325, 4294901760
    %327 = vmatmul.f32.gmra.mxu0 %v326
    %v328 = vpop.f32.mrf.mxu0
    %v329 = vadd.f32 0.0, %v328
    %v330 = vand.u32 %v108, 4294901760
    %v331 = vsub.f32 %v108, %v330
    %v332 = vand.u32 %v331, 4294901760
    %v333 = vsub.f32 %v331, %v332
    %v334 = vand.u32 %v333, 4294901760
    %335 = vmatmul.f32.gmra.mxu0 %v334
    %v336 = vpop.f32.mrf.mxu0
    %v337 = vadd.f32 0.0, %v336
    %v338 = vand.u32 %v111, 4294901760
    %v339 = vsub.f32 %v111, %v338
    %v340 = vand.u32 %v339, 4294901760
    %v341 = vsub.f32 %v339, %v340
    %v342 = vand.u32 %v341, 4294901760
    %343 = vmatmul.f32.gmra.mxu0 %v342
    %v344 = vpop.f32.mrf.mxu0
    %v345 = vadd.f32 0.0, %v344
    %v346 = vand.u32 %v114, 4294901760
    %v347 = vsub.f32 %v114, %v346
    %v348 = vand.u32 %v347, 4294901760
    %v349 = vsub.f32 %v347, %v348
    %v350 = vand.u32 %v349, 4294901760
    %351 = vmatmul.f32.gmra.mxu0 %v350
    %v352 = vpop.f32.mrf.mxu0
    %v353 = vadd.f32 0.0, %v352
    %v354 = vand.u32 %v117, 4294901760
    %v355 = vsub.f32 %v117, %v354
    %v356 = vand.u32 %v355, 4294901760
    %v357 = vsub.f32 %v355, %v356
    %v358 = vand.u32 %v357, 4294901760
    %359 = vmatmul.f32.gmra.mxu0 %v358
    %v360 = vpop.f32.mrf.mxu0
    %v361 = vadd.f32 0.0, %v360
    %v362 = vand.u32 %v120, 4294901760
    %v363 = vsub.f32 %v120, %v362
    %v364 = vand.u32 %v363, 4294901760
    %v365 = vsub.f32 %v363, %v364
    %v366 = vand.u32 %v365, 4294901760
    %367 = vmatmul.f32.gmra.mxu0 %v366
    %v368 = vpop.f32.mrf.mxu0
    %v369 = vadd.f32 0.0, %v368
    %v370 = vand.u32 %v123, 4294901760
    %v371 = vsub.f32 %v123, %v370
    %v372 = vand.u32 %v371, 4294901760
    %v373 = vsub.f32 %v371, %v372
    %v374 = vand.u32 %v373, 4294901760
    %375 = vmatmul.f32.gmra.mxu0 %v374
    %v376 = vpop.f32.mrf.mxu0
    %v377 = vadd.f32 0.0, %v376
    %v378 = vand.u32 %v126, 4294901760
    %v379 = vsub.f32 %v126, %v378
    %v380 = vand.u32 %v379, 4294901760
    %v381 = vsub.f32 %v379, %v380
    %v382 = vand.u32 %v381, 4294901760
    %383 = vmatmul.f32.gmra.mxu0 %v382
    %v384 = vpop.f32.mrf.mxu0
    %v385 = vadd.f32 0.0, %v384
    %v386 = vand.u32 %v129, 4294901760
    %v387 = vsub.f32 %v129, %v386
    %v388 = vand.u32 %v387, 4294901760
    %v389 = vsub.f32 %v387, %v388
    %v390 = vand.u32 %v389, 4294901760
    %391 = vmatmul.f32.gmra.mxu0 %v390
    %v392 = vpop.f32.mrf.mxu0
    %v393 = vadd.f32 0.0, %v392
    %v394 = vand.u32 %v132, 4294901760
    %v395 = vsub.f32 %v132, %v394
    %v396 = vand.u32 %v395, 4294901760
    %v397 = vsub.f32 %v395, %v396
    %v398 = vand.u32 %v397, 4294901760
    %399 = vmatmul.f32.gmra.mxu0 %v398
    %v400 = vpop.f32.mrf.mxu0
    %v401 = vadd.f32 0.0, %v400
    %v402 = vand.u32 %v135, 4294901760
    %v403 = vsub.f32 %v135, %v402
    %v404 = vand.u32 %v403, 4294901760
    %v405 = vsub.f32 %v403, %v404
    %v406 = vand.u32 %v405, 4294901760
    %407 = vmatmul.f32.gmra.mxu0 %v406
    %v408 = vpop.f32.mrf.mxu0
    %v409 = vadd.f32 0.0, %v408
    %v410 = vand.u32 %v138, 4294901760
    %v411 = vsub.f32 %v138, %v410
    %v412 = vand.u32 %v411, 4294901760
    %v413 = vsub.f32 %v411, %v412
    %v414 = vand.u32 %v413, 4294901760
    %415 = vmatmul.f32.gmra.mxu0 %v414
    %v416 = vpop.f32.mrf.mxu0
    %v417 = vadd.f32 0.0, %v416
    %v418 = vand.u32 %v141, 4294901760
    %v419 = vsub.f32 %v141, %v418
    %v420 = vand.u32 %v419, 4294901760
    %v421 = vsub.f32 %v419, %v420
    %v422 = vand.u32 %v421, 4294901760
    %423 = vmatmul.f32.gmra.mxu0 %v422
    %v424 = vpop.f32.mrf.mxu0
    %v425 = vadd.f32 0.0, %v424
    %v426 = vand.u32 %v144, 4294901760
    %v427 = vsub.f32 %v144, %v426
    %v428 = vand.u32 %v427, 4294901760
    %v429 = vsub.f32 %v427, %v428
    %v430 = vand.u32 %v429, 4294901760
    %431 = vmatmul.f32.gmra.mxu0 %v430
    %v432 = vpop.f32.mrf.mxu0
    %v433 = vadd.f32 0.0, %v432
    %v434 = vand.u32 %v147, 4294901760
    %v435 = vsub.f32 %v147, %v434
    %v436 = vand.u32 %v435, 4294901760
    %v437 = vsub.f32 %v435, %v436
    %v438 = vand.u32 %v437, 4294901760
    %439 = vmatmul.f32.gmra.mxu0 %v438
    %v440 = vpop.f32.mrf.mxu0
    %v441 = vadd.f32 0.0, %v440
    %v442 = vand.u32 %v150, 4294901760
    %v443 = vsub.f32 %v150, %v442
    %v444 = vand.u32 %v443, 4294901760
    %v445 = vsub.f32 %v443, %v444
    %v446 = vand.u32 %v445, 4294901760
    %447 = vmatmul.f32.gmra.mxu0 %v446
    %v448 = vpop.f32.mrf.mxu0
    %v449 = vadd.f32 0.0, %v448
    %v450 = vand.u32 %v153, 4294901760
    %v451 = vsub.f32 %v153, %v450
    %v452 = vand.u32 %v451, 4294901760
    %v453 = vsub.f32 %v451, %v452
    %v454 = vand.u32 %v453, 4294901760
    %455 = vmatmul.f32.gmra.mxu0 %v454
    %v456 = vpop.f32.mrf.mxu0
    %v457 = vadd.f32 0.0, %v456
    %v458 = vand.u32 %v156, 4294901760
    %v459 = vsub.f32 %v156, %v458
    %v460 = vand.u32 %v459, 4294901760
    %v461 = vsub.f32 %v459, %v460
    %v462 = vand.u32 %v461, 4294901760
    %463 = vmatmul.f32.gmra.mxu0 %v462
    %v464 = vpop.f32.mrf.mxu0
    %v465 = vadd.f32 0.0, %v464
    %v466 = vand.u32 %v159, 4294901760
    %v467 = vsub.f32 %v159, %v466
    %v468 = vand.u32 %v467, 4294901760
    %v469 = vsub.f32 %v467, %v468
    %v470 = vand.u32 %v469, 4294901760
    %471 = vmatmul.f32.gmra.mxu0 %v470
    %v472 = vpop.f32.mrf.mxu0
    %v473 = vadd.f32 0.0, %v472
    %v474 = vand.u32 %v162, 4294901760
    %v475 = vsub.f32 %v162, %v474
    %v476 = vand.u32 %v475, 4294901760
    %v477 = vsub.f32 %v475, %v476
    %v478 = vand.u32 %v477, 4294901760
    %479 = vmatmul.f32.gmra.mxu0 %v478
    %v480 = vpop.f32.mrf.mxu0
    %v481 = vadd.f32 0.0, %v480
    %v482 = vand.u32 %v165, 4294901760
    %v483 = vsub.f32 %v165, %v482
    %v484 = vand.u32 %v483, 4294901760
    %v485 = vsub.f32 %v483, %v484
    %v486 = vand.u32 %v485, 4294901760
    %487 = vmatmul.f32.gmra.mxu0 %v486
    %v488 = vpop.f32.mrf.mxu0
    %v489 = vadd.f32 0.0, %v488
    %v490 = vand.u32 %v168, 4294901760
    %v491 = vsub.f32 %v168, %v490
    %v492 = vand.u32 %v491, 4294901760
    %v493 = vsub.f32 %v491, %v492
    %v494 = vand.u32 %v493, 4294901760
    %495 = vmatmul.f32.gmra.mxu0 %v494
    %v496 = vpop.f32.mrf.mxu0
    %v497 = vadd.f32 0.0, %v496
    %v498 = vand.u32 %v171, 4294901760
    %v499 = vsub.f32 %v171, %v498
    %v500 = vand.u32 %v499, 4294901760
    %v501 = vsub.f32 %v499, %v500
    %v502 = vand.u32 %v501, 4294901760
    %503 = vmatmul.f32.gmra.mxu0 %v502
    %v504 = vpop.f32.mrf.mxu0
    %v505 = vadd.f32 0.0, %v504
    %v506 = vand.u32 %v174, 4294901760
    %v507 = vsub.f32 %v174, %v506
    %v508 = vand.u32 %v507, 4294901760
    %v509 = vsub.f32 %v507, %v508
    %v510 = vand.u32 %v509, 4294901760
    %511 = vmatmul.f32.gmra.mxu0 %v510
    %v512 = vpop.f32.mrf.mxu0
    %v513 = vadd.f32 0.0, %v512
    %v514 = vand.u32 %v177, 4294901760
    %v515 = vsub.f32 %v177, %v514
    %v516 = vand.u32 %v515, 4294901760
    %v517 = vsub.f32 %v515, %v516
    %v518 = vand.u32 %v517, 4294901760
    %519 = vmatmul.f32.gmra.mxu0 %v518
    %v520 = vpop.f32.mrf.mxu0
    %v521 = vadd.f32 0.0, %v520
    %v522 = vand.u32 %v180, 4294901760
    %v523 = vsub.f32 %v180, %v522
    %v524 = vand.u32 %v523, 4294901760
    %v525 = vsub.f32 %v523, %v524
    %v526 = vand.u32 %v525, 4294901760
    %527 = vmatmul.f32.gmra.mxu0 %v526
    %v528 = vpop.f32.mrf.mxu0
    %v529 = vadd.f32 0.0, %v528
    %v530 = vand.u32 %v183, 4294901760
    %v531 = vsub.f32 %v183, %v530
    %v532 = vand.u32 %v531, 4294901760
    %v533 = vsub.f32 %v531, %v532
    %v534 = vand.u32 %v533, 4294901760
    %535 = vmatmul.f32.gmra.mxu0 %v534
    %v536 = vpop.f32.mrf.mxu0
    %v537 = vadd.f32 0.0, %v536
    %v538 = vand.u32 %v186, 4294901760
    %v539 = vsub.f32 %v186, %v538
    %v540 = vand.u32 %v539, 4294901760
    %v541 = vsub.f32 %v539, %v540
    %v542 = vand.u32 %v541, 4294901760
    %543 = vmatmul.f32.gmra.mxu0 %v542
    %v544 = vpop.f32.mrf.mxu0
    %v545 = vadd.f32 0.0, %v544
    %v546 = vand.u32 %v189, 4294901760
    %v547 = vsub.f32 %v189, %v546
    %v548 = vand.u32 %v547, 4294901760
    %v549 = vsub.f32 %v547, %v548
    %v550 = vand.u32 %v549, 4294901760
    %551 = vmatmul.f32.gmra.mxu0 %v550
    %v552 = vpop.f32.mrf.mxu0
    %v553 = vadd.f32 0.0, %v552
    %v554 = vand.u32 %v192, 4294901760
    %v555 = vsub.f32 %v192, %v554
    %v556 = vand.u32 %v555, 4294901760
    %v557 = vsub.f32 %v555, %v556
    %v558 = vand.u32 %v557, 4294901760
    %559 = vmatmul.f32.gmra.mxu0 %v558
    %v560 = vpop.f32.mrf.mxu0
    %v561 = vadd.f32 0.0, %v560
    %v562 = vand.u32 %v195, 4294901760
    %v563 = vsub.f32 %v195, %v562
    %v564 = vand.u32 %v563, 4294901760
    %v565 = vsub.f32 %v563, %v564
    %v566 = vand.u32 %v565, 4294901760
    %567 = vmatmul.f32.gmra.mxu0 %v566
    %v568 = vpop.f32.mrf.mxu0
    %v569 = vadd.f32 0.0, %v568
    %v570 = vand.u32 %v198, 4294901760
    %v571 = vsub.f32 %v198, %v570
    %v572 = vand.u32 %v571, 4294901760
    %v573 = vsub.f32 %v571, %v572
    %v574 = vand.u32 %v573, 4294901760
    %575 = vmatmul.f32.gmra.mxu0 %v574
    %v576 = vpop.f32.mrf.mxu0
    %v577 = vadd.f32 0.0, %v576
    %v578 = vand.u32 %v201, 4294901760
    %v579 = vsub.f32 %v201, %v578
    %v580 = vand.u32 %v579, 4294901760
    %v581 = vsub.f32 %v579, %v580
    %v582 = vand.u32 %v581, 4294901760
    %583 = vmatmul.f32.gmra.mxu0 %v582
    %v584 = vpop.f32.mrf.mxu0
    %v585 = vadd.f32 0.0, %v584
    %v586 = vand.u32 %v204, 4294901760
    %v587 = vsub.f32 %v204, %v586
    %v588 = vand.u32 %v587, 4294901760
    %v589 = vsub.f32 %v587, %v588
    %v590 = vand.u32 %v589, 4294901760
    %591 = vmatmul.f32.gmra.mxu0 %v590
    %v592 = vpop.f32.mrf.mxu0
    %v593 = vadd.f32 0.0, %v592
    %v594 = vand.u32 %v207, 4294901760
    %v595 = vsub.f32 %v207, %v594
    %v596 = vand.u32 %v595, 4294901760
    %v597 = vsub.f32 %v595, %v596
    %v598 = vand.u32 %v597, 4294901760
    %599 = vmatmul.f32.gmra.mxu0 %v598
    %v600 = vpop.f32.mrf.mxu0
    %v601 = vadd.f32 0.0, %v600
    %v602 = vand.u32 %v210, 4294901760
    %v603 = vsub.f32 %v210, %v602
    %v604 = vand.u32 %v603, 4294901760
    %v605 = vsub.f32 %v603, %v604
    %v606 = vand.u32 %v605, 4294901760
    %607 = vmatmul.f32.gmra.mxu0 %v606
    %v608 = vpop.f32.mrf.mxu0
    %v609 = vadd.f32 0.0, %v608
    %v610 = vand.u32 %v213, 4294901760
    %v611 = vsub.f32 %v213, %v610
    %v612 = vand.u32 %v611, 4294901760
    %v613 = vsub.f32 %v611, %v612
    %v614 = vand.u32 %v613, 4294901760
    %615 = vmatmul.f32.gmra.mxu0 %v614
    %v616 = vpop.f32.mrf.mxu0
    %v617 = vadd.f32 0.0, %v616
    %v618 = vand.u32 %v216, 4294901760
    %v619 = vsub.f32 %v216, %v618
    %v620 = vand.u32 %v619, 4294901760
    %v621 = vsub.f32 %v619, %v620
    %v622 = vand.u32 %v621, 4294901760
    %623 = vmatmul.f32.gmra.mxu0 %v622
    %v624 = vpop.f32.mrf.mxu0
    %v625 = vadd.f32 0.0, %v624
    %v626 = vand.u32 %v219, 4294901760
    %v627 = vsub.f32 %v219, %v626
    %v628 = vand.u32 %v627, 4294901760
    %v629 = vsub.f32 %v627, %v628
    %v630 = vand.u32 %v629, 4294901760
    %631 = vmatmul.f32.gmra.mxu0 %v630
    %v632 = vpop.f32.mrf.mxu0
    %v633 = vadd.f32 0.0, %v632
    %v634 = vand.u32 %v222, 4294901760
    %v635 = vsub.f32 %v222, %v634
    %v636 = vand.u32 %v635, 4294901760
    %v637 = vsub.f32 %v635, %v636
    %v638 = vand.u32 %v637, 4294901760
    %639 = vmatmul.f32.gmra.mxu0 %v638
    %v640 = vpop.f32.mrf.mxu0
    %v641 = vadd.f32 0.0, %v640
    %v642 = vand.u32 %v225, 4294901760
    %v643 = vsub.f32 %v225, %v642
    %v644 = vand.u32 %v643, 4294901760
    %v645 = vsub.f32 %v643, %v644
    %v646 = vand.u32 %v645, 4294901760
    %647 = vmatmul.f32.gmra.mxu0 %v646
    %v648 = vpop.f32.mrf.mxu0
    %v649 = vadd.f32 0.0, %v648
    %v650 = vand.u32 %v228, 4294901760
    %v651 = vsub.f32 %v228, %v650
    %v652 = vand.u32 %v651, 4294901760
    %v653 = vsub.f32 %v651, %v652
    %v654 = vand.u32 %v653, 4294901760
    %655 = vmatmul.f32.gmra.mxu0 %v654
    %v656 = vpop.f32.mrf.mxu0
    %v657 = vadd.f32 0.0, %v656
    %v658 = vand.u32 %v231, 4294901760
    %v659 = vsub.f32 %v231, %v658
    %v660 = vand.u32 %v659, 4294901760
    %v661 = vsub.f32 %v659, %v660
    %v662 = vand.u32 %v661, 4294901760
    %663 = vmatmul.f32.gmra.mxu0 %v662
    %v664 = vpop.f32.mrf.mxu0
    %v665 = vadd.f32 0.0, %v664
    %v666 = vand.u32 %v234, 4294901760
    %v667 = vsub.f32 %v234, %v666
    %v668 = vand.u32 %v667, 4294901760
    %v669 = vsub.f32 %v667, %v668
    %v670 = vand.u32 %v669, 4294901760
    %671 = vmatmul.f32.gmra.mxu0 %v670
    %v672 = vpop.f32.mrf.mxu0
    %v673 = vadd.f32 0.0, %v672
    %v674 = vand.u32 %v237, 4294901760
    %v675 = vsub.f32 %v237, %v674
    %v676 = vand.u32 %v675, 4294901760
    %v677 = vsub.f32 %v675, %v676
    %v678 = vand.u32 %v677, 4294901760
    %679 = vmatmul.f32.gmra.mxu0 %v678
    %v680 = vpop.f32.mrf.mxu0
    %v681 = vadd.f32 0.0, %v680
    %v682 = vand.u32 %v240, 4294901760
    %v683 = vsub.f32 %v240, %v682
    %v684 = vand.u32 %v683, 4294901760
    %v685 = vsub.f32 %v683, %v684
    %v686 = vand.u32 %v685, 4294901760
    %687 = vmatmul.f32.gmra.mxu0 %v686
    %v688 = vpop.f32.mrf.mxu0
    %v689 = vadd.f32 0.0, %v688
    %v690 = vand.u32 %v243, 4294901760
    %v691 = vsub.f32 %v243, %v690
    %v692 = vand.u32 %v691, 4294901760
    %v693 = vsub.f32 %v691, %v692
    %v694 = vand.u32 %v693, 4294901760
    %695 = vmatmul.f32.gmra.mxu0 %v694
    %v696 = vpop.f32.mrf.mxu0
    %v697 = vadd.f32 0.0, %v696
    %v698 = vand.u32 %v246, 4294901760
    %v699 = vsub.f32 %v246, %v698
    %v700 = vand.u32 %v699, 4294901760
    %v701 = vsub.f32 %v699, %v700
    %v702 = vand.u32 %v701, 4294901760
    %703 = vmatmul.f32.gmra.mxu0 %v702
    %v704 = vpop.f32.mrf.mxu0
    %v705 = vadd.f32 0.0, %v704
    %v706 = vand.u32 %v249, 4294901760
    %v707 = vsub.f32 %v249, %v706
    %v708 = vand.u32 %v707, 4294901760
    %v709 = vsub.f32 %v707, %v708
    %v710 = vand.u32 %v709, 4294901760
    %711 = vmatmul.f32.gmra.mxu0 %v710
    %v712 = vpop.f32.mrf.mxu0
    %v713 = vadd.f32 0.0, %v712
    %v714 = vand.u32 %v252, 4294901760
    %v715 = vsub.f32 %v252, %v714
    %v716 = vand.u32 %v715, 4294901760
    %v717 = vsub.f32 %v715, %v716
    %v718 = vand.u32 %v717, 4294901760
    %719 = vmatmul.f32.gmra.mxu0 %v718
    %v720 = vpop.f32.mrf.mxu0
    %v721 = vadd.f32 0.0, %v720
    %v722 = vand.u32 %v255, 4294901760
    %v723 = vsub.f32 %v255, %v722
    %v724 = vand.u32 %v723, 4294901760
    %v725 = vsub.f32 %v723, %v724
    %v726 = vand.u32 %v725, 4294901760
    %727 = vmatmul.f32.gmra.mxu0 %v726
    %v728 = vpop.f32.mrf.mxu0
    %v729 = vadd.f32 0.0, %v728
    %v730 = vand.u32 %v258, 4294901760
    %v731 = vsub.f32 %v258, %v730
    %v732 = vand.u32 %v731, 4294901760
    %v733 = vsub.f32 %v731, %v732
    %v734 = vand.u32 %v733, 4294901760
    %735 = vmatmul.f32.gmra.mxu0 %v734
    %v736 = vpop.f32.mrf.mxu0
    %v737 = vadd.f32 0.0, %v736
    %v738 = vand.u32 %v261, 4294901760
    %v739 = vsub.f32 %v261, %v738
    %v740 = vand.u32 %v739, 4294901760
    %v741 = vsub.f32 %v739, %v740
    %v742 = vand.u32 %v741, 4294901760
    %743 = vmatmul.f32.gmra.mxu0 %v742
    %v744 = vpop.f32.mrf.mxu0
    %v745 = vadd.f32 0.0, %v744
    %v746 = vand.u32 %v264, 4294901760
    %v747 = vsub.f32 %v264, %v746
    %v748 = vand.u32 %v747, 4294901760
    %v749 = vsub.f32 %v747, %v748
    %v750 = vand.u32 %v749, 4294901760
    %751 = vmatmul.f32.gmra.mxu0 %v750
    %v752 = vpop.f32.mrf.mxu0
    %v753 = vadd.f32 0.0, %v752
    %v754 = vand.u32 %v267, 4294901760
    %v755 = vsub.f32 %v267, %v754
    %v756 = vand.u32 %v755, 4294901760
    %v757 = vsub.f32 %v755, %v756
    %v758 = vand.u32 %v757, 4294901760
    %759 = vmatmul.f32.gmra.mxu0 %v758
    %v760 = vpop.f32.mrf.mxu0
    %v761 = vadd.f32 0.0, %v760
    %v762 = vand.u32 %v270, 4294901760
    %v763 = vsub.f32 %v270, %v762
    %v764 = vand.u32 %v763, 4294901760
    %v765 = vsub.f32 %v763, %v764
    %v766 = vand.u32 %v765, 4294901760
    %767 = vmatmul.f32.gmra.mxu0 %v766
    %v768 = vpop.f32.mrf.mxu0
    %v769 = vadd.f32 0.0, %v768
    %v770 = vand.u32 %v273, 4294901760
    %v771 = vsub.f32 %v273, %v770
    %v772 = vand.u32 %v771, 4294901760
    %v773 = vsub.f32 %v771, %v772
    %v774 = vand.u32 %v773, 4294901760
    %775 = vmatmul.f32.gmra.mxu0 %v774
    %v776 = vpop.f32.mrf.mxu0
    %v777 = vadd.f32 0.0, %v776
    %v778 = vand.u32 %v276, 4294901760
    %v779 = vsub.f32 %v276, %v778
    %v780 = vand.u32 %v779, 4294901760
    %v781 = vsub.f32 %v779, %v780
    %v782 = vand.u32 %v781, 4294901760
    %783 = vmatmul.f32.gmra.mxu0 %v782
    %v784 = vpop.f32.mrf.mxu0
    %v785 = vadd.f32 0.0, %v784
    %v786 = vand.u32 %v279, 4294901760
    %v787 = vsub.f32 %v279, %v786
    %v788 = vand.u32 %v787, 4294901760
    %v789 = vsub.f32 %v787, %v788
    %v790 = vand.u32 %v789, 4294901760
    %791 = vmatmul.f32.gmra.mxu0 %v790
    %v792 = vpop.f32.mrf.mxu0
    %v793 = vadd.f32 0.0, %v792
    %v794 = vand.u32 %v282, 4294901760
    %v795 = vsub.f32 %v282, %v794
    %v796 = vand.u32 %v795, 4294901760
    %v797 = vsub.f32 %v795, %v796
    %v798 = vand.u32 %v797, 4294901760
    %799 = vmatmul.f32.gmra.mxu0 %v798
    %v800 = vpop.f32.mrf.mxu0
    %v801 = vadd.f32 0.0, %v800
    %v802 = vand.u32 %v285, 4294901760
    %v803 = vsub.f32 %v285, %v802
    %v804 = vand.u32 %v803, 4294901760
    %v805 = vsub.f32 %v803, %v804
    %v806 = vand.u32 %v805, 4294901760
    %807 = vmatmul.f32.gmra.mxu0 %v806
    %v808 = vpop.f32.mrf.mxu0
    %v809 = vadd.f32 0.0, %v808
    %v810 = vand.u32 %v288, 4294901760
    %v811 = vsub.f32 %v288, %v810
    %v812 = vand.u32 %v811, 4294901760
    %v813 = vsub.f32 %v811, %v812
    %v814 = vand.u32 %v813, 4294901760
    %815 = vmatmul.f32.gmra.mxu0 %v814
    %v816 = vpop.f32.mrf.mxu0
    %v817 = vadd.f32 0.0, %v816
    %v818 = vand.u32 %v291, 4294901760
    %v819 = vsub.f32 %v291, %v818
    %v820 = vand.u32 %v819, 4294901760
    %v821 = vsub.f32 %v819, %v820
    %v822 = vand.u32 %v821, 4294901760
    %823 = vmatmul.f32.gmra.mxu0 %v822
    %v824 = vpop.f32.mrf.mxu0
    %v825 = vadd.f32 0.0, %v824
    %826 = vdwg.mxu0
    %827 = vmatpush.msra.mxu0 0.0
    %828 = vmatpush.msra.mxu0 0.0
    %829 = vmatpush.msra.mxu0 0.0
    %830 = vmatpush.msra.mxu0 0.0
    %831 = vmatpush.msra.mxu0 0.0
    %832 = vmatpush.msra.mxu0 0.0
    %833 = vmatpush.msra.mxu0 0.0
    %834 = vmatpush.msra.mxu0 0.0
    %835 = vmatpush.msra.mxu0 0.0
    %836 = vmatpush.msra.mxu0 0.0
    %837 = vmatpush.msra.mxu0 0.0
    %838 = vmatpush.msra.mxu0 0.0
    %839 = vmatpush.msra.mxu0 0.0
    %840 = vmatpush.msra.mxu0 0.0
    %841 = vmatpush.msra.mxu0 0.0
    %v842 = vand.u32 %v295, 4294901760
    %v843 = vsub.f32 %v295, %v842
    %v844 = vand.u32 %v843, 4294901760
    %v845 = vsub.f32 %v843, %v844
    %v846 = vand.u32 %v845, 4294901760
    %847 = vmatpush.msra.mxu0 %v846
    %v848 = vand.u32 %v102, 4294901760
    %849 = vmatmul.f32.gmra.mxu0 %v848
    %v850 = vpop.f32.mrf.mxu0
    %v851 = vadd.f32 %v321, %v850
    %v852 = vand.u32 %v105, 4294901760
    %853 = vmatmul.f32.gmra.mxu0 %v852
    %v854 = vpop.f32.mrf.mxu0
    %v855 = vadd.f32 %v329, %v854
    %v856 = vand.u32 %v108, 4294901760
    %857 = vmatmul.f32.gmra.mxu0 %v856
    %v858 = vpop.f32.mrf.mxu0
    %v859 = vadd.f32 %v337, %v858
    %v860 = vand.u32 %v111, 4294901760
    %861 = vmatmul.f32.gmra.mxu0 %v860
    %v862 = vpop.f32.mrf.mxu0
    %v863 = vadd.f32 %v345, %v862
    %v864 = vand.u32 %v114, 4294901760
    %865 = vmatmul.f32.gmra.mxu0 %v864
    %v866 = vpop.f32.mrf.mxu0
    %v867 = vadd.f32 %v353, %v866
    %v868 = vand.u32 %v117, 4294901760
    %869 = vmatmul.f32.gmra.mxu0 %v868
    %v870 = vpop.f32.mrf.mxu0
    %v871 = vadd.f32 %v361, %v870
    %v872 = vand.u32 %v120, 4294901760
    %873 = vmatmul.f32.gmra.mxu0 %v872
    %v874 = vpop.f32.mrf.mxu0
    %v875 = vadd.f32 %v369, %v874
    %v876 = vand.u32 %v123, 4294901760
    %877 = vmatmul.f32.gmra.mxu0 %v876
    %v878 = vpop.f32.mrf.mxu0
    %v879 = vadd.f32 %v377, %v878
    %v880 = vand.u32 %v126, 4294901760
    %881 = vmatmul.f32.gmra.mxu0 %v880
    %v882 = vpop.f32.mrf.mxu0
    %v883 = vadd.f32 %v385, %v882
    %v884 = vand.u32 %v129, 4294901760
    %885 = vmatmul.f32.gmra.mxu0 %v884
    %v886 = vpop.f32.mrf.mxu0
    %v887 = vadd.f32 %v393, %v886
    %v888 = vand.u32 %v132, 4294901760
    %889 = vmatmul.f32.gmra.mxu0 %v888
    %v890 = vpop.f32.mrf.mxu0
    %v891 = vadd.f32 %v401, %v890
    %v892 = vand.u32 %v135, 4294901760
    %893 = vmatmul.f32.gmra.mxu0 %v892
    %v894 = vpop.f32.mrf.mxu0
    %v895 = vadd.f32 %v409, %v894
    %v896 = vand.u32 %v138, 4294901760
    %897 = vmatmul.f32.gmra.mxu0 %v896
    %v898 = vpop.f32.mrf.mxu0
    %v899 = vadd.f32 %v417, %v898
    %v900 = vand.u32 %v141, 4294901760
    %901 = vmatmul.f32.gmra.mxu0 %v900
    %v902 = vpop.f32.mrf.mxu0
    %v903 = vadd.f32 %v425, %v902
    %v904 = vand.u32 %v144, 4294901760
    %905 = vmatmul.f32.gmra.mxu0 %v904
    %v906 = vpop.f32.mrf.mxu0
    %v907 = vadd.f32 %v433, %v906
    %v908 = vand.u32 %v147, 4294901760
    %909 = vmatmul.f32.gmra.mxu0 %v908
    %v910 = vpop.f32.mrf.mxu0
    %v911 = vadd.f32 %v441, %v910
    %v912 = vand.u32 %v150, 4294901760
    %913 = vmatmul.f32.gmra.mxu0 %v912
    %v914 = vpop.f32.mrf.mxu0
    %v915 = vadd.f32 %v449, %v914
    %v916 = vand.u32 %v153, 4294901760
    %917 = vmatmul.f32.gmra.mxu0 %v916
    %v918 = vpop.f32.mrf.mxu0
    %v919 = vadd.f32 %v457, %v918
    %v920 = vand.u32 %v156, 4294901760
    %921 = vmatmul.f32.gmra.mxu0 %v920
    %v922 = vpop.f32.mrf.mxu0
    %v923 = vadd.f32 %v465, %v922
    %v924 = vand.u32 %v159, 4294901760
    %925 = vmatmul.f32.gmra.mxu0 %v924
    %v926 = vpop.f32.mrf.mxu0
    %v927 = vadd.f32 %v473, %v926
    %v928 = vand.u32 %v162, 4294901760
    %929 = vmatmul.f32.gmra.mxu0 %v928
    %v930 = vpop.f32.mrf.mxu0
    %v931 = vadd.f32 %v481, %v930
    %v932 = vand.u32 %v165, 4294901760
    %933 = vmatmul.f32.gmra.mxu0 %v932
    %v934 = vpop.f32.mrf.mxu0
    %v935 = vadd.f32 %v489, %v934
    %v936 = vand.u32 %v168, 4294901760
    %937 = vmatmul.f32.gmra.mxu0 %v936
    %v938 = vpop.f32.mrf.mxu0
    %v939 = vadd.f32 %v497, %v938
    %v940 = vand.u32 %v171, 4294901760
    %941 = vmatmul.f32.gmra.mxu0 %v940
    %v942 = vpop.f32.mrf.mxu0
    %v943 = vadd.f32 %v505, %v942
    %v944 = vand.u32 %v174, 4294901760
    %945 = vmatmul.f32.gmra.mxu0 %v944
    %v946 = vpop.f32.mrf.mxu0
    %v947 = vadd.f32 %v513, %v946
    %v948 = vand.u32 %v177, 4294901760
    %949 = vmatmul.f32.gmra.mxu0 %v948
    %v950 = vpop.f32.mrf.mxu0
    %v951 = vadd.f32 %v521, %v950
    %v952 = vand.u32 %v180, 4294901760
    %953 = vmatmul.f32.gmra.mxu0 %v952
    %v954 = vpop.f32.mrf.mxu0
    %v955 = vadd.f32 %v529, %v954
    %v956 = vand.u32 %v183, 4294901760
    %957 = vmatmul.f32.gmra.mxu0 %v956
    %v958 = vpop.f32.mrf.mxu0
    %v959 = vadd.f32 %v537, %v958
    %v960 = vand.u32 %v186, 4294901760
    %961 = vmatmul.f32.gmra.mxu0 %v960
    %v962 = vpop.f32.mrf.mxu0
    %v963 = vadd.f32 %v545, %v962
    %v964 = vand.u32 %v189, 4294901760
    %965 = vmatmul.f32.gmra.mxu0 %v964
    %v966 = vpop.f32.mrf.mxu0
    %v967 = vadd.f32 %v553, %v966
    %v968 = vand.u32 %v192, 4294901760
    %969 = vmatmul.f32.gmra.mxu0 %v968
    %v970 = vpop.f32.mrf.mxu0
    %v971 = vadd.f32 %v561, %v970
    %v972 = vand.u32 %v195, 4294901760
    %973 = vmatmul.f32.gmra.mxu0 %v972
    %v974 = vpop.f32.mrf.mxu0
    %v975 = vadd.f32 %v569, %v974
    %v976 = vand.u32 %v198, 4294901760
    %977 = vmatmul.f32.gmra.mxu0 %v976
    %v978 = vpop.f32.mrf.mxu0
    %v979 = vadd.f32 %v577, %v978
    %v980 = vand.u32 %v201, 4294901760
    %981 = vmatmul.f32.gmra.mxu0 %v980
    %v982 = vpop.f32.mrf.mxu0
    %v983 = vadd.f32 %v585, %v982
    %v984 = vand.u32 %v204, 4294901760
    %985 = vmatmul.f32.gmra.mxu0 %v984
    %v986 = vpop.f32.mrf.mxu0
    %v987 = vadd.f32 %v593, %v986
    %v988 = vand.u32 %v207, 4294901760
    %989 = vmatmul.f32.gmra.mxu0 %v988
    %v990 = vpop.f32.mrf.mxu0
    %v991 = vadd.f32 %v601, %v990
    %v992 = vand.u32 %v210, 4294901760
    %993 = vmatmul.f32.gmra.mxu0 %v992
    %v994 = vpop.f32.mrf.mxu0
    %v995 = vadd.f32 %v609, %v994
    %v996 = vand.u32 %v213, 4294901760
    %997 = vmatmul.f32.gmra.mxu0 %v996
    %v998 = vpop.f32.mrf.mxu0
    %v999 = vadd.f32 %v617, %v998
    %v1000 = vand.u32 %v216, 4294901760
    %1001 = vmatmul.f32.gmra.mxu0 %v1000
    %v1002 = vpop.f32.mrf.mxu0
    %v1003 = vadd.f32 %v625, %v1002
    %v1004 = vand.u32 %v219, 4294901760
    %1005 = vmatmul.f32.gmra.mxu0 %v1004
    %v1006 = vpop.f32.mrf.mxu0
    %v1007 = vadd.f32 %v633, %v1006
    %v1008 = vand.u32 %v222, 4294901760
    %1009 = vmatmul.f32.gmra.mxu0 %v1008
    %v1010 = vpop.f32.mrf.mxu0
    %v1011 = vadd.f32 %v641, %v1010
    %v1012 = vand.u32 %v225, 4294901760
    %1013 = vmatmul.f32.gmra.mxu0 %v1012
    %v1014 = vpop.f32.mrf.mxu0
    %v1015 = vadd.f32 %v649, %v1014
    %v1016 = vand.u32 %v228, 4294901760
    %1017 = vmatmul.f32.gmra.mxu0 %v1016
    %v1018 = vpop.f32.mrf.mxu0
    %v1019 = vadd.f32 %v657, %v1018
    %v1020 = vand.u32 %v231, 4294901760
    %1021 = vmatmul.f32.gmra.mxu0 %v1020
    %v1022 = vpop.f32.mrf.mxu0
    %v1023 = vadd.f32 %v665, %v1022
    %v1024 = vand.u32 %v234, 4294901760
    %1025 = vmatmul.f32.gmra.mxu0 %v1024
    %v1026 = vpop.f32.mrf.mxu0
    %v1027 = vadd.f32 %v673, %v1026
    %v1028 = vand.u32 %v237, 4294901760
    %1029 = vmatmul.f32.gmra.mxu0 %v1028
    %v1030 = vpop.f32.mrf.mxu0
    %v1031 = vadd.f32 %v681, %v1030
    %v1032 = vand.u32 %v240, 4294901760
    %1033 = vmatmul.f32.gmra.mxu0 %v1032
    %v1034 = vpop.f32.mrf.mxu0
    %v1035 = vadd.f32 %v689, %v1034
    %v1036 = vand.u32 %v243, 4294901760
    %1037 = vmatmul.f32.gmra.mxu0 %v1036
    %v1038 = vpop.f32.mrf.mxu0
    %v1039 = vadd.f32 %v697, %v1038
    %v1040 = vand.u32 %v246, 4294901760
    %1041 = vmatmul.f32.gmra.mxu0 %v1040
    %v1042 = vpop.f32.mrf.mxu0
    %v1043 = vadd.f32 %v705, %v1042
    %v1044 = vand.u32 %v249, 4294901760
    %1045 = vmatmul.f32.gmra.mxu0 %v1044
    %v1046 = vpop.f32.mrf.mxu0
    %v1047 = vadd.f32 %v713, %v1046
    %v1048 = vand.u32 %v252, 4294901760
    %1049 = vmatmul.f32.gmra.mxu0 %v1048
    %v1050 = vpop.f32.mrf.mxu0
    %v1051 = vadd.f32 %v721, %v1050
    %v1052 = vand.u32 %v255, 4294901760
    %1053 = vmatmul.f32.gmra.mxu0 %v1052
    %v1054 = vpop.f32.mrf.mxu0
    %v1055 = vadd.f32 %v729, %v1054
    %v1056 = vand.u32 %v258, 4294901760
    %1057 = vmatmul.f32.gmra.mxu0 %v1056
    %v1058 = vpop.f32.mrf.mxu0
    %v1059 = vadd.f32 %v737, %v1058
    %v1060 = vand.u32 %v261, 4294901760
    %1061 = vmatmul.f32.gmra.mxu0 %v1060
    %v1062 = vpop.f32.mrf.mxu0
    %v1063 = vadd.f32 %v745, %v1062
    %v1064 = vand.u32 %v264, 4294901760
    %1065 = vmatmul.f32.gmra.mxu0 %v1064
    %v1066 = vpop.f32.mrf.mxu0
    %v1067 = vadd.f32 %v753, %v1066
    %v1068 = vand.u32 %v267, 4294901760
    %1069 = vmatmul.f32.gmra.mxu0 %v1068
    %v1070 = vpop.f32.mrf.mxu0
    %v1071 = vadd.f32 %v761, %v1070
    %v1072 = vand.u32 %v270, 4294901760
    %1073 = vmatmul.f32.gmra.mxu0 %v1072
    %v1074 = vpop.f32.mrf.mxu0
    %v1075 = vadd.f32 %v769, %v1074
    %v1076 = vand.u32 %v273, 4294901760
    %1077 = vmatmul.f32.gmra.mxu0 %v1076
    %v1078 = vpop.f32.mrf.mxu0
    %v1079 = vadd.f32 %v777, %v1078
    %v1080 = vand.u32 %v276, 4294901760
    %1081 = vmatmul.f32.gmra.mxu0 %v1080
    %v1082 = vpop.f32.mrf.mxu0
    %v1083 = vadd.f32 %v785, %v1082
    %v1084 = vand.u32 %v279, 4294901760
    %1085 = vmatmul.f32.gmra.mxu0 %v1084
    %v1086 = vpop.f32.mrf.mxu0
    %v1087 = vadd.f32 %v793, %v1086
    %v1088 = vand.u32 %v282, 4294901760
    %1089 = vmatmul.f32.gmra.mxu0 %v1088
    %v1090 = vpop.f32.mrf.mxu0
    %v1091 = vadd.f32 %v801, %v1090
    %v1092 = vand.u32 %v285, 4294901760
    %1093 = vmatmul.f32.gmra.mxu0 %v1092
    %v1094 = vpop.f32.mrf.mxu0
    %v1095 = vadd.f32 %v809, %v1094
    %v1096 = vand.u32 %v288, 4294901760
    %1097 = vmatmul.f32.gmra.mxu0 %v1096
    %v1098 = vpop.f32.mrf.mxu0
    %v1099 = vadd.f32 %v817, %v1098
    %v1100 = vand.u32 %v291, 4294901760
    %1101 = vmatmul.f32.gmra.mxu0 %v1100
    %v1102 = vpop.f32.mrf.mxu0
    %v1103 = vadd.f32 %v825, %v1102
    %1104 = vdwg.mxu0
    %1105 = vmatpush.msra.mxu0 0.0
    %1106 = vmatpush.msra.mxu0 0.0
    %1107 = vmatpush.msra.mxu0 0.0
    %1108 = vmatpush.msra.mxu0 0.0
    %1109 = vmatpush.msra.mxu0 0.0
    %1110 = vmatpush.msra.mxu0 0.0
    %1111 = vmatpush.msra.mxu0 0.0
    %1112 = vmatpush.msra.mxu0 0.0
    %1113 = vmatpush.msra.mxu0 0.0
    %1114 = vmatpush.msra.mxu0 0.0
    %1115 = vmatpush.msra.mxu0 0.0
    %1116 = vmatpush.msra.mxu0 0.0
    %1117 = vmatpush.msra.mxu0 0.0
    %1118 = vmatpush.msra.mxu0 0.0
    %1119 = vmatpush.msra.mxu0 0.0
    %v1120 = vand.u32 %v295, 4294901760
    %v1121 = vsub.f32 %v295, %v1120
    %1122 = vmatpush.msra.mxu0 %v1121
    %v1123 = vand.u32 %v102, 4294901760
    %v1124 = vsub.f32 %v102, %v1123
    %1125 = vmatmul.f32.gmra.mxu0 %v1124
    %v1126 = vpop.f32.mrf.mxu0
    %v1127 = vadd.f32 %v851, %v1126
    %v1128 = vand.u32 %v105, 4294901760
    %v1129 = vsub.f32 %v105, %v1128
    %1130 = vmatmul.f32.gmra.mxu0 %v1129
    %v1131 = vpop.f32.mrf.mxu0
    %v1132 = vadd.f32 %v855, %v1131
    %v1133 = vand.u32 %v108, 4294901760
    %v1134 = vsub.f32 %v108, %v1133
    %1135 = vmatmul.f32.gmra.mxu0 %v1134
    %v1136 = vpop.f32.mrf.mxu0
    %v1137 = vadd.f32 %v859, %v1136
    %v1138 = vand.u32 %v111, 4294901760
    %v1139 = vsub.f32 %v111, %v1138
    %1140 = vmatmul.f32.gmra.mxu0 %v1139
    %v1141 = vpop.f32.mrf.mxu0
    %v1142 = vadd.f32 %v863, %v1141
    %v1143 = vand.u32 %v114, 4294901760
    %v1144 = vsub.f32 %v114, %v1143
    %1145 = vmatmul.f32.gmra.mxu0 %v1144
    %v1146 = vpop.f32.mrf.mxu0
    %v1147 = vadd.f32 %v867, %v1146
    %v1148 = vand.u32 %v117, 4294901760
    %v1149 = vsub.f32 %v117, %v1148
    %1150 = vmatmul.f32.gmra.mxu0 %v1149
    %v1151 = vpop.f32.mrf.mxu0
    %v1152 = vadd.f32 %v871, %v1151
    %v1153 = vand.u32 %v120, 4294901760
    %v1154 = vsub.f32 %v120, %v1153
    %1155 = vmatmul.f32.gmra.mxu0 %v1154
    %v1156 = vpop.f32.mrf.mxu0
    %v1157 = vadd.f32 %v875, %v1156
    %v1158 = vand.u32 %v123, 4294901760
    %v1159 = vsub.f32 %v123, %v1158
    %1160 = vmatmul.f32.gmra.mxu0 %v1159
    %v1161 = vpop.f32.mrf.mxu0
    %v1162 = vadd.f32 %v879, %v1161
    %v1163 = vand.u32 %v126, 4294901760
    %v1164 = vsub.f32 %v126, %v1163
    %1165 = vmatmul.f32.gmra.mxu0 %v1164
    %v1166 = vpop.f32.mrf.mxu0
    %v1167 = vadd.f32 %v883, %v1166
    %v1168 = vand.u32 %v129, 4294901760
    %v1169 = vsub.f32 %v129, %v1168
    %1170 = vmatmul.f32.gmra.mxu0 %v1169
    %v1171 = vpop.f32.mrf.mxu0
    %v1172 = vadd.f32 %v887, %v1171
    %v1173 = vand.u32 %v132, 4294901760
    %v1174 = vsub.f32 %v132, %v1173
    %1175 = vmatmul.f32.gmra.mxu0 %v1174
    %v1176 = vpop.f32.mrf.mxu0
    %v1177 = vadd.f32 %v891, %v1176
    %v1178 = vand.u32 %v135, 4294901760
    %v1179 = vsub.f32 %v135, %v1178
    %1180 = vmatmul.f32.gmra.mxu0 %v1179
    %v1181 = vpop.f32.mrf.mxu0
    %v1182 = vadd.f32 %v895, %v1181
    %v1183 = vand.u32 %v138, 4294901760
    %v1184 = vsub.f32 %v138, %v1183
    %1185 = vmatmul.f32.gmra.mxu0 %v1184
    %v1186 = vpop.f32.mrf.mxu0
    %v1187 = vadd.f32 %v899, %v1186
    %v1188 = vand.u32 %v141, 4294901760
    %v1189 = vsub.f32 %v141, %v1188
    %1190 = vmatmul.f32.gmra.mxu0 %v1189
    %v1191 = vpop.f32.mrf.mxu0
    %v1192 = vadd.f32 %v903, %v1191
    %v1193 = vand.u32 %v144, 4294901760
    %v1194 = vsub.f32 %v144, %v1193
    %1195 = vmatmul.f32.gmra.mxu0 %v1194
    %v1196 = vpop.f32.mrf.mxu0
    %v1197 = vadd.f32 %v907, %v1196
    %v1198 = vand.u32 %v147, 4294901760
    %v1199 = vsub.f32 %v147, %v1198
    %1200 = vmatmul.f32.gmra.mxu0 %v1199
    %v1201 = vpop.f32.mrf.mxu0
    %v1202 = vadd.f32 %v911, %v1201
    %v1203 = vand.u32 %v150, 4294901760
    %v1204 = vsub.f32 %v150, %v1203
    %1205 = vmatmul.f32.gmra.mxu0 %v1204
    %v1206 = vpop.f32.mrf.mxu0
    %v1207 = vadd.f32 %v915, %v1206
    %v1208 = vand.u32 %v153, 4294901760
    %v1209 = vsub.f32 %v153, %v1208
    %1210 = vmatmul.f32.gmra.mxu0 %v1209
    %v1211 = vpop.f32.mrf.mxu0
    %v1212 = vadd.f32 %v919, %v1211
    %v1213 = vand.u32 %v156, 4294901760
    %v1214 = vsub.f32 %v156, %v1213
    %1215 = vmatmul.f32.gmra.mxu0 %v1214
    %v1216 = vpop.f32.mrf.mxu0
    %v1217 = vadd.f32 %v923, %v1216
    %v1218 = vand.u32 %v159, 4294901760
    %v1219 = vsub.f32 %v159, %v1218
    %1220 = vmatmul.f32.gmra.mxu0 %v1219
    %v1221 = vpop.f32.mrf.mxu0
    %v1222 = vadd.f32 %v927, %v1221
    %v1223 = vand.u32 %v162, 4294901760
    %v1224 = vsub.f32 %v162, %v1223
    %1225 = vmatmul.f32.gmra.mxu0 %v1224
    %v1226 = vpop.f32.mrf.mxu0
    %v1227 = vadd.f32 %v931, %v1226
    %v1228 = vand.u32 %v165, 4294901760
    %v1229 = vsub.f32 %v165, %v1228
    %1230 = vmatmul.f32.gmra.mxu0 %v1229
    %v1231 = vpop.f32.mrf.mxu0
    %v1232 = vadd.f32 %v935, %v1231
    %v1233 = vand.u32 %v168, 4294901760
    %v1234 = vsub.f32 %v168, %v1233
    %1235 = vmatmul.f32.gmra.mxu0 %v1234
    %v1236 = vpop.f32.mrf.mxu0
    %v1237 = vadd.f32 %v939, %v1236
    %v1238 = vand.u32 %v171, 4294901760
    %v1239 = vsub.f32 %v171, %v1238
    %1240 = vmatmul.f32.gmra.mxu0 %v1239
    %v1241 = vpop.f32.mrf.mxu0
    %v1242 = vadd.f32 %v943, %v1241
    %v1243 = vand.u32 %v174, 4294901760
    %v1244 = vsub.f32 %v174, %v1243
    %1245 = vmatmul.f32.gmra.mxu0 %v1244
    %v1246 = vpop.f32.mrf.mxu0
    %v1247 = vadd.f32 %v947, %v1246
    %v1248 = vand.u32 %v177, 4294901760
    %v1249 = vsub.f32 %v177, %v1248
    %1250 = vmatmul.f32.gmra.mxu0 %v1249
    %v1251 = vpop.f32.mrf.mxu0
    %v1252 = vadd.f32 %v951, %v1251
    %v1253 = vand.u32 %v180, 4294901760
    %v1254 = vsub.f32 %v180, %v1253
    %1255 = vmatmul.f32.gmra.mxu0 %v1254
    %v1256 = vpop.f32.mrf.mxu0
    %v1257 = vadd.f32 %v955, %v1256
    %v1258 = vand.u32 %v183, 4294901760
    %v1259 = vsub.f32 %v183, %v1258
    %1260 = vmatmul.f32.gmra.mxu0 %v1259
    %v1261 = vpop.f32.mrf.mxu0
    %v1262 = vadd.f32 %v959, %v1261
    %v1263 = vand.u32 %v186, 4294901760
    %v1264 = vsub.f32 %v186, %v1263
    %1265 = vmatmul.f32.gmra.mxu0 %v1264
    %v1266 = vpop.f32.mrf.mxu0
    %v1267 = vadd.f32 %v963, %v1266
    %v1268 = vand.u32 %v189, 4294901760
    %v1269 = vsub.f32 %v189, %v1268
    %1270 = vmatmul.f32.gmra.mxu0 %v1269
    %v1271 = vpop.f32.mrf.mxu0
    %v1272 = vadd.f32 %v967, %v1271
    %v1273 = vand.u32 %v192, 4294901760
    %v1274 = vsub.f32 %v192, %v1273
    %1275 = vmatmul.f32.gmra.mxu0 %v1274
    %v1276 = vpop.f32.mrf.mxu0
    %v1277 = vadd.f32 %v971, %v1276
    %v1278 = vand.u32 %v195, 4294901760
    %v1279 = vsub.f32 %v195, %v1278
    %1280 = vmatmul.f32.gmra.mxu0 %v1279
    %v1281 = vpop.f32.mrf.mxu0
    %v1282 = vadd.f32 %v975, %v1281
    %v1283 = vand.u32 %v198, 4294901760
    %v1284 = vsub.f32 %v198, %v1283
    %1285 = vmatmul.f32.gmra.mxu0 %v1284
    %v1286 = vpop.f32.mrf.mxu0
    %v1287 = vadd.f32 %v979, %v1286
    %v1288 = vand.u32 %v201, 4294901760
    %v1289 = vsub.f32 %v201, %v1288
    %1290 = vmatmul.f32.gmra.mxu0 %v1289
    %v1291 = vpop.f32.mrf.mxu0
    %v1292 = vadd.f32 %v983, %v1291
    %v1293 = vand.u32 %v204, 4294901760
    %v1294 = vsub.f32 %v204, %v1293
    %1295 = vmatmul.f32.gmra.mxu0 %v1294
    %v1296 = vpop.f32.mrf.mxu0
    %v1297 = vadd.f32 %v987, %v1296
    %v1298 = vand.u32 %v207, 4294901760
    %v1299 = vsub.f32 %v207, %v1298
    %1300 = vmatmul.f32.gmra.mxu0 %v1299
    %v1301 = vpop.f32.mrf.mxu0
    %v1302 = vadd.f32 %v991, %v1301
    %v1303 = vand.u32 %v210, 4294901760
    %v1304 = vsub.f32 %v210, %v1303
    %1305 = vmatmul.f32.gmra.mxu0 %v1304
    %v1306 = vpop.f32.mrf.mxu0
    %v1307 = vadd.f32 %v995, %v1306
    %v1308 = vand.u32 %v213, 4294901760
    %v1309 = vsub.f32 %v213, %v1308
    %1310 = vmatmul.f32.gmra.mxu0 %v1309
    %v1311 = vpop.f32.mrf.mxu0
    %v1312 = vadd.f32 %v999, %v1311
    %v1313 = vand.u32 %v216, 4294901760
    %v1314 = vsub.f32 %v216, %v1313
    %1315 = vmatmul.f32.gmra.mxu0 %v1314
    %v1316 = vpop.f32.mrf.mxu0
    %v1317 = vadd.f32 %v1003, %v1316
    %v1318 = vand.u32 %v219, 4294901760
    %v1319 = vsub.f32 %v219, %v1318
    %1320 = vmatmul.f32.gmra.mxu0 %v1319
    %v1321 = vpop.f32.mrf.mxu0
    %v1322 = vadd.f32 %v1007, %v1321
    %v1323 = vand.u32 %v222, 4294901760
    %v1324 = vsub.f32 %v222, %v1323
    %1325 = vmatmul.f32.gmra.mxu0 %v1324
    %v1326 = vpop.f32.mrf.mxu0
    %v1327 = vadd.f32 %v1011, %v1326
    %v1328 = vand.u32 %v225, 4294901760
    %v1329 = vsub.f32 %v225, %v1328
    %1330 = vmatmul.f32.gmra.mxu0 %v1329
    %v1331 = vpop.f32.mrf.mxu0
    %v1332 = vadd.f32 %v1015, %v1331
    %v1333 = vand.u32 %v228, 4294901760
    %v1334 = vsub.f32 %v228, %v1333
    %1335 = vmatmul.f32.gmra.mxu0 %v1334
    %v1336 = vpop.f32.mrf.mxu0
    %v1337 = vadd.f32 %v1019, %v1336
    %v1338 = vand.u32 %v231, 4294901760
    %v1339 = vsub.f32 %v231, %v1338
    %1340 = vmatmul.f32.gmra.mxu0 %v1339
    %v1341 = vpop.f32.mrf.mxu0
    %v1342 = vadd.f32 %v1023, %v1341
    %v1343 = vand.u32 %v234, 4294901760
    %v1344 = vsub.f32 %v234, %v1343
    %1345 = vmatmul.f32.gmra.mxu0 %v1344
    %v1346 = vpop.f32.mrf.mxu0
    %v1347 = vadd.f32 %v1027, %v1346
    %v1348 = vand.u32 %v237, 4294901760
    %v1349 = vsub.f32 %v237, %v1348
    %1350 = vmatmul.f32.gmra.mxu0 %v1349
    %v1351 = vpop.f32.mrf.mxu0
    %v1352 = vadd.f32 %v1031, %v1351
    %v1353 = vand.u32 %v240, 4294901760
    %v1354 = vsub.f32 %v240, %v1353
    %1355 = vmatmul.f32.gmra.mxu0 %v1354
    %v1356 = vpop.f32.mrf.mxu0
    %v1357 = vadd.f32 %v1035, %v1356
    %v1358 = vand.u32 %v243, 4294901760
    %v1359 = vsub.f32 %v243, %v1358
    %1360 = vmatmul.f32.gmra.mxu0 %v1359
    %v1361 = vpop.f32.mrf.mxu0
    %v1362 = vadd.f32 %v1039, %v1361
    %v1363 = vand.u32 %v246, 4294901760
    %v1364 = vsub.f32 %v246, %v1363
    %1365 = vmatmul.f32.gmra.mxu0 %v1364
    %v1366 = vpop.f32.mrf.mxu0
    %v1367 = vadd.f32 %v1043, %v1366
    %v1368 = vand.u32 %v249, 4294901760
    %v1369 = vsub.f32 %v249, %v1368
    %1370 = vmatmul.f32.gmra.mxu0 %v1369
    %v1371 = vpop.f32.mrf.mxu0
    %v1372 = vadd.f32 %v1047, %v1371
    %v1373 = vand.u32 %v252, 4294901760
    %v1374 = vsub.f32 %v252, %v1373
    %1375 = vmatmul.f32.gmra.mxu0 %v1374
    %v1376 = vpop.f32.mrf.mxu0
    %v1377 = vadd.f32 %v1051, %v1376
    %v1378 = vand.u32 %v255, 4294901760
    %v1379 = vsub.f32 %v255, %v1378
    %1380 = vmatmul.f32.gmra.mxu0 %v1379
    %v1381 = vpop.f32.mrf.mxu0
    %v1382 = vadd.f32 %v1055, %v1381
    %v1383 = vand.u32 %v258, 4294901760
    %v1384 = vsub.f32 %v258, %v1383
    %1385 = vmatmul.f32.gmra.mxu0 %v1384
    %v1386 = vpop.f32.mrf.mxu0
    %v1387 = vadd.f32 %v1059, %v1386
    %v1388 = vand.u32 %v261, 4294901760
    %v1389 = vsub.f32 %v261, %v1388
    %1390 = vmatmul.f32.gmra.mxu0 %v1389
    %v1391 = vpop.f32.mrf.mxu0
    %v1392 = vadd.f32 %v1063, %v1391
    %v1393 = vand.u32 %v264, 4294901760
    %v1394 = vsub.f32 %v264, %v1393
    %1395 = vmatmul.f32.gmra.mxu0 %v1394
    %v1396 = vpop.f32.mrf.mxu0
    %v1397 = vadd.f32 %v1067, %v1396
    %v1398 = vand.u32 %v267, 4294901760
    %v1399 = vsub.f32 %v267, %v1398
    %1400 = vmatmul.f32.gmra.mxu0 %v1399
    %v1401 = vpop.f32.mrf.mxu0
    %v1402 = vadd.f32 %v1071, %v1401
    %v1403 = vand.u32 %v270, 4294901760
    %v1404 = vsub.f32 %v270, %v1403
    %1405 = vmatmul.f32.gmra.mxu0 %v1404
    %v1406 = vpop.f32.mrf.mxu0
    %v1407 = vadd.f32 %v1075, %v1406
    %v1408 = vand.u32 %v273, 4294901760
    %v1409 = vsub.f32 %v273, %v1408
    %1410 = vmatmul.f32.gmra.mxu0 %v1409
    %v1411 = vpop.f32.mrf.mxu0
    %v1412 = vadd.f32 %v1079, %v1411
    %v1413 = vand.u32 %v276, 4294901760
    %v1414 = vsub.f32 %v276, %v1413
    %1415 = vmatmul.f32.gmra.mxu0 %v1414
    %v1416 = vpop.f32.mrf.mxu0
    %v1417 = vadd.f32 %v1083, %v1416
    %v1418 = vand.u32 %v279, 4294901760
    %v1419 = vsub.f32 %v279, %v1418
    %1420 = vmatmul.f32.gmra.mxu0 %v1419
    %v1421 = vpop.f32.mrf.mxu0
    %v1422 = vadd.f32 %v1087, %v1421
    %v1423 = vand.u32 %v282, 4294901760
    %v1424 = vsub.f32 %v282, %v1423
    %1425 = vmatmul.f32.gmra.mxu0 %v1424
    %v1426 = vpop.f32.mrf.mxu0
    %v1427 = vadd.f32 %v1091, %v1426
    %v1428 = vand.u32 %v285, 4294901760
    %v1429 = vsub.f32 %v285, %v1428
    %1430 = vmatmul.f32.gmra.mxu0 %v1429
    %v1431 = vpop.f32.mrf.mxu0
    %v1432 = vadd.f32 %v1095, %v1431
    %v1433 = vand.u32 %v288, 4294901760
    %v1434 = vsub.f32 %v288, %v1433
    %1435 = vmatmul.f32.gmra.mxu0 %v1434
    %v1436 = vpop.f32.mrf.mxu0
    %v1437 = vadd.f32 %v1099, %v1436
    %v1438 = vand.u32 %v291, 4294901760
    %v1439 = vsub.f32 %v291, %v1438
    %1440 = vmatmul.f32.gmra.mxu0 %v1439
    %v1441 = vpop.f32.mrf.mxu0
    %v1442 = vadd.f32 %v1103, %v1441
    %1443 = vdwg.mxu0
    %1444 = vmatpush.msra.mxu0 0.0
    %1445 = vmatpush.msra.mxu0 0.0
    %1446 = vmatpush.msra.mxu0 0.0
    %1447 = vmatpush.msra.mxu0 0.0
    %1448 = vmatpush.msra.mxu0 0.0
    %1449 = vmatpush.msra.mxu0 0.0
    %1450 = vmatpush.msra.mxu0 0.0
    %1451 = vmatpush.msra.mxu0 0.0
    %1452 = vmatpush.msra.mxu0 0.0
    %1453 = vmatpush.msra.mxu0 0.0
    %1454 = vmatpush.msra.mxu0 0.0
    %1455 = vmatpush.msra.mxu0 0.0
    %1456 = vmatpush.msra.mxu0 0.0
    %1457 = vmatpush.msra.mxu0 0.0
    %1458 = vmatpush.msra.mxu0 0.0
    %v1459 = vand.u32 %v295, 4294901760
    %1460 = vmatpush.msra.mxu0 %v1459
    %v1461 = vand.u32 %v102, 4294901760
    %v1462 = vsub.f32 %v102, %v1461
    %v1463 = vand.u32 %v1462, 4294901760
    %1464 = vmatmul.f32.gmra.mxu0 %v1463
    %v1465 = vpop.f32.mrf.mxu0
    %v1466 = vadd.f32 %v1127, %v1465
    %v1467 = vand.u32 %v105, 4294901760
    %v1468 = vsub.f32 %v105, %v1467
    %v1469 = vand.u32 %v1468, 4294901760
    %1470 = vmatmul.f32.gmra.mxu0 %v1469
    %v1471 = vpop.f32.mrf.mxu0
    %v1472 = vadd.f32 %v1132, %v1471
    %v1473 = vand.u32 %v108, 4294901760
    %v1474 = vsub.f32 %v108, %v1473
    %v1475 = vand.u32 %v1474, 4294901760
    %1476 = vmatmul.f32.gmra.mxu0 %v1475
    %v1477 = vpop.f32.mrf.mxu0
    %v1478 = vadd.f32 %v1137, %v1477
    %v1479 = vand.u32 %v111, 4294901760
    %v1480 = vsub.f32 %v111, %v1479
    %v1481 = vand.u32 %v1480, 4294901760
    %1482 = vmatmul.f32.gmra.mxu0 %v1481
    %v1483 = vpop.f32.mrf.mxu0
    %v1484 = vadd.f32 %v1142, %v1483
    %v1485 = vand.u32 %v114, 4294901760
    %v1486 = vsub.f32 %v114, %v1485
    %v1487 = vand.u32 %v1486, 4294901760
    %1488 = vmatmul.f32.gmra.mxu0 %v1487
    %v1489 = vpop.f32.mrf.mxu0
    %v1490 = vadd.f32 %v1147, %v1489
    %v1491 = vand.u32 %v117, 4294901760
    %v1492 = vsub.f32 %v117, %v1491
    %v1493 = vand.u32 %v1492, 4294901760
    %1494 = vmatmul.f32.gmra.mxu0 %v1493
    %v1495 = vpop.f32.mrf.mxu0
    %v1496 = vadd.f32 %v1152, %v1495
    %v1497 = vand.u32 %v120, 4294901760
    %v1498 = vsub.f32 %v120, %v1497
    %v1499 = vand.u32 %v1498, 4294901760
    %1500 = vmatmul.f32.gmra.mxu0 %v1499
    %v1501 = vpop.f32.mrf.mxu0
    %v1502 = vadd.f32 %v1157, %v1501
    %v1503 = vand.u32 %v123, 4294901760
    %v1504 = vsub.f32 %v123, %v1503
    %v1505 = vand.u32 %v1504, 4294901760
    %1506 = vmatmul.f32.gmra.mxu0 %v1505
    %v1507 = vpop.f32.mrf.mxu0
    %v1508 = vadd.f32 %v1162, %v1507
    %v1509 = vand.u32 %v126, 4294901760
    %v1510 = vsub.f32 %v126, %v1509
    %v1511 = vand.u32 %v1510, 4294901760
    %1512 = vmatmul.f32.gmra.mxu0 %v1511
    %v1513 = vpop.f32.mrf.mxu0
    %v1514 = vadd.f32 %v1167, %v1513
    %v1515 = vand.u32 %v129, 4294901760
    %v1516 = vsub.f32 %v129, %v1515
    %v1517 = vand.u32 %v1516, 4294901760
    %1518 = vmatmul.f32.gmra.mxu0 %v1517
    %v1519 = vpop.f32.mrf.mxu0
    %v1520 = vadd.f32 %v1172, %v1519
    %v1521 = vand.u32 %v132, 4294901760
    %v1522 = vsub.f32 %v132, %v1521
    %v1523 = vand.u32 %v1522, 4294901760
    %1524 = vmatmul.f32.gmra.mxu0 %v1523
    %v1525 = vpop.f32.mrf.mxu0
    %v1526 = vadd.f32 %v1177, %v1525
    %v1527 = vand.u32 %v135, 4294901760
    %v1528 = vsub.f32 %v135, %v1527
    %v1529 = vand.u32 %v1528, 4294901760
    %1530 = vmatmul.f32.gmra.mxu0 %v1529
    %v1531 = vpop.f32.mrf.mxu0
    %v1532 = vadd.f32 %v1182, %v1531
    %v1533 = vand.u32 %v138, 4294901760
    %v1534 = vsub.f32 %v138, %v1533
    %v1535 = vand.u32 %v1534, 4294901760
    %1536 = vmatmul.f32.gmra.mxu0 %v1535
    %v1537 = vpop.f32.mrf.mxu0
    %v1538 = vadd.f32 %v1187, %v1537
    %v1539 = vand.u32 %v141, 4294901760
    %v1540 = vsub.f32 %v141, %v1539
    %v1541 = vand.u32 %v1540, 4294901760
    %1542 = vmatmul.f32.gmra.mxu0 %v1541
    %v1543 = vpop.f32.mrf.mxu0
    %v1544 = vadd.f32 %v1192, %v1543
    %v1545 = vand.u32 %v144, 4294901760
    %v1546 = vsub.f32 %v144, %v1545
    %v1547 = vand.u32 %v1546, 4294901760
    %1548 = vmatmul.f32.gmra.mxu0 %v1547
    %v1549 = vpop.f32.mrf.mxu0
    %v1550 = vadd.f32 %v1197, %v1549
    %v1551 = vand.u32 %v147, 4294901760
    %v1552 = vsub.f32 %v147, %v1551
    %v1553 = vand.u32 %v1552, 4294901760
    %1554 = vmatmul.f32.gmra.mxu0 %v1553
    %v1555 = vpop.f32.mrf.mxu0
    %v1556 = vadd.f32 %v1202, %v1555
    %v1557 = vand.u32 %v150, 4294901760
    %v1558 = vsub.f32 %v150, %v1557
    %v1559 = vand.u32 %v1558, 4294901760
    %1560 = vmatmul.f32.gmra.mxu0 %v1559
    %v1561 = vpop.f32.mrf.mxu0
    %v1562 = vadd.f32 %v1207, %v1561
    %v1563 = vand.u32 %v153, 4294901760
    %v1564 = vsub.f32 %v153, %v1563
    %v1565 = vand.u32 %v1564, 4294901760
    %1566 = vmatmul.f32.gmra.mxu0 %v1565
    %v1567 = vpop.f32.mrf.mxu0
    %v1568 = vadd.f32 %v1212, %v1567
    %v1569 = vand.u32 %v156, 4294901760
    %v1570 = vsub.f32 %v156, %v1569
    %v1571 = vand.u32 %v1570, 4294901760
    %1572 = vmatmul.f32.gmra.mxu0 %v1571
    %v1573 = vpop.f32.mrf.mxu0
    %v1574 = vadd.f32 %v1217, %v1573
    %v1575 = vand.u32 %v159, 4294901760
    %v1576 = vsub.f32 %v159, %v1575
    %v1577 = vand.u32 %v1576, 4294901760
    %1578 = vmatmul.f32.gmra.mxu0 %v1577
    %v1579 = vpop.f32.mrf.mxu0
    %v1580 = vadd.f32 %v1222, %v1579
    %v1581 = vand.u32 %v162, 4294901760
    %v1582 = vsub.f32 %v162, %v1581
    %v1583 = vand.u32 %v1582, 4294901760
    %1584 = vmatmul.f32.gmra.mxu0 %v1583
    %v1585 = vpop.f32.mrf.mxu0
    %v1586 = vadd.f32 %v1227, %v1585
    %v1587 = vand.u32 %v165, 4294901760
    %v1588 = vsub.f32 %v165, %v1587
    %v1589 = vand.u32 %v1588, 4294901760
    %1590 = vmatmul.f32.gmra.mxu0 %v1589
    %v1591 = vpop.f32.mrf.mxu0
    %v1592 = vadd.f32 %v1232, %v1591
    %v1593 = vand.u32 %v168, 4294901760
    %v1594 = vsub.f32 %v168, %v1593
    %v1595 = vand.u32 %v1594, 4294901760
    %1596 = vmatmul.f32.gmra.mxu0 %v1595
    %v1597 = vpop.f32.mrf.mxu0
    %v1598 = vadd.f32 %v1237, %v1597
    %v1599 = vand.u32 %v171, 4294901760
    %v1600 = vsub.f32 %v171, %v1599
    %v1601 = vand.u32 %v1600, 4294901760
    %1602 = vmatmul.f32.gmra.mxu0 %v1601
    %v1603 = vpop.f32.mrf.mxu0
    %v1604 = vadd.f32 %v1242, %v1603
    %v1605 = vand.u32 %v174, 4294901760
    %v1606 = vsub.f32 %v174, %v1605
    %v1607 = vand.u32 %v1606, 4294901760
    %1608 = vmatmul.f32.gmra.mxu0 %v1607
    %v1609 = vpop.f32.mrf.mxu0
    %v1610 = vadd.f32 %v1247, %v1609
    %v1611 = vand.u32 %v177, 4294901760
    %v1612 = vsub.f32 %v177, %v1611
    %v1613 = vand.u32 %v1612, 4294901760
    %1614 = vmatmul.f32.gmra.mxu0 %v1613
    %v1615 = vpop.f32.mrf.mxu0
    %v1616 = vadd.f32 %v1252, %v1615
    %v1617 = vand.u32 %v180, 4294901760
    %v1618 = vsub.f32 %v180, %v1617
    %v1619 = vand.u32 %v1618, 4294901760
    %1620 = vmatmul.f32.gmra.mxu0 %v1619
    %v1621 = vpop.f32.mrf.mxu0
    %v1622 = vadd.f32 %v1257, %v1621
    %v1623 = vand.u32 %v183, 4294901760
    %v1624 = vsub.f32 %v183, %v1623
    %v1625 = vand.u32 %v1624, 4294901760
    %1626 = vmatmul.f32.gmra.mxu0 %v1625
    %v1627 = vpop.f32.mrf.mxu0
    %v1628 = vadd.f32 %v1262, %v1627
    %v1629 = vand.u32 %v186, 4294901760
    %v1630 = vsub.f32 %v186, %v1629
    %v1631 = vand.u32 %v1630, 4294901760
    %1632 = vmatmul.f32.gmra.mxu0 %v1631
    %v1633 = vpop.f32.mrf.mxu0
    %v1634 = vadd.f32 %v1267, %v1633
    %v1635 = vand.u32 %v189, 4294901760
    %v1636 = vsub.f32 %v189, %v1635
    %v1637 = vand.u32 %v1636, 4294901760
    %1638 = vmatmul.f32.gmra.mxu0 %v1637
    %v1639 = vpop.f32.mrf.mxu0
    %v1640 = vadd.f32 %v1272, %v1639
    %v1641 = vand.u32 %v192, 4294901760
    %v1642 = vsub.f32 %v192, %v1641
    %v1643 = vand.u32 %v1642, 4294901760
    %1644 = vmatmul.f32.gmra.mxu0 %v1643
    %v1645 = vpop.f32.mrf.mxu0
    %v1646 = vadd.f32 %v1277, %v1645
    %v1647 = vand.u32 %v195, 4294901760
    %v1648 = vsub.f32 %v195, %v1647
    %v1649 = vand.u32 %v1648, 4294901760
    %1650 = vmatmul.f32.gmra.mxu0 %v1649
    %v1651 = vpop.f32.mrf.mxu0
    %v1652 = vadd.f32 %v1282, %v1651
    %v1653 = vand.u32 %v198, 4294901760
    %v1654 = vsub.f32 %v198, %v1653
    %v1655 = vand.u32 %v1654, 4294901760
    %1656 = vmatmul.f32.gmra.mxu0 %v1655
    %v1657 = vpop.f32.mrf.mxu0
    %v1658 = vadd.f32 %v1287, %v1657
    %v1659 = vand.u32 %v201, 4294901760
    %v1660 = vsub.f32 %v201, %v1659
    %v1661 = vand.u32 %v1660, 4294901760
    %1662 = vmatmul.f32.gmra.mxu0 %v1661
    %v1663 = vpop.f32.mrf.mxu0
    %v1664 = vadd.f32 %v1292, %v1663
    %v1665 = vand.u32 %v204, 4294901760
    %v1666 = vsub.f32 %v204, %v1665
    %v1667 = vand.u32 %v1666, 4294901760
    %1668 = vmatmul.f32.gmra.mxu0 %v1667
    %v1669 = vpop.f32.mrf.mxu0
    %v1670 = vadd.f32 %v1297, %v1669
    %v1671 = vand.u32 %v207, 4294901760
    %v1672 = vsub.f32 %v207, %v1671
    %v1673 = vand.u32 %v1672, 4294901760
    %1674 = vmatmul.f32.gmra.mxu0 %v1673
    %v1675 = vpop.f32.mrf.mxu0
    %v1676 = vadd.f32 %v1302, %v1675
    %v1677 = vand.u32 %v210, 4294901760
    %v1678 = vsub.f32 %v210, %v1677
    %v1679 = vand.u32 %v1678, 4294901760
    %1680 = vmatmul.f32.gmra.mxu0 %v1679
    %v1681 = vpop.f32.mrf.mxu0
    %v1682 = vadd.f32 %v1307, %v1681
    %v1683 = vand.u32 %v213, 4294901760
    %v1684 = vsub.f32 %v213, %v1683
    %v1685 = vand.u32 %v1684, 4294901760
    %1686 = vmatmul.f32.gmra.mxu0 %v1685
    %v1687 = vpop.f32.mrf.mxu0
    %v1688 = vadd.f32 %v1312, %v1687
    %v1689 = vand.u32 %v216, 4294901760
    %v1690 = vsub.f32 %v216, %v1689
    %v1691 = vand.u32 %v1690, 4294901760
    %1692 = vmatmul.f32.gmra.mxu0 %v1691
    %v1693 = vpop.f32.mrf.mxu0
    %v1694 = vadd.f32 %v1317, %v1693
    %v1695 = vand.u32 %v219, 4294901760
    %v1696 = vsub.f32 %v219, %v1695
    %v1697 = vand.u32 %v1696, 4294901760
    %1698 = vmatmul.f32.gmra.mxu0 %v1697
    %v1699 = vpop.f32.mrf.mxu0
    %v1700 = vadd.f32 %v1322, %v1699
    %v1701 = vand.u32 %v222, 4294901760
    %v1702 = vsub.f32 %v222, %v1701
    %v1703 = vand.u32 %v1702, 4294901760
    %1704 = vmatmul.f32.gmra.mxu0 %v1703
    %v1705 = vpop.f32.mrf.mxu0
    %v1706 = vadd.f32 %v1327, %v1705
    %v1707 = vand.u32 %v225, 4294901760
    %v1708 = vsub.f32 %v225, %v1707
    %v1709 = vand.u32 %v1708, 4294901760
    %1710 = vmatmul.f32.gmra.mxu0 %v1709
    %v1711 = vpop.f32.mrf.mxu0
    %v1712 = vadd.f32 %v1332, %v1711
    %v1713 = vand.u32 %v228, 4294901760
    %v1714 = vsub.f32 %v228, %v1713
    %v1715 = vand.u32 %v1714, 4294901760
    %1716 = vmatmul.f32.gmra.mxu0 %v1715
    %v1717 = vpop.f32.mrf.mxu0
    %v1718 = vadd.f32 %v1337, %v1717
    %v1719 = vand.u32 %v231, 4294901760
    %v1720 = vsub.f32 %v231, %v1719
    %v1721 = vand.u32 %v1720, 4294901760
    %1722 = vmatmul.f32.gmra.mxu0 %v1721
    %v1723 = vpop.f32.mrf.mxu0
    %v1724 = vadd.f32 %v1342, %v1723
    %v1725 = vand.u32 %v234, 4294901760
    %v1726 = vsub.f32 %v234, %v1725
    %v1727 = vand.u32 %v1726, 4294901760
    %1728 = vmatmul.f32.gmra.mxu0 %v1727
    %v1729 = vpop.f32.mrf.mxu0
    %v1730 = vadd.f32 %v1347, %v1729
    %v1731 = vand.u32 %v237, 4294901760
    %v1732 = vsub.f32 %v237, %v1731
    %v1733 = vand.u32 %v1732, 4294901760
    %1734 = vmatmul.f32.gmra.mxu0 %v1733
    %v1735 = vpop.f32.mrf.mxu0
    %v1736 = vadd.f32 %v1352, %v1735
    %v1737 = vand.u32 %v240, 4294901760
    %v1738 = vsub.f32 %v240, %v1737
    %v1739 = vand.u32 %v1738, 4294901760
    %1740 = vmatmul.f32.gmra.mxu0 %v1739
    %v1741 = vpop.f32.mrf.mxu0
    %v1742 = vadd.f32 %v1357, %v1741
    %v1743 = vand.u32 %v243, 4294901760
    %v1744 = vsub.f32 %v243, %v1743
    %v1745 = vand.u32 %v1744, 4294901760
    %1746 = vmatmul.f32.gmra.mxu0 %v1745
    %v1747 = vpop.f32.mrf.mxu0
    %v1748 = vadd.f32 %v1362, %v1747
    %v1749 = vand.u32 %v246, 4294901760
    %v1750 = vsub.f32 %v246, %v1749
    %v1751 = vand.u32 %v1750, 4294901760
    %1752 = vmatmul.f32.gmra.mxu0 %v1751
    %v1753 = vpop.f32.mrf.mxu0
    %v1754 = vadd.f32 %v1367, %v1753
    %v1755 = vand.u32 %v249, 4294901760
    %v1756 = vsub.f32 %v249, %v1755
    %v1757 = vand.u32 %v1756, 4294901760
    %1758 = vmatmul.f32.gmra.mxu0 %v1757
    %v1759 = vpop.f32.mrf.mxu0
    %v1760 = vadd.f32 %v1372, %v1759
    %v1761 = vand.u32 %v252, 4294901760
    %v1762 = vsub.f32 %v252, %v1761
    %v1763 = vand.u32 %v1762, 4294901760
    %1764 = vmatmul.f32.gmra.mxu0 %v1763
    %v1765 = vpop.f32.mrf.mxu0
    %v1766 = vadd.f32 %v1377, %v1765
    %v1767 = vand.u32 %v255, 4294901760
    %v1768 = vsub.f32 %v255, %v1767
    %v1769 = vand.u32 %v1768, 4294901760
    %1770 = vmatmul.f32.gmra.mxu0 %v1769
    %v1771 = vpop.f32.mrf.mxu0
    %v1772 = vadd.f32 %v1382, %v1771
    %v1773 = vand.u32 %v258, 4294901760
    %v1774 = vsub.f32 %v258, %v1773
    %v1775 = vand.u32 %v1774, 4294901760
    %1776 = vmatmul.f32.gmra.mxu0 %v1775
    %v1777 = vpop.f32.mrf.mxu0
    %v1778 = vadd.f32 %v1387, %v1777
    %v1779 = vand.u32 %v261, 4294901760
    %v1780 = vsub.f32 %v261, %v1779
    %v1781 = vand.u32 %v1780, 4294901760
    %1782 = vmatmul.f32.gmra.mxu0 %v1781
    %v1783 = vpop.f32.mrf.mxu0
    %v1784 = vadd.f32 %v1392, %v1783
    %v1785 = vand.u32 %v264, 4294901760
    %v1786 = vsub.f32 %v264, %v1785
    %v1787 = vand.u32 %v1786, 4294901760
    %1788 = vmatmul.f32.gmra.mxu0 %v1787
    %v1789 = vpop.f32.mrf.mxu0
    %v1790 = vadd.f32 %v1397, %v1789
    %v1791 = vand.u32 %v267, 4294901760
    %v1792 = vsub.f32 %v267, %v1791
    %v1793 = vand.u32 %v1792, 4294901760
    %1794 = vmatmul.f32.gmra.mxu0 %v1793
    %v1795 = vpop.f32.mrf.mxu0
    %v1796 = vadd.f32 %v1402, %v1795
    %v1797 = vand.u32 %v270, 4294901760
    %v1798 = vsub.f32 %v270, %v1797
    %v1799 = vand.u32 %v1798, 4294901760
    %1800 = vmatmul.f32.gmra.mxu0 %v1799
    %v1801 = vpop.f32.mrf.mxu0
    %v1802 = vadd.f32 %v1407, %v1801
    %v1803 = vand.u32 %v273, 4294901760
    %v1804 = vsub.f32 %v273, %v1803
    %v1805 = vand.u32 %v1804, 4294901760
    %1806 = vmatmul.f32.gmra.mxu0 %v1805
    %v1807 = vpop.f32.mrf.mxu0
    %v1808 = vadd.f32 %v1412, %v1807
    %v1809 = vand.u32 %v276, 4294901760
    %v1810 = vsub.f32 %v276, %v1809
    %v1811 = vand.u32 %v1810, 4294901760
    %1812 = vmatmul.f32.gmra.mxu0 %v1811
    %v1813 = vpop.f32.mrf.mxu0
    %v1814 = vadd.f32 %v1417, %v1813
    %v1815 = vand.u32 %v279, 4294901760
    %v1816 = vsub.f32 %v279, %v1815
    %v1817 = vand.u32 %v1816, 4294901760
    %1818 = vmatmul.f32.gmra.mxu0 %v1817
    %v1819 = vpop.f32.mrf.mxu0
    %v1820 = vadd.f32 %v1422, %v1819
    %v1821 = vand.u32 %v282, 4294901760
    %v1822 = vsub.f32 %v282, %v1821
    %v1823 = vand.u32 %v1822, 4294901760
    %1824 = vmatmul.f32.gmra.mxu0 %v1823
    %v1825 = vpop.f32.mrf.mxu0
    %v1826 = vadd.f32 %v1427, %v1825
    %v1827 = vand.u32 %v285, 4294901760
    %v1828 = vsub.f32 %v285, %v1827
    %v1829 = vand.u32 %v1828, 4294901760
    %1830 = vmatmul.f32.gmra.mxu0 %v1829
    %v1831 = vpop.f32.mrf.mxu0
    %v1832 = vadd.f32 %v1432, %v1831
    %v1833 = vand.u32 %v288, 4294901760
    %v1834 = vsub.f32 %v288, %v1833
    %v1835 = vand.u32 %v1834, 4294901760
    %1836 = vmatmul.f32.gmra.mxu0 %v1835
    %v1837 = vpop.f32.mrf.mxu0
    %v1838 = vadd.f32 %v1437, %v1837
    %v1839 = vand.u32 %v291, 4294901760
    %v1840 = vsub.f32 %v291, %v1839
    %v1841 = vand.u32 %v1840, 4294901760
    %1842 = vmatmul.f32.gmra.mxu0 %v1841
    %v1843 = vpop.f32.mrf.mxu0
    %v1844 = vadd.f32 %v1442, %v1843
    %1845 = vdwg.mxu0
    %1846 = vmatpush.msra.mxu0 0.0
    %1847 = vmatpush.msra.mxu0 0.0
    %1848 = vmatpush.msra.mxu0 0.0
    %1849 = vmatpush.msra.mxu0 0.0
    %1850 = vmatpush.msra.mxu0 0.0
    %1851 = vmatpush.msra.mxu0 0.0
    %1852 = vmatpush.msra.mxu0 0.0
    %1853 = vmatpush.msra.mxu0 0.0
    %1854 = vmatpush.msra.mxu0 0.0
    %1855 = vmatpush.msra.mxu0 0.0
    %1856 = vmatpush.msra.mxu0 0.0
    %1857 = vmatpush.msra.mxu0 0.0
    %1858 = vmatpush.msra.mxu0 0.0
    %1859 = vmatpush.msra.mxu0 0.0
    %1860 = vmatpush.msra.mxu0 0.0
    %v1861 = vand.u32 %v295, 4294901760
    %v1862 = vsub.f32 %v295, %v1861
    %v1863 = vand.u32 %v1862, 4294901760
    %1864 = vmatpush.msra.mxu0 %v1863
    %v1865 = vand.u32 %v102, 4294901760
    %1866 = vmatmul.f32.gmra.mxu0 %v1865
    %v1867 = vpop.f32.mrf.mxu0
    %v1868 = vadd.f32 %v1466, %v1867
    %v1869 = vand.u32 %v105, 4294901760
    %1870 = vmatmul.f32.gmra.mxu0 %v1869
    %v1871 = vpop.f32.mrf.mxu0
    %v1872 = vadd.f32 %v1472, %v1871
    %v1873 = vand.u32 %v108, 4294901760
    %1874 = vmatmul.f32.gmra.mxu0 %v1873
    %v1875 = vpop.f32.mrf.mxu0
    %v1876 = vadd.f32 %v1478, %v1875
    %v1877 = vand.u32 %v111, 4294901760
    %1878 = vmatmul.f32.gmra.mxu0 %v1877
    %v1879 = vpop.f32.mrf.mxu0
    %v1880 = vadd.f32 %v1484, %v1879
    %v1881 = vand.u32 %v114, 4294901760
    %1882 = vmatmul.f32.gmra.mxu0 %v1881
    %v1883 = vpop.f32.mrf.mxu0
    %v1884 = vadd.f32 %v1490, %v1883
    %v1885 = vand.u32 %v117, 4294901760
    %1886 = vmatmul.f32.gmra.mxu0 %v1885
    %v1887 = vpop.f32.mrf.mxu0
    %v1888 = vadd.f32 %v1496, %v1887
    %v1889 = vand.u32 %v120, 4294901760
    %1890 = vmatmul.f32.gmra.mxu0 %v1889
    %v1891 = vpop.f32.mrf.mxu0
    %v1892 = vadd.f32 %v1502, %v1891
    %v1893 = vand.u32 %v123, 4294901760
    %1894 = vmatmul.f32.gmra.mxu0 %v1893
    %v1895 = vpop.f32.mrf.mxu0
    %v1896 = vadd.f32 %v1508, %v1895
    %v1897 = vand.u32 %v126, 4294901760
    %1898 = vmatmul.f32.gmra.mxu0 %v1897
    %v1899 = vpop.f32.mrf.mxu0
    %v1900 = vadd.f32 %v1514, %v1899
    %v1901 = vand.u32 %v129, 4294901760
    %1902 = vmatmul.f32.gmra.mxu0 %v1901
    %v1903 = vpop.f32.mrf.mxu0
    %v1904 = vadd.f32 %v1520, %v1903
    %v1905 = vand.u32 %v132, 4294901760
    %1906 = vmatmul.f32.gmra.mxu0 %v1905
    %v1907 = vpop.f32.mrf.mxu0
    %v1908 = vadd.f32 %v1526, %v1907
    %v1909 = vand.u32 %v135, 4294901760
    %1910 = vmatmul.f32.gmra.mxu0 %v1909
    %v1911 = vpop.f32.mrf.mxu0
    %v1912 = vadd.f32 %v1532, %v1911
    %v1913 = vand.u32 %v138, 4294901760
    %1914 = vmatmul.f32.gmra.mxu0 %v1913
    %v1915 = vpop.f32.mrf.mxu0
    %v1916 = vadd.f32 %v1538, %v1915
    %v1917 = vand.u32 %v141, 4294901760
    %1918 = vmatmul.f32.gmra.mxu0 %v1917
    %v1919 = vpop.f32.mrf.mxu0
    %v1920 = vadd.f32 %v1544, %v1919
    %v1921 = vand.u32 %v144, 4294901760
    %1922 = vmatmul.f32.gmra.mxu0 %v1921
    %v1923 = vpop.f32.mrf.mxu0
    %v1924 = vadd.f32 %v1550, %v1923
    %v1925 = vand.u32 %v147, 4294901760
    %1926 = vmatmul.f32.gmra.mxu0 %v1925
    %v1927 = vpop.f32.mrf.mxu0
    %v1928 = vadd.f32 %v1556, %v1927
    %v1929 = vand.u32 %v150, 4294901760
    %1930 = vmatmul.f32.gmra.mxu0 %v1929
    %v1931 = vpop.f32.mrf.mxu0
    %v1932 = vadd.f32 %v1562, %v1931
    %v1933 = vand.u32 %v153, 4294901760
    %1934 = vmatmul.f32.gmra.mxu0 %v1933
    %v1935 = vpop.f32.mrf.mxu0
    %v1936 = vadd.f32 %v1568, %v1935
    %v1937 = vand.u32 %v156, 4294901760
    %1938 = vmatmul.f32.gmra.mxu0 %v1937
    %v1939 = vpop.f32.mrf.mxu0
    %v1940 = vadd.f32 %v1574, %v1939
    %v1941 = vand.u32 %v159, 4294901760
    %1942 = vmatmul.f32.gmra.mxu0 %v1941
    %v1943 = vpop.f32.mrf.mxu0
    %v1944 = vadd.f32 %v1580, %v1943
    %v1945 = vand.u32 %v162, 4294901760
    %1946 = vmatmul.f32.gmra.mxu0 %v1945
    %v1947 = vpop.f32.mrf.mxu0
    %v1948 = vadd.f32 %v1586, %v1947
    %v1949 = vand.u32 %v165, 4294901760
    %1950 = vmatmul.f32.gmra.mxu0 %v1949
    %v1951 = vpop.f32.mrf.mxu0
    %v1952 = vadd.f32 %v1592, %v1951
    %v1953 = vand.u32 %v168, 4294901760
    %1954 = vmatmul.f32.gmra.mxu0 %v1953
    %v1955 = vpop.f32.mrf.mxu0
    %v1956 = vadd.f32 %v1598, %v1955
    %v1957 = vand.u32 %v171, 4294901760
    %1958 = vmatmul.f32.gmra.mxu0 %v1957
    %v1959 = vpop.f32.mrf.mxu0
    %v1960 = vadd.f32 %v1604, %v1959
    %v1961 = vand.u32 %v174, 4294901760
    %1962 = vmatmul.f32.gmra.mxu0 %v1961
    %v1963 = vpop.f32.mrf.mxu0
    %v1964 = vadd.f32 %v1610, %v1963
    %v1965 = vand.u32 %v177, 4294901760
    %1966 = vmatmul.f32.gmra.mxu0 %v1965
    %v1967 = vpop.f32.mrf.mxu0
    %v1968 = vadd.f32 %v1616, %v1967
    %v1969 = vand.u32 %v180, 4294901760
    %1970 = vmatmul.f32.gmra.mxu0 %v1969
    %v1971 = vpop.f32.mrf.mxu0
    %v1972 = vadd.f32 %v1622, %v1971
    %v1973 = vand.u32 %v183, 4294901760
    %1974 = vmatmul.f32.gmra.mxu0 %v1973
    %v1975 = vpop.f32.mrf.mxu0
    %v1976 = vadd.f32 %v1628, %v1975
    %v1977 = vand.u32 %v186, 4294901760
    %1978 = vmatmul.f32.gmra.mxu0 %v1977
    %v1979 = vpop.f32.mrf.mxu0
    %v1980 = vadd.f32 %v1634, %v1979
    %v1981 = vand.u32 %v189, 4294901760
    %1982 = vmatmul.f32.gmra.mxu0 %v1981
    %v1983 = vpop.f32.mrf.mxu0
    %v1984 = vadd.f32 %v1640, %v1983
    %v1985 = vand.u32 %v192, 4294901760
    %1986 = vmatmul.f32.gmra.mxu0 %v1985
    %v1987 = vpop.f32.mrf.mxu0
    %v1988 = vadd.f32 %v1646, %v1987
    %v1989 = vand.u32 %v195, 4294901760
    %1990 = vmatmul.f32.gmra.mxu0 %v1989
    %v1991 = vpop.f32.mrf.mxu0
    %v1992 = vadd.f32 %v1652, %v1991
    %v1993 = vand.u32 %v198, 4294901760
    %1994 = vmatmul.f32.gmra.mxu0 %v1993
    %v1995 = vpop.f32.mrf.mxu0
    %v1996 = vadd.f32 %v1658, %v1995
    %v1997 = vand.u32 %v201, 4294901760
    %1998 = vmatmul.f32.gmra.mxu0 %v1997
    %v1999 = vpop.f32.mrf.mxu0
    %v2000 = vadd.f32 %v1664, %v1999
    %v2001 = vand.u32 %v204, 4294901760
    %2002 = vmatmul.f32.gmra.mxu0 %v2001
    %v2003 = vpop.f32.mrf.mxu0
    %v2004 = vadd.f32 %v1670, %v2003
    %v2005 = vand.u32 %v207, 4294901760
    %2006 = vmatmul.f32.gmra.mxu0 %v2005
    %v2007 = vpop.f32.mrf.mxu0
    %v2008 = vadd.f32 %v1676, %v2007
    %v2009 = vand.u32 %v210, 4294901760
    %2010 = vmatmul.f32.gmra.mxu0 %v2009
    %v2011 = vpop.f32.mrf.mxu0
    %v2012 = vadd.f32 %v1682, %v2011
    %v2013 = vand.u32 %v213, 4294901760
    %2014 = vmatmul.f32.gmra.mxu0 %v2013
    %v2015 = vpop.f32.mrf.mxu0
    %v2016 = vadd.f32 %v1688, %v2015
    %v2017 = vand.u32 %v216, 4294901760
    %2018 = vmatmul.f32.gmra.mxu0 %v2017
    %v2019 = vpop.f32.mrf.mxu0
    %v2020 = vadd.f32 %v1694, %v2019
    %v2021 = vand.u32 %v219, 4294901760
    %2022 = vmatmul.f32.gmra.mxu0 %v2021
    %v2023 = vpop.f32.mrf.mxu0
    %v2024 = vadd.f32 %v1700, %v2023
    %v2025 = vand.u32 %v222, 4294901760
    %2026 = vmatmul.f32.gmra.mxu0 %v2025
    %v2027 = vpop.f32.mrf.mxu0
    %v2028 = vadd.f32 %v1706, %v2027
    %v2029 = vand.u32 %v225, 4294901760
    %2030 = vmatmul.f32.gmra.mxu0 %v2029
    %v2031 = vpop.f32.mrf.mxu0
    %v2032 = vadd.f32 %v1712, %v2031
    %v2033 = vand.u32 %v228, 4294901760
    %2034 = vmatmul.f32.gmra.mxu0 %v2033
    %v2035 = vpop.f32.mrf.mxu0
    %v2036 = vadd.f32 %v1718, %v2035
    %v2037 = vand.u32 %v231, 4294901760
    %2038 = vmatmul.f32.gmra.mxu0 %v2037
    %v2039 = vpop.f32.mrf.mxu0
    %v2040 = vadd.f32 %v1724, %v2039
    %v2041 = vand.u32 %v234, 4294901760
    %2042 = vmatmul.f32.gmra.mxu0 %v2041
    %v2043 = vpop.f32.mrf.mxu0
    %v2044 = vadd.f32 %v1730, %v2043
    %v2045 = vand.u32 %v237, 4294901760
    %2046 = vmatmul.f32.gmra.mxu0 %v2045
    %v2047 = vpop.f32.mrf.mxu0
    %v2048 = vadd.f32 %v1736, %v2047
    %v2049 = vand.u32 %v240, 4294901760
    %2050 = vmatmul.f32.gmra.mxu0 %v2049
    %v2051 = vpop.f32.mrf.mxu0
    %v2052 = vadd.f32 %v1742, %v2051
    %v2053 = vand.u32 %v243, 4294901760
    %2054 = vmatmul.f32.gmra.mxu0 %v2053
    %v2055 = vpop.f32.mrf.mxu0
    %v2056 = vadd.f32 %v1748, %v2055
    %v2057 = vand.u32 %v246, 4294901760
    %2058 = vmatmul.f32.gmra.mxu0 %v2057
    %v2059 = vpop.f32.mrf.mxu0
    %v2060 = vadd.f32 %v1754, %v2059
    %v2061 = vand.u32 %v249, 4294901760
    %2062 = vmatmul.f32.gmra.mxu0 %v2061
    %v2063 = vpop.f32.mrf.mxu0
    %v2064 = vadd.f32 %v1760, %v2063
    %v2065 = vand.u32 %v252, 4294901760
    %2066 = vmatmul.f32.gmra.mxu0 %v2065
    %v2067 = vpop.f32.mrf.mxu0
    %v2068 = vadd.f32 %v1766, %v2067
    %v2069 = vand.u32 %v255, 4294901760
    %2070 = vmatmul.f32.gmra.mxu0 %v2069
    %v2071 = vpop.f32.mrf.mxu0
    %v2072 = vadd.f32 %v1772, %v2071
    %v2073 = vand.u32 %v258, 4294901760
    %2074 = vmatmul.f32.gmra.mxu0 %v2073
    %v2075 = vpop.f32.mrf.mxu0
    %v2076 = vadd.f32 %v1778, %v2075
    %v2077 = vand.u32 %v261, 4294901760
    %2078 = vmatmul.f32.gmra.mxu0 %v2077
    %v2079 = vpop.f32.mrf.mxu0
    %v2080 = vadd.f32 %v1784, %v2079
    %v2081 = vand.u32 %v264, 4294901760
    %2082 = vmatmul.f32.gmra.mxu0 %v2081
    %v2083 = vpop.f32.mrf.mxu0
    %v2084 = vadd.f32 %v1790, %v2083
    %v2085 = vand.u32 %v267, 4294901760
    %2086 = vmatmul.f32.gmra.mxu0 %v2085
    %v2087 = vpop.f32.mrf.mxu0
    %v2088 = vadd.f32 %v1796, %v2087
    %v2089 = vand.u32 %v270, 4294901760
    %2090 = vmatmul.f32.gmra.mxu0 %v2089
    %v2091 = vpop.f32.mrf.mxu0
    %v2092 = vadd.f32 %v1802, %v2091
    %v2093 = vand.u32 %v273, 4294901760
    %2094 = vmatmul.f32.gmra.mxu0 %v2093
    %v2095 = vpop.f32.mrf.mxu0
    %v2096 = vadd.f32 %v1808, %v2095
    %v2097 = vand.u32 %v276, 4294901760
    %2098 = vmatmul.f32.gmra.mxu0 %v2097
    %v2099 = vpop.f32.mrf.mxu0
    %v2100 = vadd.f32 %v1814, %v2099
    %v2101 = vand.u32 %v279, 4294901760
    %2102 = vmatmul.f32.gmra.mxu0 %v2101
    %v2103 = vpop.f32.mrf.mxu0
    %v2104 = vadd.f32 %v1820, %v2103
    %v2105 = vand.u32 %v282, 4294901760
    %2106 = vmatmul.f32.gmra.mxu0 %v2105
    %v2107 = vpop.f32.mrf.mxu0
    %v2108 = vadd.f32 %v1826, %v2107
    %v2109 = vand.u32 %v285, 4294901760
    %2110 = vmatmul.f32.gmra.mxu0 %v2109
    %v2111 = vpop.f32.mrf.mxu0
    %v2112 = vadd.f32 %v1832, %v2111
    %v2113 = vand.u32 %v288, 4294901760
    %2114 = vmatmul.f32.gmra.mxu0 %v2113
    %v2115 = vpop.f32.mrf.mxu0
    %v2116 = vadd.f32 %v1838, %v2115
    %v2117 = vand.u32 %v291, 4294901760
    %2118 = vmatmul.f32.gmra.mxu0 %v2117
    %v2119 = vpop.f32.mrf.mxu0
    %v2120 = vadd.f32 %v1844, %v2119
    %2121 = vdwg.mxu0
    %2122 = vmatpush.msra.mxu0 0.0
    %2123 = vmatpush.msra.mxu0 0.0
    %2124 = vmatpush.msra.mxu0 0.0
    %2125 = vmatpush.msra.mxu0 0.0
    %2126 = vmatpush.msra.mxu0 0.0
    %2127 = vmatpush.msra.mxu0 0.0
    %2128 = vmatpush.msra.mxu0 0.0
    %2129 = vmatpush.msra.mxu0 0.0
    %2130 = vmatpush.msra.mxu0 0.0
    %2131 = vmatpush.msra.mxu0 0.0
    %2132 = vmatpush.msra.mxu0 0.0
    %2133 = vmatpush.msra.mxu0 0.0
    %2134 = vmatpush.msra.mxu0 0.0
    %2135 = vmatpush.msra.mxu0 0.0
    %2136 = vmatpush.msra.mxu0 0.0
    %v2137 = vand.u32 %v295, 4294901760
    %2138 = vmatpush.msra.mxu0 %v2137
    %v2139 = vand.u32 %v102, 4294901760
    %2140 = vmatmul.f32.gmra.mxu0 %v2139
    %v2141 = vpop.f32.mrf.mxu0
    %v2142 = vadd.f32 %v1868, %v2141
    %v2143 = vand.u32 %v105, 4294901760
    %2144 = vmatmul.f32.gmra.mxu0 %v2143
    %v2145 = vpop.f32.mrf.mxu0
    %v2146 = vadd.f32 %v1872, %v2145
    %v2147 = vand.u32 %v108, 4294901760
    %2148 = vmatmul.f32.gmra.mxu0 %v2147
    %v2149 = vpop.f32.mrf.mxu0
    %v2150 = vadd.f32 %v1876, %v2149
    %v2151 = vand.u32 %v111, 4294901760
    %2152 = vmatmul.f32.gmra.mxu0 %v2151
    %v2153 = vpop.f32.mrf.mxu0
    %v2154 = vadd.f32 %v1880, %v2153
    %v2155 = vand.u32 %v114, 4294901760
    %2156 = vmatmul.f32.gmra.mxu0 %v2155
    %v2157 = vpop.f32.mrf.mxu0
    %v2158 = vadd.f32 %v1884, %v2157
    %v2159 = vand.u32 %v117, 4294901760
    %2160 = vmatmul.f32.gmra.mxu0 %v2159
    %v2161 = vpop.f32.mrf.mxu0
    %v2162 = vadd.f32 %v1888, %v2161
    %v2163 = vand.u32 %v120, 4294901760
    %2164 = vmatmul.f32.gmra.mxu0 %v2163
    %v2165 = vpop.f32.mrf.mxu0
    %v2166 = vadd.f32 %v1892, %v2165
    %v2167 = vand.u32 %v123, 4294901760
    %2168 = vmatmul.f32.gmra.mxu0 %v2167
    %v2169 = vpop.f32.mrf.mxu0
    %v2170 = vadd.f32 %v1896, %v2169
    %v2171 = vand.u32 %v126, 4294901760
    %2172 = vmatmul.f32.gmra.mxu0 %v2171
    %v2173 = vpop.f32.mrf.mxu0
    %v2174 = vadd.f32 %v1900, %v2173
    %v2175 = vand.u32 %v129, 4294901760
    %2176 = vmatmul.f32.gmra.mxu0 %v2175
    %v2177 = vpop.f32.mrf.mxu0
    %v2178 = vadd.f32 %v1904, %v2177
    %v2179 = vand.u32 %v132, 4294901760
    %2180 = vmatmul.f32.gmra.mxu0 %v2179
    %v2181 = vpop.f32.mrf.mxu0
    %v2182 = vadd.f32 %v1908, %v2181
    %v2183 = vand.u32 %v135, 4294901760
    %2184 = vmatmul.f32.gmra.mxu0 %v2183
    %v2185 = vpop.f32.mrf.mxu0
    %v2186 = vadd.f32 %v1912, %v2185
    %v2187 = vand.u32 %v138, 4294901760
    %2188 = vmatmul.f32.gmra.mxu0 %v2187
    %v2189 = vpop.f32.mrf.mxu0
    %v2190 = vadd.f32 %v1916, %v2189
    %v2191 = vand.u32 %v141, 4294901760
    %2192 = vmatmul.f32.gmra.mxu0 %v2191
    %v2193 = vpop.f32.mrf.mxu0
    %v2194 = vadd.f32 %v1920, %v2193
    %v2195 = vand.u32 %v144, 4294901760
    %2196 = vmatmul.f32.gmra.mxu0 %v2195
    %v2197 = vpop.f32.mrf.mxu0
    %v2198 = vadd.f32 %v1924, %v2197
    %v2199 = vand.u32 %v147, 4294901760
    %2200 = vmatmul.f32.gmra.mxu0 %v2199
    %v2201 = vpop.f32.mrf.mxu0
    %v2202 = vadd.f32 %v1928, %v2201
    %v2203 = vand.u32 %v150, 4294901760
    %2204 = vmatmul.f32.gmra.mxu0 %v2203
    %v2205 = vpop.f32.mrf.mxu0
    %v2206 = vadd.f32 %v1932, %v2205
    %v2207 = vand.u32 %v153, 4294901760
    %2208 = vmatmul.f32.gmra.mxu0 %v2207
    %v2209 = vpop.f32.mrf.mxu0
    %v2210 = vadd.f32 %v1936, %v2209
    %v2211 = vand.u32 %v156, 4294901760
    %2212 = vmatmul.f32.gmra.mxu0 %v2211
    %v2213 = vpop.f32.mrf.mxu0
    %v2214 = vadd.f32 %v1940, %v2213
    %v2215 = vand.u32 %v159, 4294901760
    %2216 = vmatmul.f32.gmra.mxu0 %v2215
    %v2217 = vpop.f32.mrf.mxu0
    %v2218 = vadd.f32 %v1944, %v2217
    %v2219 = vand.u32 %v162, 4294901760
    %2220 = vmatmul.f32.gmra.mxu0 %v2219
    %v2221 = vpop.f32.mrf.mxu0
    %v2222 = vadd.f32 %v1948, %v2221
    %v2223 = vand.u32 %v165, 4294901760
    %2224 = vmatmul.f32.gmra.mxu0 %v2223
    %v2225 = vpop.f32.mrf.mxu0
    %v2226 = vadd.f32 %v1952, %v2225
    %v2227 = vand.u32 %v168, 4294901760
    %2228 = vmatmul.f32.gmra.mxu0 %v2227
    %v2229 = vpop.f32.mrf.mxu0
    %v2230 = vadd.f32 %v1956, %v2229
    %v2231 = vand.u32 %v171, 4294901760
    %2232 = vmatmul.f32.gmra.mxu0 %v2231
    %v2233 = vpop.f32.mrf.mxu0
    %v2234 = vadd.f32 %v1960, %v2233
    %v2235 = vand.u32 %v174, 4294901760
    %2236 = vmatmul.f32.gmra.mxu0 %v2235
    %v2237 = vpop.f32.mrf.mxu0
    %v2238 = vadd.f32 %v1964, %v2237
    %v2239 = vand.u32 %v177, 4294901760
    %2240 = vmatmul.f32.gmra.mxu0 %v2239
    %v2241 = vpop.f32.mrf.mxu0
    %v2242 = vadd.f32 %v1968, %v2241
    %v2243 = vand.u32 %v180, 4294901760
    %2244 = vmatmul.f32.gmra.mxu0 %v2243
    %v2245 = vpop.f32.mrf.mxu0
    %v2246 = vadd.f32 %v1972, %v2245
    %v2247 = vand.u32 %v183, 4294901760
    %2248 = vmatmul.f32.gmra.mxu0 %v2247
    %v2249 = vpop.f32.mrf.mxu0
    %v2250 = vadd.f32 %v1976, %v2249
    %v2251 = vand.u32 %v186, 4294901760
    %2252 = vmatmul.f32.gmra.mxu0 %v2251
    %v2253 = vpop.f32.mrf.mxu0
    %v2254 = vadd.f32 %v1980, %v2253
    %v2255 = vand.u32 %v189, 4294901760
    %2256 = vmatmul.f32.gmra.mxu0 %v2255
    %v2257 = vpop.f32.mrf.mxu0
    %v2258 = vadd.f32 %v1984, %v2257
    %v2259 = vand.u32 %v192, 4294901760
    %2260 = vmatmul.f32.gmra.mxu0 %v2259
    %v2261 = vpop.f32.mrf.mxu0
    %v2262 = vadd.f32 %v1988, %v2261
    %v2263 = vand.u32 %v195, 4294901760
    %2264 = vmatmul.f32.gmra.mxu0 %v2263
    %v2265 = vpop.f32.mrf.mxu0
    %v2266 = vadd.f32 %v1992, %v2265
    %v2267 = vand.u32 %v198, 4294901760
    %2268 = vmatmul.f32.gmra.mxu0 %v2267
    %v2269 = vpop.f32.mrf.mxu0
    %v2270 = vadd.f32 %v1996, %v2269
    %v2271 = vand.u32 %v201, 4294901760
    %2272 = vmatmul.f32.gmra.mxu0 %v2271
    %v2273 = vpop.f32.mrf.mxu0
    %v2274 = vadd.f32 %v2000, %v2273
    %v2275 = vand.u32 %v204, 4294901760
    %2276 = vmatmul.f32.gmra.mxu0 %v2275
    %v2277 = vpop.f32.mrf.mxu0
    %v2278 = vadd.f32 %v2004, %v2277
    %v2279 = vand.u32 %v207, 4294901760
    %2280 = vmatmul.f32.gmra.mxu0 %v2279
    %v2281 = vpop.f32.mrf.mxu0
    %v2282 = vadd.f32 %v2008, %v2281
    %v2283 = vand.u32 %v210, 4294901760
    %2284 = vmatmul.f32.gmra.mxu0 %v2283
    %v2285 = vpop.f32.mrf.mxu0
    %v2286 = vadd.f32 %v2012, %v2285
    %v2287 = vand.u32 %v213, 4294901760
    %2288 = vmatmul.f32.gmra.mxu0 %v2287
    %v2289 = vpop.f32.mrf.mxu0
    %v2290 = vadd.f32 %v2016, %v2289
    %v2291 = vand.u32 %v216, 4294901760
    %2292 = vmatmul.f32.gmra.mxu0 %v2291
    %v2293 = vpop.f32.mrf.mxu0
    %v2294 = vadd.f32 %v2020, %v2293
    %v2295 = vand.u32 %v219, 4294901760
    %2296 = vmatmul.f32.gmra.mxu0 %v2295
    %v2297 = vpop.f32.mrf.mxu0
    %v2298 = vadd.f32 %v2024, %v2297
    %v2299 = vand.u32 %v222, 4294901760
    %2300 = vmatmul.f32.gmra.mxu0 %v2299
    %v2301 = vpop.f32.mrf.mxu0
    %v2302 = vadd.f32 %v2028, %v2301
    %v2303 = vand.u32 %v225, 4294901760
    %2304 = vmatmul.f32.gmra.mxu0 %v2303
    %v2305 = vpop.f32.mrf.mxu0
    %v2306 = vadd.f32 %v2032, %v2305
    %v2307 = vand.u32 %v228, 4294901760
    %2308 = vmatmul.f32.gmra.mxu0 %v2307
    %v2309 = vpop.f32.mrf.mxu0
    %v2310 = vadd.f32 %v2036, %v2309
    %v2311 = vand.u32 %v231, 4294901760
    %2312 = vmatmul.f32.gmra.mxu0 %v2311
    %v2313 = vpop.f32.mrf.mxu0
    %v2314 = vadd.f32 %v2040, %v2313
    %v2315 = vand.u32 %v234, 4294901760
    %2316 = vmatmul.f32.gmra.mxu0 %v2315
    %v2317 = vpop.f32.mrf.mxu0
    %v2318 = vadd.f32 %v2044, %v2317
    %v2319 = vand.u32 %v237, 4294901760
    %2320 = vmatmul.f32.gmra.mxu0 %v2319
    %v2321 = vpop.f32.mrf.mxu0
    %v2322 = vadd.f32 %v2048, %v2321
    %v2323 = vand.u32 %v240, 4294901760
    %2324 = vmatmul.f32.gmra.mxu0 %v2323
    %v2325 = vpop.f32.mrf.mxu0
    %v2326 = vadd.f32 %v2052, %v2325
    %v2327 = vand.u32 %v243, 4294901760
    %2328 = vmatmul.f32.gmra.mxu0 %v2327
    %v2329 = vpop.f32.mrf.mxu0
    %v2330 = vadd.f32 %v2056, %v2329
    %v2331 = vand.u32 %v246, 4294901760
    %2332 = vmatmul.f32.gmra.mxu0 %v2331
    %v2333 = vpop.f32.mrf.mxu0
    %v2334 = vadd.f32 %v2060, %v2333
    %v2335 = vand.u32 %v249, 4294901760
    %2336 = vmatmul.f32.gmra.mxu0 %v2335
    %v2337 = vpop.f32.mrf.mxu0
    %v2338 = vadd.f32 %v2064, %v2337
    %v2339 = vand.u32 %v252, 4294901760
    %2340 = vmatmul.f32.gmra.mxu0 %v2339
    %v2341 = vpop.f32.mrf.mxu0
    %v2342 = vadd.f32 %v2068, %v2341
    %v2343 = vand.u32 %v255, 4294901760
    %2344 = vmatmul.f32.gmra.mxu0 %v2343
    %v2345 = vpop.f32.mrf.mxu0
    %v2346 = vadd.f32 %v2072, %v2345
    %v2347 = vand.u32 %v258, 4294901760
    %2348 = vmatmul.f32.gmra.mxu0 %v2347
    %v2349 = vpop.f32.mrf.mxu0
    %v2350 = vadd.f32 %v2076, %v2349
    %v2351 = vand.u32 %v261, 4294901760
    %2352 = vmatmul.f32.gmra.mxu0 %v2351
    %v2353 = vpop.f32.mrf.mxu0
    %v2354 = vadd.f32 %v2080, %v2353
    %v2355 = vand.u32 %v264, 4294901760
    %2356 = vmatmul.f32.gmra.mxu0 %v2355
    %v2357 = vpop.f32.mrf.mxu0
    %v2358 = vadd.f32 %v2084, %v2357
    %v2359 = vand.u32 %v267, 4294901760
    %2360 = vmatmul.f32.gmra.mxu0 %v2359
    %v2361 = vpop.f32.mrf.mxu0
    %v2362 = vadd.f32 %v2088, %v2361
    %v2363 = vand.u32 %v270, 4294901760
    %2364 = vmatmul.f32.gmra.mxu0 %v2363
    %v2365 = vpop.f32.mrf.mxu0
    %v2366 = vadd.f32 %v2092, %v2365
    %v2367 = vand.u32 %v273, 4294901760
    %2368 = vmatmul.f32.gmra.mxu0 %v2367
    %v2369 = vpop.f32.mrf.mxu0
    %v2370 = vadd.f32 %v2096, %v2369
    %v2371 = vand.u32 %v276, 4294901760
    %2372 = vmatmul.f32.gmra.mxu0 %v2371
    %v2373 = vpop.f32.mrf.mxu0
    %v2374 = vadd.f32 %v2100, %v2373
    %v2375 = vand.u32 %v279, 4294901760
    %2376 = vmatmul.f32.gmra.mxu0 %v2375
    %v2377 = vpop.f32.mrf.mxu0
    %v2378 = vadd.f32 %v2104, %v2377
    %v2379 = vand.u32 %v282, 4294901760
    %2380 = vmatmul.f32.gmra.mxu0 %v2379
    %v2381 = vpop.f32.mrf.mxu0
    %v2382 = vadd.f32 %v2108, %v2381
    %v2383 = vand.u32 %v285, 4294901760
    %2384 = vmatmul.f32.gmra.mxu0 %v2383
    %v2385 = vpop.f32.mrf.mxu0
    %v2386 = vadd.f32 %v2112, %v2385
    %v2387 = vand.u32 %v288, 4294901760
    %2388 = vmatmul.f32.gmra.mxu0 %v2387
    %v2389 = vpop.f32.mrf.mxu0
    %v2390 = vadd.f32 %v2116, %v2389
    %v2391 = vand.u32 %v291, 4294901760
    %2392 = vmatmul.f32.gmra.mxu0 %v2391
    %v2393 = vpop.f32.mrf.mxu0
    %v2394 = vadd.f32 %v2120, %v2393
    %2395 = vdwg.mxu0
    %vm2396 = vcmask 523264
    %2397 = vst.msk [vmem:[%s8] sm:$0xff] %vm2396, %v2142
    %2398 = vst.msk [vmem:[%s8 + $0x8] sm:$0xff] %vm2396, %v2146
    %2399 = vst.msk [vmem:[%s8 + $0x10] sm:$0xff] %vm2396, %v2150
    %2400 = vst.msk [vmem:[%s8 + $0x18] sm:$0xff] %vm2396, %v2154
    %2401 = vst.msk [vmem:[%s8 + $0x20] sm:$0xff] %vm2396, %v2158
    %2402 = vst.msk [vmem:[%s8 + $0x28] sm:$0xff] %vm2396, %v2162
    %2403 = vst.msk [vmem:[%s8 + $0x30] sm:$0xff] %vm2396, %v2166
    %2404 = vst.msk [vmem:[%s8 + $0x38] sm:$0xff] %vm2396, %v2170
    %2405 = vst.msk [vmem:[%s8 + $0x40] sm:$0xff] %vm2396, %v2174
    %2406 = vst.msk [vmem:[%s8 + $0x48] sm:$0xff] %vm2396, %v2178
    %2407 = vst.msk [vmem:[%s8 + $0x50] sm:$0xff] %vm2396, %v2182
    %2408 = vst.msk [vmem:[%s8 + $0x58] sm:$0xff] %vm2396, %v2186
    %2409 = vst.msk [vmem:[%s8 + $0x60] sm:$0xff] %vm2396, %v2190
    %2410 = vst.msk [vmem:[%s8 + $0x68] sm:$0xff] %vm2396, %v2194
    %2411 = vst.msk [vmem:[%s8 + $0x70] sm:$0xff] %vm2396, %v2198
    %2412 = vst.msk [vmem:[%s8 + $0x78] sm:$0xff] %vm2396, %v2202
    %2413 = vst.msk [vmem:[%s8 + $0x80] sm:$0xff] %vm2396, %v2206
    %2414 = vst.msk [vmem:[%s8 + $0x88] sm:$0xff] %vm2396, %v2210
    %2415 = vst.msk [vmem:[%s8 + $0x90] sm:$0xff] %vm2396, %v2214
    %2416 = vst.msk [vmem:[%s8 + $0x98] sm:$0xff] %vm2396, %v2218
    %2417 = vst.msk [vmem:[%s8 + $0xa0] sm:$0xff] %vm2396, %v2222
    %2418 = vst.msk [vmem:[%s8 + $0xa8] sm:$0xff] %vm2396, %v2226
    %2419 = vst.msk [vmem:[%s8 + $0xb0] sm:$0xff] %vm2396, %v2230
    %2420 = vst.msk [vmem:[%s8 + $0xb8] sm:$0xff] %vm2396, %v2234
    %2421 = vst.msk [vmem:[%s8 + $0xc0] sm:$0xff] %vm2396, %v2238
    %2422 = vst.msk [vmem:[%s8 + $0xc8] sm:$0xff] %vm2396, %v2242
    %2423 = vst.msk [vmem:[%s8 + $0xd0] sm:$0xff] %vm2396, %v2246
    %2424 = vst.msk [vmem:[%s8 + $0xd8] sm:$0xff] %vm2396, %v2250
    %2425 = vst.msk [vmem:[%s8 + $0xe0] sm:$0xff] %vm2396, %v2254
    %2426 = vst.msk [vmem:[%s8 + $0xe8] sm:$0xff] %vm2396, %v2258
    %2427 = vst.msk [vmem:[%s8 + $0xf0] sm:$0xff] %vm2396, %v2262
    %2428 = vst.msk [vmem:[%s8 + $0xf8] sm:$0xff] %vm2396, %v2266
    %2429 = vst.msk [vmem:[%s8 + $0x100] sm:$0xff] %vm2396, %v2270
    %2430 = vst.msk [vmem:[%s8 + $0x108] sm:$0xff] %vm2396, %v2274
    %2431 = vst.msk [vmem:[%s8 + $0x110] sm:$0xff] %vm2396, %v2278
    %2432 = vst.msk [vmem:[%s8 + $0x118] sm:$0xff] %vm2396, %v2282
    %2433 = vst.msk [vmem:[%s8 + $0x120] sm:$0xff] %vm2396, %v2286
    %2434 = vst.msk [vmem:[%s8 + $0x128] sm:$0xff] %vm2396, %v2290
    %2435 = vst.msk [vmem:[%s8 + $0x130] sm:$0xff] %vm2396, %v2294
    %2436 = vst.msk [vmem:[%s8 + $0x138] sm:$0xff] %vm2396, %v2298
    %2437 = vst.msk [vmem:[%s8 + $0x140] sm:$0xff] %vm2396, %v2302
    %2438 = vst.msk [vmem:[%s8 + $0x148] sm:$0xff] %vm2396, %v2306
    %2439 = vst.msk [vmem:[%s8 + $0x150] sm:$0xff] %vm2396, %v2310
    %2440 = vst.msk [vmem:[%s8 + $0x158] sm:$0xff] %vm2396, %v2314
    %2441 = vst.msk [vmem:[%s8 + $0x160] sm:$0xff] %vm2396, %v2318
    %2442 = vst.msk [vmem:[%s8 + $0x168] sm:$0xff] %vm2396, %v2322
    %2443 = vst.msk [vmem:[%s8 + $0x170] sm:$0xff] %vm2396, %v2326
    %2444 = vst.msk [vmem:[%s8 + $0x178] sm:$0xff] %vm2396, %v2330
    %2445 = vst.msk [vmem:[%s8 + $0x180] sm:$0xff] %vm2396, %v2334
    %2446 = vst.msk [vmem:[%s8 + $0x188] sm:$0xff] %vm2396, %v2338
    %2447 = vst.msk [vmem:[%s8 + $0x190] sm:$0xff] %vm2396, %v2342
    %2448 = vst.msk [vmem:[%s8 + $0x198] sm:$0xff] %vm2396, %v2346
    %2449 = vst.msk [vmem:[%s8 + $0x1a0] sm:$0xff] %vm2396, %v2350
    %2450 = vst.msk [vmem:[%s8 + $0x1a8] sm:$0xff] %vm2396, %v2354
    %2451 = vst.msk [vmem:[%s8 + $0x1b0] sm:$0xff] %vm2396, %v2358
    %2452 = vst.msk [vmem:[%s8 + $0x1b8] sm:$0xff] %vm2396, %v2362
    %2453 = vst.msk [vmem:[%s8 + $0x1c0] sm:$0xff] %vm2396, %v2366
    %2454 = vst.msk [vmem:[%s8 + $0x1c8] sm:$0xff] %vm2396, %v2370
    %2455 = vst.msk [vmem:[%s8 + $0x1d0] sm:$0xff] %vm2396, %v2374
    %2456 = vst.msk [vmem:[%s8 + $0x1d8] sm:$0xff] %vm2396, %v2378
    %2457 = vst.msk [vmem:[%s8 + $0x1e0] sm:$0xff] %vm2396, %v2382
    %2458 = vst.msk [vmem:[%s8 + $0x1e8] sm:$0xff] %vm2396, %v2386
    %2459 = vst.msk [vmem:[%s8 + $0x1f0] sm:$0xff] %vm2396, %v2390
    %2460 = vst.msk [vmem:[%s8 + $0x1f8] sm:$0xff] %vm2396, %v2394
    %v2461 = vld [vmem:[%s2] sm:$0xff]
    %v2462 = vld [vmem:[%s2 + $0x8] sm:$0xff]
    %v2463 = vld [vmem:[%s2 + $0x10] sm:$0xff]
    %v2464 = vld [vmem:[%s2 + $0x18] sm:$0xff]
    %v2465 = vld [vmem:[%s2 + $0x20] sm:$0xff]
    %v2466 = vld [vmem:[%s2 + $0x28] sm:$0xff]
    %v2467 = vld [vmem:[%s2 + $0x30] sm:$0xff]
    %v2468 = vld [vmem:[%s2 + $0x38] sm:$0xff]
    %v2469 = vld [vmem:[%s2 + $0x40] sm:$0xff]
    %v2470 = vld [vmem:[%s2 + $0x48] sm:$0xff]
    %v2471 = vld [vmem:[%s2 + $0x50] sm:$0xff]
    %v2472 = vld [vmem:[%s2 + $0x58] sm:$0xff]
    %v2473 = vld [vmem:[%s2 + $0x60] sm:$0xff]
    %v2474 = vld [vmem:[%s2 + $0x68] sm:$0xff]
    %v2475 = vld [vmem:[%s2 + $0x70] sm:$0xff]
    %v2476 = vld [vmem:[%s2 + $0x78] sm:$0xff]
    %v2477 = vld [vmem:[%s3] sm:$0xff]
    %vm2478 = vcmask 64512
    %v2480 = vsel %vm2478, %v2461, 0
    %v2483 = vsel %vm2478, %v2462, 0
    %v2486 = vsel %vm2478, %v2463, 0
    %v2489 = vsel %vm2478, %v2464, 0
    %v2492 = vsel %vm2478, %v2465, 0
    %v2495 = vsel %vm2478, %v2466, 0
    %v2498 = vsel %vm2478, %v2467, 0
    %v2501 = vsel %vm2478, %v2468, 0
    %v2504 = vsel %vm2478, %v2469, 0
    %v2507 = vsel %vm2478, %v2470, 0
    %v2510 = vsel %vm2478, %v2471, 0
    %v2513 = vsel %vm2478, %v2472, 0
    %v2516 = vsel %vm2478, %v2473, 0
    %v2519 = vsel %vm2478, %v2474, 0
    %v2522 = vsel %vm2478, %v2475, 0
    %v2525 = vsel %vm2478, %v2476, 0
    %2527 = vmatpush.msra.mxu0 0.0
    %2528 = vmatpush.msra.mxu0 0.0
    %2529 = vmatpush.msra.mxu0 0.0
    %2530 = vmatpush.msra.mxu0 0.0
    %2531 = vmatpush.msra.mxu0 0.0
    %2532 = vmatpush.msra.mxu0 0.0
    %2533 = vmatpush.msra.mxu0 0.0
    %2534 = vmatpush.msra.mxu0 0.0
    %2535 = vmatpush.msra.mxu0 0.0
    %2536 = vmatpush.msra.mxu0 0.0
    %2537 = vmatpush.msra.mxu0 0.0
    %2538 = vmatpush.msra.mxu0 0.0
    %2539 = vmatpush.msra.mxu0 0.0
    %2540 = vmatpush.msra.mxu0 0.0
    %2541 = vmatpush.msra.mxu0 0.0
    %v2542 = vand.u32 %v2477, 4294901760
    %2543 = vmatpush.msra.mxu0 %v2542
    %v2544 = vand.u32 %v2480, 4294901760
    %v2545 = vsub.f32 %v2480, %v2544
    %v2546 = vand.u32 %v2545, 4294901760
    %v2547 = vsub.f32 %v2545, %v2546
    %v2548 = vand.u32 %v2547, 4294901760
    %2549 = vmatmul.f32.gmra.mxu0 %v2548
    %v2550 = vpop.f32.mrf.mxu0
    %v2551 = vadd.f32 0.0, %v2550
    %v2552 = vand.u32 %v2483, 4294901760
    %v2553 = vsub.f32 %v2483, %v2552
    %v2554 = vand.u32 %v2553, 4294901760
    %v2555 = vsub.f32 %v2553, %v2554
    %v2556 = vand.u32 %v2555, 4294901760
    %2557 = vmatmul.f32.gmra.mxu0 %v2556
    %v2558 = vpop.f32.mrf.mxu0
    %v2559 = vadd.f32 0.0, %v2558
    %v2560 = vand.u32 %v2486, 4294901760
    %v2561 = vsub.f32 %v2486, %v2560
    %v2562 = vand.u32 %v2561, 4294901760
    %v2563 = vsub.f32 %v2561, %v2562
    %v2564 = vand.u32 %v2563, 4294901760
    %2565 = vmatmul.f32.gmra.mxu0 %v2564
    %v2566 = vpop.f32.mrf.mxu0
    %v2567 = vadd.f32 0.0, %v2566
    %v2568 = vand.u32 %v2489, 4294901760
    %v2569 = vsub.f32 %v2489, %v2568
    %v2570 = vand.u32 %v2569, 4294901760
    %v2571 = vsub.f32 %v2569, %v2570
    %v2572 = vand.u32 %v2571, 4294901760
    %2573 = vmatmul.f32.gmra.mxu0 %v2572
    %v2574 = vpop.f32.mrf.mxu0
    %v2575 = vadd.f32 0.0, %v2574
    %v2576 = vand.u32 %v2492, 4294901760
    %v2577 = vsub.f32 %v2492, %v2576
    %v2578 = vand.u32 %v2577, 4294901760
    %v2579 = vsub.f32 %v2577, %v2578
    %v2580 = vand.u32 %v2579, 4294901760
    %2581 = vmatmul.f32.gmra.mxu0 %v2580
    %v2582 = vpop.f32.mrf.mxu0
    %v2583 = vadd.f32 0.0, %v2582
    %v2584 = vand.u32 %v2495, 4294901760
    %v2585 = vsub.f32 %v2495, %v2584
    %v2586 = vand.u32 %v2585, 4294901760
    %v2587 = vsub.f32 %v2585, %v2586
    %v2588 = vand.u32 %v2587, 4294901760
    %2589 = vmatmul.f32.gmra.mxu0 %v2588
    %v2590 = vpop.f32.mrf.mxu0
    %v2591 = vadd.f32 0.0, %v2590
    %v2592 = vand.u32 %v2498, 4294901760
    %v2593 = vsub.f32 %v2498, %v2592
    %v2594 = vand.u32 %v2593, 4294901760
    %v2595 = vsub.f32 %v2593, %v2594
    %v2596 = vand.u32 %v2595, 4294901760
    %2597 = vmatmul.f32.gmra.mxu0 %v2596
    %v2598 = vpop.f32.mrf.mxu0
    %v2599 = vadd.f32 0.0, %v2598
    %v2600 = vand.u32 %v2501, 4294901760
    %v2601 = vsub.f32 %v2501, %v2600
    %v2602 = vand.u32 %v2601, 4294901760
    %v2603 = vsub.f32 %v2601, %v2602
    %v2604 = vand.u32 %v2603, 4294901760
    %2605 = vmatmul.f32.gmra.mxu0 %v2604
    %v2606 = vpop.f32.mrf.mxu0
    %v2607 = vadd.f32 0.0, %v2606
    %v2608 = vand.u32 %v2504, 4294901760
    %v2609 = vsub.f32 %v2504, %v2608
    %v2610 = vand.u32 %v2609, 4294901760
    %v2611 = vsub.f32 %v2609, %v2610
    %v2612 = vand.u32 %v2611, 4294901760
    %2613 = vmatmul.f32.gmra.mxu0 %v2612
    %v2614 = vpop.f32.mrf.mxu0
    %v2615 = vadd.f32 0.0, %v2614
    %v2616 = vand.u32 %v2507, 4294901760
    %v2617 = vsub.f32 %v2507, %v2616
    %v2618 = vand.u32 %v2617, 4294901760
    %v2619 = vsub.f32 %v2617, %v2618
    %v2620 = vand.u32 %v2619, 4294901760
    %2621 = vmatmul.f32.gmra.mxu0 %v2620
    %v2622 = vpop.f32.mrf.mxu0
    %v2623 = vadd.f32 0.0, %v2622
    %v2624 = vand.u32 %v2510, 4294901760
    %v2625 = vsub.f32 %v2510, %v2624
    %v2626 = vand.u32 %v2625, 4294901760
    %v2627 = vsub.f32 %v2625, %v2626
    %v2628 = vand.u32 %v2627, 4294901760
    %2629 = vmatmul.f32.gmra.mxu0 %v2628
    %v2630 = vpop.f32.mrf.mxu0
    %v2631 = vadd.f32 0.0, %v2630
    %v2632 = vand.u32 %v2513, 4294901760
    %v2633 = vsub.f32 %v2513, %v2632
    %v2634 = vand.u32 %v2633, 4294901760
    %v2635 = vsub.f32 %v2633, %v2634
    %v2636 = vand.u32 %v2635, 4294901760
    %2637 = vmatmul.f32.gmra.mxu0 %v2636
    %v2638 = vpop.f32.mrf.mxu0
    %v2639 = vadd.f32 0.0, %v2638
    %v2640 = vand.u32 %v2516, 4294901760
    %v2641 = vsub.f32 %v2516, %v2640
    %v2642 = vand.u32 %v2641, 4294901760
    %v2643 = vsub.f32 %v2641, %v2642
    %v2644 = vand.u32 %v2643, 4294901760
    %2645 = vmatmul.f32.gmra.mxu0 %v2644
    %v2646 = vpop.f32.mrf.mxu0
    %v2647 = vadd.f32 0.0, %v2646
    %v2648 = vand.u32 %v2519, 4294901760
    %v2649 = vsub.f32 %v2519, %v2648
    %v2650 = vand.u32 %v2649, 4294901760
    %v2651 = vsub.f32 %v2649, %v2650
    %v2652 = vand.u32 %v2651, 4294901760
    %2653 = vmatmul.f32.gmra.mxu0 %v2652
    %v2654 = vpop.f32.mrf.mxu0
    %v2655 = vadd.f32 0.0, %v2654
    %v2656 = vand.u32 %v2522, 4294901760
    %v2657 = vsub.f32 %v2522, %v2656
    %v2658 = vand.u32 %v2657, 4294901760
    %v2659 = vsub.f32 %v2657, %v2658
    %v2660 = vand.u32 %v2659, 4294901760
    %2661 = vmatmul.f32.gmra.mxu0 %v2660
    %v2662 = vpop.f32.mrf.mxu0
    %v2663 = vadd.f32 0.0, %v2662
    %v2664 = vand.u32 %v2525, 4294901760
    %v2665 = vsub.f32 %v2525, %v2664
    %v2666 = vand.u32 %v2665, 4294901760
    %v2667 = vsub.f32 %v2665, %v2666
    %v2668 = vand.u32 %v2667, 4294901760
    %2669 = vmatmul.f32.gmra.mxu0 %v2668
    %v2670 = vpop.f32.mrf.mxu0
    %v2671 = vadd.f32 0.0, %v2670
    %2672 = vdwg.mxu0
    %2673 = vmatpush.msra.mxu0 0.0
    %2674 = vmatpush.msra.mxu0 0.0
    %2675 = vmatpush.msra.mxu0 0.0
    %2676 = vmatpush.msra.mxu0 0.0
    %2677 = vmatpush.msra.mxu0 0.0
    %2678 = vmatpush.msra.mxu0 0.0
    %2679 = vmatpush.msra.mxu0 0.0
    %2680 = vmatpush.msra.mxu0 0.0
    %2681 = vmatpush.msra.mxu0 0.0
    %2682 = vmatpush.msra.mxu0 0.0
    %2683 = vmatpush.msra.mxu0 0.0
    %2684 = vmatpush.msra.mxu0 0.0
    %2685 = vmatpush.msra.mxu0 0.0
    %2686 = vmatpush.msra.mxu0 0.0
    %2687 = vmatpush.msra.mxu0 0.0
    %v2688 = vand.u32 %v2477, 4294901760
    %v2689 = vsub.f32 %v2477, %v2688
    %v2690 = vand.u32 %v2689, 4294901760
    %v2691 = vsub.f32 %v2689, %v2690
    %v2692 = vand.u32 %v2691, 4294901760
    %2693 = vmatpush.msra.mxu0 %v2692
    %v2694 = vand.u32 %v2480, 4294901760
    %2695 = vmatmul.f32.gmra.mxu0 %v2694
    %v2696 = vpop.f32.mrf.mxu0
    %v2697 = vadd.f32 %v2551, %v2696
    %v2698 = vand.u32 %v2483, 4294901760
    %2699 = vmatmul.f32.gmra.mxu0 %v2698
    %v2700 = vpop.f32.mrf.mxu0
    %v2701 = vadd.f32 %v2559, %v2700
    %v2702 = vand.u32 %v2486, 4294901760
    %2703 = vmatmul.f32.gmra.mxu0 %v2702
    %v2704 = vpop.f32.mrf.mxu0
    %v2705 = vadd.f32 %v2567, %v2704
    %v2706 = vand.u32 %v2489, 4294901760
    %2707 = vmatmul.f32.gmra.mxu0 %v2706
    %v2708 = vpop.f32.mrf.mxu0
    %v2709 = vadd.f32 %v2575, %v2708
    %v2710 = vand.u32 %v2492, 4294901760
    %2711 = vmatmul.f32.gmra.mxu0 %v2710
    %v2712 = vpop.f32.mrf.mxu0
    %v2713 = vadd.f32 %v2583, %v2712
    %v2714 = vand.u32 %v2495, 4294901760
    %2715 = vmatmul.f32.gmra.mxu0 %v2714
    %v2716 = vpop.f32.mrf.mxu0
    %v2717 = vadd.f32 %v2591, %v2716
    %v2718 = vand.u32 %v2498, 4294901760
    %2719 = vmatmul.f32.gmra.mxu0 %v2718
    %v2720 = vpop.f32.mrf.mxu0
    %v2721 = vadd.f32 %v2599, %v2720
    %v2722 = vand.u32 %v2501, 4294901760
    %2723 = vmatmul.f32.gmra.mxu0 %v2722
    %v2724 = vpop.f32.mrf.mxu0
    %v2725 = vadd.f32 %v2607, %v2724
    %v2726 = vand.u32 %v2504, 4294901760
    %2727 = vmatmul.f32.gmra.mxu0 %v2726
    %v2728 = vpop.f32.mrf.mxu0
    %v2729 = vadd.f32 %v2615, %v2728
    %v2730 = vand.u32 %v2507, 4294901760
    %2731 = vmatmul.f32.gmra.mxu0 %v2730
    %v2732 = vpop.f32.mrf.mxu0
    %v2733 = vadd.f32 %v2623, %v2732
    %v2734 = vand.u32 %v2510, 4294901760
    %2735 = vmatmul.f32.gmra.mxu0 %v2734
    %v2736 = vpop.f32.mrf.mxu0
    %v2737 = vadd.f32 %v2631, %v2736
    %v2738 = vand.u32 %v2513, 4294901760
    %2739 = vmatmul.f32.gmra.mxu0 %v2738
    %v2740 = vpop.f32.mrf.mxu0
    %v2741 = vadd.f32 %v2639, %v2740
    %v2742 = vand.u32 %v2516, 4294901760
    %2743 = vmatmul.f32.gmra.mxu0 %v2742
    %v2744 = vpop.f32.mrf.mxu0
    %v2745 = vadd.f32 %v2647, %v2744
    %v2746 = vand.u32 %v2519, 4294901760
    %2747 = vmatmul.f32.gmra.mxu0 %v2746
    %v2748 = vpop.f32.mrf.mxu0
    %v2749 = vadd.f32 %v2655, %v2748
    %v2750 = vand.u32 %v2522, 4294901760
    %2751 = vmatmul.f32.gmra.mxu0 %v2750
    %v2752 = vpop.f32.mrf.mxu0
    %v2753 = vadd.f32 %v2663, %v2752
    %v2754 = vand.u32 %v2525, 4294901760
    %2755 = vmatmul.f32.gmra.mxu0 %v2754
    %v2756 = vpop.f32.mrf.mxu0
    %v2757 = vadd.f32 %v2671, %v2756
    %2758 = vdwg.mxu0
    %2759 = vmatpush.msra.mxu0 0.0
    %2760 = vmatpush.msra.mxu0 0.0
    %2761 = vmatpush.msra.mxu0 0.0
    %2762 = vmatpush.msra.mxu0 0.0
    %2763 = vmatpush.msra.mxu0 0.0
    %2764 = vmatpush.msra.mxu0 0.0
    %2765 = vmatpush.msra.mxu0 0.0
    %2766 = vmatpush.msra.mxu0 0.0
    %2767 = vmatpush.msra.mxu0 0.0
    %2768 = vmatpush.msra.mxu0 0.0
    %2769 = vmatpush.msra.mxu0 0.0
    %2770 = vmatpush.msra.mxu0 0.0
    %2771 = vmatpush.msra.mxu0 0.0
    %2772 = vmatpush.msra.mxu0 0.0
    %2773 = vmatpush.msra.mxu0 0.0
    %v2774 = vand.u32 %v2477, 4294901760
    %v2775 = vsub.f32 %v2477, %v2774
    %2776 = vmatpush.msra.mxu0 %v2775
    %v2777 = vand.u32 %v2480, 4294901760
    %v2778 = vsub.f32 %v2480, %v2777
    %2779 = vmatmul.f32.gmra.mxu0 %v2778
    %v2780 = vpop.f32.mrf.mxu0
    %v2781 = vadd.f32 %v2697, %v2780
    %v2782 = vand.u32 %v2483, 4294901760
    %v2783 = vsub.f32 %v2483, %v2782
    %2784 = vmatmul.f32.gmra.mxu0 %v2783
    %v2785 = vpop.f32.mrf.mxu0
    %v2786 = vadd.f32 %v2701, %v2785
    %v2787 = vand.u32 %v2486, 4294901760
    %v2788 = vsub.f32 %v2486, %v2787
    %2789 = vmatmul.f32.gmra.mxu0 %v2788
    %v2790 = vpop.f32.mrf.mxu0
    %v2791 = vadd.f32 %v2705, %v2790
    %v2792 = vand.u32 %v2489, 4294901760
    %v2793 = vsub.f32 %v2489, %v2792
    %2794 = vmatmul.f32.gmra.mxu0 %v2793
    %v2795 = vpop.f32.mrf.mxu0
    %v2796 = vadd.f32 %v2709, %v2795
    %v2797 = vand.u32 %v2492, 4294901760
    %v2798 = vsub.f32 %v2492, %v2797
    %2799 = vmatmul.f32.gmra.mxu0 %v2798
    %v2800 = vpop.f32.mrf.mxu0
    %v2801 = vadd.f32 %v2713, %v2800
    %v2802 = vand.u32 %v2495, 4294901760
    %v2803 = vsub.f32 %v2495, %v2802
    %2804 = vmatmul.f32.gmra.mxu0 %v2803
    %v2805 = vpop.f32.mrf.mxu0
    %v2806 = vadd.f32 %v2717, %v2805
    %v2807 = vand.u32 %v2498, 4294901760
    %v2808 = vsub.f32 %v2498, %v2807
    %2809 = vmatmul.f32.gmra.mxu0 %v2808
    %v2810 = vpop.f32.mrf.mxu0
    %v2811 = vadd.f32 %v2721, %v2810
    %v2812 = vand.u32 %v2501, 4294901760
    %v2813 = vsub.f32 %v2501, %v2812
    %2814 = vmatmul.f32.gmra.mxu0 %v2813
    %v2815 = vpop.f32.mrf.mxu0
    %v2816 = vadd.f32 %v2725, %v2815
    %v2817 = vand.u32 %v2504, 4294901760
    %v2818 = vsub.f32 %v2504, %v2817
    %2819 = vmatmul.f32.gmra.mxu0 %v2818
    %v2820 = vpop.f32.mrf.mxu0
    %v2821 = vadd.f32 %v2729, %v2820
    %v2822 = vand.u32 %v2507, 4294901760
    %v2823 = vsub.f32 %v2507, %v2822
    %2824 = vmatmul.f32.gmra.mxu0 %v2823
    %v2825 = vpop.f32.mrf.mxu0
    %v2826 = vadd.f32 %v2733, %v2825
    %v2827 = vand.u32 %v2510, 4294901760
    %v2828 = vsub.f32 %v2510, %v2827
    %2829 = vmatmul.f32.gmra.mxu0 %v2828
    %v2830 = vpop.f32.mrf.mxu0
    %v2831 = vadd.f32 %v2737, %v2830
    %v2832 = vand.u32 %v2513, 4294901760
    %v2833 = vsub.f32 %v2513, %v2832
    %2834 = vmatmul.f32.gmra.mxu0 %v2833
    %v2835 = vpop.f32.mrf.mxu0
    %v2836 = vadd.f32 %v2741, %v2835
    %v2837 = vand.u32 %v2516, 4294901760
    %v2838 = vsub.f32 %v2516, %v2837
    %2839 = vmatmul.f32.gmra.mxu0 %v2838
    %v2840 = vpop.f32.mrf.mxu0
    %v2841 = vadd.f32 %v2745, %v2840
    %v2842 = vand.u32 %v2519, 4294901760
    %v2843 = vsub.f32 %v2519, %v2842
    %2844 = vmatmul.f32.gmra.mxu0 %v2843
    %v2845 = vpop.f32.mrf.mxu0
    %v2846 = vadd.f32 %v2749, %v2845
    %v2847 = vand.u32 %v2522, 4294901760
    %v2848 = vsub.f32 %v2522, %v2847
    %2849 = vmatmul.f32.gmra.mxu0 %v2848
    %v2850 = vpop.f32.mrf.mxu0
    %v2851 = vadd.f32 %v2753, %v2850
    %v2852 = vand.u32 %v2525, 4294901760
    %v2853 = vsub.f32 %v2525, %v2852
    %2854 = vmatmul.f32.gmra.mxu0 %v2853
    %v2855 = vpop.f32.mrf.mxu0
    %v2856 = vadd.f32 %v2757, %v2855
    %2857 = vdwg.mxu0
    %2858 = vmatpush.msra.mxu0 0.0
    %2859 = vmatpush.msra.mxu0 0.0
    %2860 = vmatpush.msra.mxu0 0.0
    %2861 = vmatpush.msra.mxu0 0.0
    %2862 = vmatpush.msra.mxu0 0.0
    %2863 = vmatpush.msra.mxu0 0.0
    %2864 = vmatpush.msra.mxu0 0.0
    %2865 = vmatpush.msra.mxu0 0.0
    %2866 = vmatpush.msra.mxu0 0.0
    %2867 = vmatpush.msra.mxu0 0.0
    %2868 = vmatpush.msra.mxu0 0.0
    %2869 = vmatpush.msra.mxu0 0.0
    %2870 = vmatpush.msra.mxu0 0.0
    %2871 = vmatpush.msra.mxu0 0.0
    %2872 = vmatpush.msra.mxu0 0.0
    %v2873 = vand.u32 %v2477, 4294901760
    %2874 = vmatpush.msra.mxu0 %v2873
    %v2875 = vand.u32 %v2480, 4294901760
    %v2876 = vsub.f32 %v2480, %v2875
    %v2877 = vand.u32 %v2876, 4294901760
    %2878 = vmatmul.f32.gmra.mxu0 %v2877
    %v2879 = vpop.f32.mrf.mxu0
    %v2880 = vadd.f32 %v2781, %v2879
    %v2881 = vand.u32 %v2483, 4294901760
    %v2882 = vsub.f32 %v2483, %v2881
    %v2883 = vand.u32 %v2882, 4294901760
    %2884 = vmatmul.f32.gmra.mxu0 %v2883
    %v2885 = vpop.f32.mrf.mxu0
    %v2886 = vadd.f32 %v2786, %v2885
    %v2887 = vand.u32 %v2486, 4294901760
    %v2888 = vsub.f32 %v2486, %v2887
    %v2889 = vand.u32 %v2888, 4294901760
    %2890 = vmatmul.f32.gmra.mxu0 %v2889
    %v2891 = vpop.f32.mrf.mxu0
    %v2892 = vadd.f32 %v2791, %v2891
    %v2893 = vand.u32 %v2489, 4294901760
    %v2894 = vsub.f32 %v2489, %v2893
    %v2895 = vand.u32 %v2894, 4294901760
    %2896 = vmatmul.f32.gmra.mxu0 %v2895
    %v2897 = vpop.f32.mrf.mxu0
    %v2898 = vadd.f32 %v2796, %v2897
    %v2899 = vand.u32 %v2492, 4294901760
    %v2900 = vsub.f32 %v2492, %v2899
    %v2901 = vand.u32 %v2900, 4294901760
    %2902 = vmatmul.f32.gmra.mxu0 %v2901
    %v2903 = vpop.f32.mrf.mxu0
    %v2904 = vadd.f32 %v2801, %v2903
    %v2905 = vand.u32 %v2495, 4294901760
    %v2906 = vsub.f32 %v2495, %v2905
    %v2907 = vand.u32 %v2906, 4294901760
    %2908 = vmatmul.f32.gmra.mxu0 %v2907
    %v2909 = vpop.f32.mrf.mxu0
    %v2910 = vadd.f32 %v2806, %v2909
    %v2911 = vand.u32 %v2498, 4294901760
    %v2912 = vsub.f32 %v2498, %v2911
    %v2913 = vand.u32 %v2912, 4294901760
    %2914 = vmatmul.f32.gmra.mxu0 %v2913
    %v2915 = vpop.f32.mrf.mxu0
    %v2916 = vadd.f32 %v2811, %v2915
    %v2917 = vand.u32 %v2501, 4294901760
    %v2918 = vsub.f32 %v2501, %v2917
    %v2919 = vand.u32 %v2918, 4294901760
    %2920 = vmatmul.f32.gmra.mxu0 %v2919
    %v2921 = vpop.f32.mrf.mxu0
    %v2922 = vadd.f32 %v2816, %v2921
    %v2923 = vand.u32 %v2504, 4294901760
    %v2924 = vsub.f32 %v2504, %v2923
    %v2925 = vand.u32 %v2924, 4294901760
    %2926 = vmatmul.f32.gmra.mxu0 %v2925
    %v2927 = vpop.f32.mrf.mxu0
    %v2928 = vadd.f32 %v2821, %v2927
    %v2929 = vand.u32 %v2507, 4294901760
    %v2930 = vsub.f32 %v2507, %v2929
    %v2931 = vand.u32 %v2930, 4294901760
    %2932 = vmatmul.f32.gmra.mxu0 %v2931
    %v2933 = vpop.f32.mrf.mxu0
    %v2934 = vadd.f32 %v2826, %v2933
    %v2935 = vand.u32 %v2510, 4294901760
    %v2936 = vsub.f32 %v2510, %v2935
    %v2937 = vand.u32 %v2936, 4294901760
    %2938 = vmatmul.f32.gmra.mxu0 %v2937
    %v2939 = vpop.f32.mrf.mxu0
    %v2940 = vadd.f32 %v2831, %v2939
    %v2941 = vand.u32 %v2513, 4294901760
    %v2942 = vsub.f32 %v2513, %v2941
    %v2943 = vand.u32 %v2942, 4294901760
    %2944 = vmatmul.f32.gmra.mxu0 %v2943
    %v2945 = vpop.f32.mrf.mxu0
    %v2946 = vadd.f32 %v2836, %v2945
    %v2947 = vand.u32 %v2516, 4294901760
    %v2948 = vsub.f32 %v2516, %v2947
    %v2949 = vand.u32 %v2948, 4294901760
    %2950 = vmatmul.f32.gmra.mxu0 %v2949
    %v2951 = vpop.f32.mrf.mxu0
    %v2952 = vadd.f32 %v2841, %v2951
    %v2953 = vand.u32 %v2519, 4294901760
    %v2954 = vsub.f32 %v2519, %v2953
    %v2955 = vand.u32 %v2954, 4294901760
    %2956 = vmatmul.f32.gmra.mxu0 %v2955
    %v2957 = vpop.f32.mrf.mxu0
    %v2958 = vadd.f32 %v2846, %v2957
    %v2959 = vand.u32 %v2522, 4294901760
    %v2960 = vsub.f32 %v2522, %v2959
    %v2961 = vand.u32 %v2960, 4294901760
    %2962 = vmatmul.f32.gmra.mxu0 %v2961
    %v2963 = vpop.f32.mrf.mxu0
    %v2964 = vadd.f32 %v2851, %v2963
    %v2965 = vand.u32 %v2525, 4294901760
    %v2966 = vsub.f32 %v2525, %v2965
    %v2967 = vand.u32 %v2966, 4294901760
    %2968 = vmatmul.f32.gmra.mxu0 %v2967
    %v2969 = vpop.f32.mrf.mxu0
    %v2970 = vadd.f32 %v2856, %v2969
    %2971 = vdwg.mxu0
    %2972 = vmatpush.msra.mxu0 0.0
    %2973 = vmatpush.msra.mxu0 0.0
    %2974 = vmatpush.msra.mxu0 0.0
    %2975 = vmatpush.msra.mxu0 0.0
    %2976 = vmatpush.msra.mxu0 0.0
    %2977 = vmatpush.msra.mxu0 0.0
    %2978 = vmatpush.msra.mxu0 0.0
    %2979 = vmatpush.msra.mxu0 0.0
    %2980 = vmatpush.msra.mxu0 0.0
    %2981 = vmatpush.msra.mxu0 0.0
    %2982 = vmatpush.msra.mxu0 0.0
    %2983 = vmatpush.msra.mxu0 0.0
    %2984 = vmatpush.msra.mxu0 0.0
    %2985 = vmatpush.msra.mxu0 0.0
    %2986 = vmatpush.msra.mxu0 0.0
    %v2987 = vand.u32 %v2477, 4294901760
    %v2988 = vsub.f32 %v2477, %v2987
    %v2989 = vand.u32 %v2988, 4294901760
    %2990 = vmatpush.msra.mxu0 %v2989
    %v2991 = vand.u32 %v2480, 4294901760
    %2992 = vmatmul.f32.gmra.mxu0 %v2991
    %v2993 = vpop.f32.mrf.mxu0
    %v2994 = vadd.f32 %v2880, %v2993
    %v2995 = vand.u32 %v2483, 4294901760
    %2996 = vmatmul.f32.gmra.mxu0 %v2995
    %v2997 = vpop.f32.mrf.mxu0
    %v2998 = vadd.f32 %v2886, %v2997
    %v2999 = vand.u32 %v2486, 4294901760
    %3000 = vmatmul.f32.gmra.mxu0 %v2999
    %v3001 = vpop.f32.mrf.mxu0
    %v3002 = vadd.f32 %v2892, %v3001
    %v3003 = vand.u32 %v2489, 4294901760
    %3004 = vmatmul.f32.gmra.mxu0 %v3003
    %v3005 = vpop.f32.mrf.mxu0
    %v3006 = vadd.f32 %v2898, %v3005
    %v3007 = vand.u32 %v2492, 4294901760
    %3008 = vmatmul.f32.gmra.mxu0 %v3007
    %v3009 = vpop.f32.mrf.mxu0
    %v3010 = vadd.f32 %v2904, %v3009
    %v3011 = vand.u32 %v2495, 4294901760
    %3012 = vmatmul.f32.gmra.mxu0 %v3011
    %v3013 = vpop.f32.mrf.mxu0
    %v3014 = vadd.f32 %v2910, %v3013
    %v3015 = vand.u32 %v2498, 4294901760
    %3016 = vmatmul.f32.gmra.mxu0 %v3015
    %v3017 = vpop.f32.mrf.mxu0
    %v3018 = vadd.f32 %v2916, %v3017
    %v3019 = vand.u32 %v2501, 4294901760
    %3020 = vmatmul.f32.gmra.mxu0 %v3019
    %v3021 = vpop.f32.mrf.mxu0
    %v3022 = vadd.f32 %v2922, %v3021
    %v3023 = vand.u32 %v2504, 4294901760
    %3024 = vmatmul.f32.gmra.mxu0 %v3023
    %v3025 = vpop.f32.mrf.mxu0
    %v3026 = vadd.f32 %v2928, %v3025
    %v3027 = vand.u32 %v2507, 4294901760
    %3028 = vmatmul.f32.gmra.mxu0 %v3027
    %v3029 = vpop.f32.mrf.mxu0
    %v3030 = vadd.f32 %v2934, %v3029
    %v3031 = vand.u32 %v2510, 4294901760
    %3032 = vmatmul.f32.gmra.mxu0 %v3031
    %v3033 = vpop.f32.mrf.mxu0
    %v3034 = vadd.f32 %v2940, %v3033
    %v3035 = vand.u32 %v2513, 4294901760
    %3036 = vmatmul.f32.gmra.mxu0 %v3035
    %v3037 = vpop.f32.mrf.mxu0
    %v3038 = vadd.f32 %v2946, %v3037
    %v3039 = vand.u32 %v2516, 4294901760
    %3040 = vmatmul.f32.gmra.mxu0 %v3039
    %v3041 = vpop.f32.mrf.mxu0
    %v3042 = vadd.f32 %v2952, %v3041
    %v3043 = vand.u32 %v2519, 4294901760
    %3044 = vmatmul.f32.gmra.mxu0 %v3043
    %v3045 = vpop.f32.mrf.mxu0
    %v3046 = vadd.f32 %v2958, %v3045
    %v3047 = vand.u32 %v2522, 4294901760
    %3048 = vmatmul.f32.gmra.mxu0 %v3047
    %v3049 = vpop.f32.mrf.mxu0
    %v3050 = vadd.f32 %v2964, %v3049
    %v3051 = vand.u32 %v2525, 4294901760
    %3052 = vmatmul.f32.gmra.mxu0 %v3051
    %v3053 = vpop.f32.mrf.mxu0
    %v3054 = vadd.f32 %v2970, %v3053
    %3055 = vdwg.mxu0
    %3056 = vmatpush.msra.mxu0 0.0
    %3057 = vmatpush.msra.mxu0 0.0
    %3058 = vmatpush.msra.mxu0 0.0
    %3059 = vmatpush.msra.mxu0 0.0
    %3060 = vmatpush.msra.mxu0 0.0
    %3061 = vmatpush.msra.mxu0 0.0
    %3062 = vmatpush.msra.mxu0 0.0
    %3063 = vmatpush.msra.mxu0 0.0
    %3064 = vmatpush.msra.mxu0 0.0
    %3065 = vmatpush.msra.mxu0 0.0
    %3066 = vmatpush.msra.mxu0 0.0
    %3067 = vmatpush.msra.mxu0 0.0
    %3068 = vmatpush.msra.mxu0 0.0
    %3069 = vmatpush.msra.mxu0 0.0
    %3070 = vmatpush.msra.mxu0 0.0
    %v3071 = vand.u32 %v2477, 4294901760
    %3072 = vmatpush.msra.mxu0 %v3071
    %v3073 = vand.u32 %v2480, 4294901760
    %3074 = vmatmul.f32.gmra.mxu0 %v3073
    %v3075 = vpop.f32.mrf.mxu0
    %v3076 = vadd.f32 %v2994, %v3075
    %v3077 = vand.u32 %v2483, 4294901760
    %3078 = vmatmul.f32.gmra.mxu0 %v3077
    %v3079 = vpop.f32.mrf.mxu0
    %v3080 = vadd.f32 %v2998, %v3079
    %v3081 = vand.u32 %v2486, 4294901760
    %3082 = vmatmul.f32.gmra.mxu0 %v3081
    %v3083 = vpop.f32.mrf.mxu0
    %v3084 = vadd.f32 %v3002, %v3083
    %v3085 = vand.u32 %v2489, 4294901760
    %3086 = vmatmul.f32.gmra.mxu0 %v3085
    %v3087 = vpop.f32.mrf.mxu0
    %v3088 = vadd.f32 %v3006, %v3087
    %v3089 = vand.u32 %v2492, 4294901760
    %3090 = vmatmul.f32.gmra.mxu0 %v3089
    %v3091 = vpop.f32.mrf.mxu0
    %v3092 = vadd.f32 %v3010, %v3091
    %v3093 = vand.u32 %v2495, 4294901760
    %3094 = vmatmul.f32.gmra.mxu0 %v3093
    %v3095 = vpop.f32.mrf.mxu0
    %v3096 = vadd.f32 %v3014, %v3095
    %v3097 = vand.u32 %v2498, 4294901760
    %3098 = vmatmul.f32.gmra.mxu0 %v3097
    %v3099 = vpop.f32.mrf.mxu0
    %v3100 = vadd.f32 %v3018, %v3099
    %v3101 = vand.u32 %v2501, 4294901760
    %3102 = vmatmul.f32.gmra.mxu0 %v3101
    %v3103 = vpop.f32.mrf.mxu0
    %v3104 = vadd.f32 %v3022, %v3103
    %v3105 = vand.u32 %v2504, 4294901760
    %3106 = vmatmul.f32.gmra.mxu0 %v3105
    %v3107 = vpop.f32.mrf.mxu0
    %v3108 = vadd.f32 %v3026, %v3107
    %v3109 = vand.u32 %v2507, 4294901760
    %3110 = vmatmul.f32.gmra.mxu0 %v3109
    %v3111 = vpop.f32.mrf.mxu0
    %v3112 = vadd.f32 %v3030, %v3111
    %v3113 = vand.u32 %v2510, 4294901760
    %3114 = vmatmul.f32.gmra.mxu0 %v3113
    %v3115 = vpop.f32.mrf.mxu0
    %v3116 = vadd.f32 %v3034, %v3115
    %v3117 = vand.u32 %v2513, 4294901760
    %3118 = vmatmul.f32.gmra.mxu0 %v3117
    %v3119 = vpop.f32.mrf.mxu0
    %v3120 = vadd.f32 %v3038, %v3119
    %v3121 = vand.u32 %v2516, 4294901760
    %3122 = vmatmul.f32.gmra.mxu0 %v3121
    %v3123 = vpop.f32.mrf.mxu0
    %v3124 = vadd.f32 %v3042, %v3123
    %v3125 = vand.u32 %v2519, 4294901760
    %3126 = vmatmul.f32.gmra.mxu0 %v3125
    %v3127 = vpop.f32.mrf.mxu0
    %v3128 = vadd.f32 %v3046, %v3127
    %v3129 = vand.u32 %v2522, 4294901760
    %3130 = vmatmul.f32.gmra.mxu0 %v3129
    %v3131 = vpop.f32.mrf.mxu0
    %v3132 = vadd.f32 %v3050, %v3131
    %v3133 = vand.u32 %v2525, 4294901760
    %3134 = vmatmul.f32.gmra.mxu0 %v3133
    %v3135 = vpop.f32.mrf.mxu0
    %v3136 = vadd.f32 %v3054, %v3135
    %3137 = vdwg.mxu0
    %3138 = vst.msk [vmem:[%s9] sm:$0xff] %vm2396, %v3076
    %3139 = vst.msk [vmem:[%s9 + $0x8] sm:$0xff] %vm2396, %v3080
    %3140 = vst.msk [vmem:[%s9 + $0x10] sm:$0xff] %vm2396, %v3084
    %3141 = vst.msk [vmem:[%s9 + $0x18] sm:$0xff] %vm2396, %v3088
    %3142 = vst.msk [vmem:[%s9 + $0x20] sm:$0xff] %vm2396, %v3092
    %3143 = vst.msk [vmem:[%s9 + $0x28] sm:$0xff] %vm2396, %v3096
    %3144 = vst.msk [vmem:[%s9 + $0x30] sm:$0xff] %vm2396, %v3100
    %3145 = vst.msk [vmem:[%s9 + $0x38] sm:$0xff] %vm2396, %v3104
    %3146 = vst.msk [vmem:[%s9 + $0x40] sm:$0xff] %vm2396, %v3108
    %3147 = vst.msk [vmem:[%s9 + $0x48] sm:$0xff] %vm2396, %v3112
    %3148 = vst.msk [vmem:[%s9 + $0x50] sm:$0xff] %vm2396, %v3116
    %3149 = vst.msk [vmem:[%s9 + $0x58] sm:$0xff] %vm2396, %v3120
    %3150 = vst.msk [vmem:[%s9 + $0x60] sm:$0xff] %vm2396, %v3124
    %3151 = vst.msk [vmem:[%s9 + $0x68] sm:$0xff] %vm2396, %v3128
    %3152 = vst.msk [vmem:[%s9 + $0x70] sm:$0xff] %vm2396, %v3132
    %3153 = vst.msk [vmem:[%s9 + $0x78] sm:$0xff] %vm2396, %v3136
    %v3154 = vld [vmem:[%s4] sm:$0xff]
    %v3155 = vld [vmem:[%s4 + $0x8] sm:$0xff]
    %v3156 = vld [vmem:[%s4 + $0x10] sm:$0xff]
    %v3157 = vld [vmem:[%s4 + $0x18] sm:$0xff]
    %v3158 = vld [vmem:[%s5] sm:$0xff]
    %v3159 = vld [vmem:[%s5 + $0x8] sm:$0xff]
    %vm3160 = vcmask 130048
    %v3162 = vsel %vm3160, %v3154, 0
    %v3165 = vsel %vm3160, %v3155, 0
    %v3168 = vsel %vm3160, %v3156, 0
    %v3171 = vsel %vm3160, %v3157, 0
    %3173 = vmatpush.msra.mxu0 0.0
    %3174 = vmatpush.msra.mxu0 0.0
    %3175 = vmatpush.msra.mxu0 0.0
    %3176 = vmatpush.msra.mxu0 0.0
    %3177 = vmatpush.msra.mxu0 0.0
    %3178 = vmatpush.msra.mxu0 0.0
    %3179 = vmatpush.msra.mxu0 0.0
    %3180 = vmatpush.msra.mxu0 0.0
    %3181 = vmatpush.msra.mxu0 0.0
    %3182 = vmatpush.msra.mxu0 0.0
    %3183 = vmatpush.msra.mxu0 0.0
    %3184 = vmatpush.msra.mxu0 0.0
    %3185 = vmatpush.msra.mxu0 0.0
    %3186 = vmatpush.msra.mxu0 0.0
    %v3187 = vand.u32 %v3159, 4294901760
    %3188 = vmatpush.msra.mxu0 %v3187
    %v3189 = vand.u32 %v3158, 4294901760
    %3190 = vmatpush.msra.mxu0 %v3189
    %v3191 = vand.u32 %v3162, 4294901760
    %v3192 = vsub.f32 %v3162, %v3191
    %v3193 = vand.u32 %v3192, 4294901760
    %v3194 = vsub.f32 %v3192, %v3193
    %v3195 = vand.u32 %v3194, 4294901760
    %3196 = vmatmul.f32.gmra.mxu0 %v3195
    %v3197 = vpop.f32.mrf.mxu0
    %v3198 = vadd.f32 0.0, %v3197
    %v3199 = vand.u32 %v3165, 4294901760
    %v3200 = vsub.f32 %v3165, %v3199
    %v3201 = vand.u32 %v3200, 4294901760
    %v3202 = vsub.f32 %v3200, %v3201
    %v3203 = vand.u32 %v3202, 4294901760
    %3204 = vmatmul.f32.gmra.mxu0 %v3203
    %v3205 = vpop.f32.mrf.mxu0
    %v3206 = vadd.f32 0.0, %v3205
    %v3207 = vand.u32 %v3168, 4294901760
    %v3208 = vsub.f32 %v3168, %v3207
    %v3209 = vand.u32 %v3208, 4294901760
    %v3210 = vsub.f32 %v3208, %v3209
    %v3211 = vand.u32 %v3210, 4294901760
    %3212 = vmatmul.f32.gmra.mxu0 %v3211
    %v3213 = vpop.f32.mrf.mxu0
    %v3214 = vadd.f32 0.0, %v3213
    %v3215 = vand.u32 %v3171, 4294901760
    %v3216 = vsub.f32 %v3171, %v3215
    %v3217 = vand.u32 %v3216, 4294901760
    %v3218 = vsub.f32 %v3216, %v3217
    %v3219 = vand.u32 %v3218, 4294901760
    %3220 = vmatmul.f32.gmra.mxu0 %v3219
    %v3221 = vpop.f32.mrf.mxu0
    %v3222 = vadd.f32 0.0, %v3221
    %3223 = vdwg.mxu0
    %3224 = vmatpush.msra.mxu0 0.0
    %3225 = vmatpush.msra.mxu0 0.0
    %3226 = vmatpush.msra.mxu0 0.0
    %3227 = vmatpush.msra.mxu0 0.0
    %3228 = vmatpush.msra.mxu0 0.0
    %3229 = vmatpush.msra.mxu0 0.0
    %3230 = vmatpush.msra.mxu0 0.0
    %3231 = vmatpush.msra.mxu0 0.0
    %3232 = vmatpush.msra.mxu0 0.0
    %3233 = vmatpush.msra.mxu0 0.0
    %3234 = vmatpush.msra.mxu0 0.0
    %3235 = vmatpush.msra.mxu0 0.0
    %3236 = vmatpush.msra.mxu0 0.0
    %3237 = vmatpush.msra.mxu0 0.0
    %v3238 = vand.u32 %v3159, 4294901760
    %v3239 = vsub.f32 %v3159, %v3238
    %v3240 = vand.u32 %v3239, 4294901760
    %v3241 = vsub.f32 %v3239, %v3240
    %v3242 = vand.u32 %v3241, 4294901760
    %3243 = vmatpush.msra.mxu0 %v3242
    %v3244 = vand.u32 %v3158, 4294901760
    %v3245 = vsub.f32 %v3158, %v3244
    %v3246 = vand.u32 %v3245, 4294901760
    %v3247 = vsub.f32 %v3245, %v3246
    %v3248 = vand.u32 %v3247, 4294901760
    %3249 = vmatpush.msra.mxu0 %v3248
    %v3250 = vand.u32 %v3162, 4294901760
    %3251 = vmatmul.f32.gmra.mxu0 %v3250
    %v3252 = vpop.f32.mrf.mxu0
    %v3253 = vadd.f32 %v3198, %v3252
    %v3254 = vand.u32 %v3165, 4294901760
    %3255 = vmatmul.f32.gmra.mxu0 %v3254
    %v3256 = vpop.f32.mrf.mxu0
    %v3257 = vadd.f32 %v3206, %v3256
    %v3258 = vand.u32 %v3168, 4294901760
    %3259 = vmatmul.f32.gmra.mxu0 %v3258
    %v3260 = vpop.f32.mrf.mxu0
    %v3261 = vadd.f32 %v3214, %v3260
    %v3262 = vand.u32 %v3171, 4294901760
    %3263 = vmatmul.f32.gmra.mxu0 %v3262
    %v3264 = vpop.f32.mrf.mxu0
    %v3265 = vadd.f32 %v3222, %v3264
    %3266 = vdwg.mxu0
    %3267 = vmatpush.msra.mxu0 0.0
    %3268 = vmatpush.msra.mxu0 0.0
    %3269 = vmatpush.msra.mxu0 0.0
    %3270 = vmatpush.msra.mxu0 0.0
    %3271 = vmatpush.msra.mxu0 0.0
    %3272 = vmatpush.msra.mxu0 0.0
    %3273 = vmatpush.msra.mxu0 0.0
    %3274 = vmatpush.msra.mxu0 0.0
    %3275 = vmatpush.msra.mxu0 0.0
    %3276 = vmatpush.msra.mxu0 0.0
    %3277 = vmatpush.msra.mxu0 0.0
    %3278 = vmatpush.msra.mxu0 0.0
    %3279 = vmatpush.msra.mxu0 0.0
    %3280 = vmatpush.msra.mxu0 0.0
    %v3281 = vand.u32 %v3159, 4294901760
    %v3282 = vsub.f32 %v3159, %v3281
    %3283 = vmatpush.msra.mxu0 %v3282
    %v3284 = vand.u32 %v3158, 4294901760
    %v3285 = vsub.f32 %v3158, %v3284
    %3286 = vmatpush.msra.mxu0 %v3285
    %v3287 = vand.u32 %v3162, 4294901760
    %v3288 = vsub.f32 %v3162, %v3287
    %3289 = vmatmul.f32.gmra.mxu0 %v3288
    %v3290 = vpop.f32.mrf.mxu0
    %v3291 = vadd.f32 %v3253, %v3290
    %v3292 = vand.u32 %v3165, 4294901760
    %v3293 = vsub.f32 %v3165, %v3292
    %3294 = vmatmul.f32.gmra.mxu0 %v3293
    %v3295 = vpop.f32.mrf.mxu0
    %v3296 = vadd.f32 %v3257, %v3295
    %v3297 = vand.u32 %v3168, 4294901760
    %v3298 = vsub.f32 %v3168, %v3297
    %3299 = vmatmul.f32.gmra.mxu0 %v3298
    %v3300 = vpop.f32.mrf.mxu0
    %v3301 = vadd.f32 %v3261, %v3300
    %v3302 = vand.u32 %v3171, 4294901760
    %v3303 = vsub.f32 %v3171, %v3302
    %3304 = vmatmul.f32.gmra.mxu0 %v3303
    %v3305 = vpop.f32.mrf.mxu0
    %v3306 = vadd.f32 %v3265, %v3305
    %3307 = vdwg.mxu0
    %3308 = vmatpush.msra.mxu0 0.0
    %3309 = vmatpush.msra.mxu0 0.0
    %3310 = vmatpush.msra.mxu0 0.0
    %3311 = vmatpush.msra.mxu0 0.0
    %3312 = vmatpush.msra.mxu0 0.0
    %3313 = vmatpush.msra.mxu0 0.0
    %3314 = vmatpush.msra.mxu0 0.0
    %3315 = vmatpush.msra.mxu0 0.0
    %3316 = vmatpush.msra.mxu0 0.0
    %3317 = vmatpush.msra.mxu0 0.0
    %3318 = vmatpush.msra.mxu0 0.0
    %3319 = vmatpush.msra.mxu0 0.0
    %3320 = vmatpush.msra.mxu0 0.0
    %3321 = vmatpush.msra.mxu0 0.0
    %v3322 = vand.u32 %v3159, 4294901760
    %3323 = vmatpush.msra.mxu0 %v3322
    %v3324 = vand.u32 %v3158, 4294901760
    %3325 = vmatpush.msra.mxu0 %v3324
    %v3326 = vand.u32 %v3162, 4294901760
    %v3327 = vsub.f32 %v3162, %v3326
    %v3328 = vand.u32 %v3327, 4294901760
    %3329 = vmatmul.f32.gmra.mxu0 %v3328
    %v3330 = vpop.f32.mrf.mxu0
    %v3331 = vadd.f32 %v3291, %v3330
    %v3332 = vand.u32 %v3165, 4294901760
    %v3333 = vsub.f32 %v3165, %v3332
    %v3334 = vand.u32 %v3333, 4294901760
    %3335 = vmatmul.f32.gmra.mxu0 %v3334
    %v3336 = vpop.f32.mrf.mxu0
    %v3337 = vadd.f32 %v3296, %v3336
    %v3338 = vand.u32 %v3168, 4294901760
    %v3339 = vsub.f32 %v3168, %v3338
    %v3340 = vand.u32 %v3339, 4294901760
    %3341 = vmatmul.f32.gmra.mxu0 %v3340
    %v3342 = vpop.f32.mrf.mxu0
    %v3343 = vadd.f32 %v3301, %v3342
    %v3344 = vand.u32 %v3171, 4294901760
    %v3345 = vsub.f32 %v3171, %v3344
    %v3346 = vand.u32 %v3345, 4294901760
    %3347 = vmatmul.f32.gmra.mxu0 %v3346
    %v3348 = vpop.f32.mrf.mxu0
    %v3349 = vadd.f32 %v3306, %v3348
    %3350 = vdwg.mxu0
    %3351 = vmatpush.msra.mxu0 0.0
    %3352 = vmatpush.msra.mxu0 0.0
    %3353 = vmatpush.msra.mxu0 0.0
    %3354 = vmatpush.msra.mxu0 0.0
    %3355 = vmatpush.msra.mxu0 0.0
    %3356 = vmatpush.msra.mxu0 0.0
    %3357 = vmatpush.msra.mxu0 0.0
    %3358 = vmatpush.msra.mxu0 0.0
    %3359 = vmatpush.msra.mxu0 0.0
    %3360 = vmatpush.msra.mxu0 0.0
    %3361 = vmatpush.msra.mxu0 0.0
    %3362 = vmatpush.msra.mxu0 0.0
    %3363 = vmatpush.msra.mxu0 0.0
    %3364 = vmatpush.msra.mxu0 0.0
    %v3365 = vand.u32 %v3159, 4294901760
    %v3366 = vsub.f32 %v3159, %v3365
    %v3367 = vand.u32 %v3366, 4294901760
    %3368 = vmatpush.msra.mxu0 %v3367
    %v3369 = vand.u32 %v3158, 4294901760
    %v3370 = vsub.f32 %v3158, %v3369
    %v3371 = vand.u32 %v3370, 4294901760
    %3372 = vmatpush.msra.mxu0 %v3371
    %v3373 = vand.u32 %v3162, 4294901760
    %3374 = vmatmul.f32.gmra.mxu0 %v3373
    %v3375 = vpop.f32.mrf.mxu0
    %v3376 = vadd.f32 %v3331, %v3375
    %v3377 = vand.u32 %v3165, 4294901760
    %3378 = vmatmul.f32.gmra.mxu0 %v3377
    %v3379 = vpop.f32.mrf.mxu0
    %v3380 = vadd.f32 %v3337, %v3379
    %v3381 = vand.u32 %v3168, 4294901760
    %3382 = vmatmul.f32.gmra.mxu0 %v3381
    %v3383 = vpop.f32.mrf.mxu0
    %v3384 = vadd.f32 %v3343, %v3383
    %v3385 = vand.u32 %v3171, 4294901760
    %3386 = vmatmul.f32.gmra.mxu0 %v3385
    %v3387 = vpop.f32.mrf.mxu0
    %v3388 = vadd.f32 %v3349, %v3387
    %3389 = vdwg.mxu0
    %3390 = vmatpush.msra.mxu0 0.0
    %3391 = vmatpush.msra.mxu0 0.0
    %3392 = vmatpush.msra.mxu0 0.0
    %3393 = vmatpush.msra.mxu0 0.0
    %3394 = vmatpush.msra.mxu0 0.0
    %3395 = vmatpush.msra.mxu0 0.0
    %3396 = vmatpush.msra.mxu0 0.0
    %3397 = vmatpush.msra.mxu0 0.0
    %3398 = vmatpush.msra.mxu0 0.0
    %3399 = vmatpush.msra.mxu0 0.0
    %3400 = vmatpush.msra.mxu0 0.0
    %3401 = vmatpush.msra.mxu0 0.0
    %3402 = vmatpush.msra.mxu0 0.0
    %3403 = vmatpush.msra.mxu0 0.0
    %v3404 = vand.u32 %v3159, 4294901760
    %3405 = vmatpush.msra.mxu0 %v3404
    %v3406 = vand.u32 %v3158, 4294901760
    %3407 = vmatpush.msra.mxu0 %v3406
    %v3408 = vand.u32 %v3162, 4294901760
    %3409 = vmatmul.f32.gmra.mxu0 %v3408
    %v3410 = vpop.f32.mrf.mxu0
    %v3411 = vadd.f32 %v3376, %v3410
    %v3412 = vand.u32 %v3165, 4294901760
    %3413 = vmatmul.f32.gmra.mxu0 %v3412
    %v3414 = vpop.f32.mrf.mxu0
    %v3415 = vadd.f32 %v3380, %v3414
    %v3416 = vand.u32 %v3168, 4294901760
    %3417 = vmatmul.f32.gmra.mxu0 %v3416
    %v3418 = vpop.f32.mrf.mxu0
    %v3419 = vadd.f32 %v3384, %v3418
    %v3420 = vand.u32 %v3171, 4294901760
    %3421 = vmatmul.f32.gmra.mxu0 %v3420
    %v3422 = vpop.f32.mrf.mxu0
    %v3423 = vadd.f32 %v3388, %v3422
    %3424 = vdwg.mxu0
    %3425 = vst.msk [vmem:[#allocation2] sm:$0xff] %vm2396, %v3411
    %3426 = vst.msk [vmem:[#allocation2 + $0x8] sm:$0xff] %vm2396, %v3415
    %3427 = vst.msk [vmem:[#allocation2 + $0x10] sm:$0xff] %vm2396, %v3419
    %3428 = vst.msk [vmem:[#allocation2 + $0x18] sm:$0xff] %vm2396, %v3423
    %v3429 = vld [vmem:[%s6] sm:$0xff]
    %v3430 = vld [vmem:[%s7] sm:$0xff]
    %v3431 = vld [vmem:[%s7 + $0x8] sm:$0xff]
    %v3432 = vld [vmem:[%s7 + $0x10] sm:$0xff]
    %v3433 = vld [vmem:[%s7 + $0x18] sm:$0xff]
    %vm3434 = vcmask 261120
    %v3436 = vsel %vm3434, %v3429, 0
    %3438 = vmatpush.msra.mxu0 0.0
    %3439 = vmatpush.msra.mxu0 0.0
    %3440 = vmatpush.msra.mxu0 0.0
    %3441 = vmatpush.msra.mxu0 0.0
    %3442 = vmatpush.msra.mxu0 0.0
    %3443 = vmatpush.msra.mxu0 0.0
    %3444 = vmatpush.msra.mxu0 0.0
    %3445 = vmatpush.msra.mxu0 0.0
    %3446 = vmatpush.msra.mxu0 0.0
    %3447 = vmatpush.msra.mxu0 0.0
    %3448 = vmatpush.msra.mxu0 0.0
    %3449 = vmatpush.msra.mxu0 0.0
    %v3450 = vand.u32 %v3433, 4294901760
    %3451 = vmatpush.msra.mxu0 %v3450
    %v3452 = vand.u32 %v3432, 4294901760
    %3453 = vmatpush.msra.mxu0 %v3452
    %v3454 = vand.u32 %v3431, 4294901760
    %3455 = vmatpush.msra.mxu0 %v3454
    %v3456 = vand.u32 %v3430, 4294901760
    %3457 = vmatpush.msra.mxu0 %v3456
    %v3458 = vand.u32 %v3436, 4294901760
    %v3459 = vsub.f32 %v3436, %v3458
    %v3460 = vand.u32 %v3459, 4294901760
    %v3461 = vsub.f32 %v3459, %v3460
    %v3462 = vand.u32 %v3461, 4294901760
    %3463 = vmatmul.f32.gmra.mxu0 %v3462
    %v3464 = vpop.f32.mrf.mxu0
    %v3465 = vadd.f32 0.0, %v3464
    %3466 = vdwg.mxu0
    %3467 = vmatpush.msra.mxu0 0.0
    %3468 = vmatpush.msra.mxu0 0.0
    %3469 = vmatpush.msra.mxu0 0.0
    %3470 = vmatpush.msra.mxu0 0.0
    %3471 = vmatpush.msra.mxu0 0.0
    %3472 = vmatpush.msra.mxu0 0.0
    %3473 = vmatpush.msra.mxu0 0.0
    %3474 = vmatpush.msra.mxu0 0.0
    %3475 = vmatpush.msra.mxu0 0.0
    %3476 = vmatpush.msra.mxu0 0.0
    %3477 = vmatpush.msra.mxu0 0.0
    %3478 = vmatpush.msra.mxu0 0.0
    %v3479 = vand.u32 %v3433, 4294901760
    %v3480 = vsub.f32 %v3433, %v3479
    %v3481 = vand.u32 %v3480, 4294901760
    %v3482 = vsub.f32 %v3480, %v3481
    %v3483 = vand.u32 %v3482, 4294901760
    %3484 = vmatpush.msra.mxu0 %v3483
    %v3485 = vand.u32 %v3432, 4294901760
    %v3486 = vsub.f32 %v3432, %v3485
    %v3487 = vand.u32 %v3486, 4294901760
    %v3488 = vsub.f32 %v3486, %v3487
    %v3489 = vand.u32 %v3488, 4294901760
    %3490 = vmatpush.msra.mxu0 %v3489
    %v3491 = vand.u32 %v3431, 4294901760
    %v3492 = vsub.f32 %v3431, %v3491
    %v3493 = vand.u32 %v3492, 4294901760
    %v3494 = vsub.f32 %v3492, %v3493
    %v3495 = vand.u32 %v3494, 4294901760
    %3496 = vmatpush.msra.mxu0 %v3495
    %v3497 = vand.u32 %v3430, 4294901760
    %v3498 = vsub.f32 %v3430, %v3497
    %v3499 = vand.u32 %v3498, 4294901760
    %v3500 = vsub.f32 %v3498, %v3499
    %v3501 = vand.u32 %v3500, 4294901760
    %3502 = vmatpush.msra.mxu0 %v3501
    %v3503 = vand.u32 %v3436, 4294901760
    %3504 = vmatmul.f32.gmra.mxu0 %v3503
    %v3505 = vpop.f32.mrf.mxu0
    %v3506 = vadd.f32 %v3465, %v3505
    %3507 = vdwg.mxu0
    %3508 = vmatpush.msra.mxu0 0.0
    %3509 = vmatpush.msra.mxu0 0.0
    %3510 = vmatpush.msra.mxu0 0.0
    %3511 = vmatpush.msra.mxu0 0.0
    %3512 = vmatpush.msra.mxu0 0.0
    %3513 = vmatpush.msra.mxu0 0.0
    %3514 = vmatpush.msra.mxu0 0.0
    %3515 = vmatpush.msra.mxu0 0.0
    %3516 = vmatpush.msra.mxu0 0.0
    %3517 = vmatpush.msra.mxu0 0.0
    %3518 = vmatpush.msra.mxu0 0.0
    %3519 = vmatpush.msra.mxu0 0.0
    %v3520 = vand.u32 %v3433, 4294901760
    %v3521 = vsub.f32 %v3433, %v3520
    %3522 = vmatpush.msra.mxu0 %v3521
    %v3523 = vand.u32 %v3432, 4294901760
    %v3524 = vsub.f32 %v3432, %v3523
    %3525 = vmatpush.msra.mxu0 %v3524
    %v3526 = vand.u32 %v3431, 4294901760
    %v3527 = vsub.f32 %v3431, %v3526
    %3528 = vmatpush.msra.mxu0 %v3527
    %v3529 = vand.u32 %v3430, 4294901760
    %v3530 = vsub.f32 %v3430, %v3529
    %3531 = vmatpush.msra.mxu0 %v3530
    %v3532 = vand.u32 %v3436, 4294901760
    %v3533 = vsub.f32 %v3436, %v3532
    %3534 = vmatmul.f32.gmra.mxu0 %v3533
    %v3535 = vpop.f32.mrf.mxu0
    %v3536 = vadd.f32 %v3506, %v3535
    %3537 = vdwg.mxu0
    %3538 = vmatpush.msra.mxu0 0.0
    %3539 = vmatpush.msra.mxu0 0.0
    %3540 = vmatpush.msra.mxu0 0.0
    %3541 = vmatpush.msra.mxu0 0.0
    %3542 = vmatpush.msra.mxu0 0.0
    %3543 = vmatpush.msra.mxu0 0.0
    %3544 = vmatpush.msra.mxu0 0.0
    %3545 = vmatpush.msra.mxu0 0.0
    %3546 = vmatpush.msra.mxu0 0.0
    %3547 = vmatpush.msra.mxu0 0.0
    %3548 = vmatpush.msra.mxu0 0.0
    %3549 = vmatpush.msra.mxu0 0.0
    %v3550 = vand.u32 %v3433, 4294901760
    %3551 = vmatpush.msra.mxu0 %v3550
    %v3552 = vand.u32 %v3432, 4294901760
    %3553 = vmatpush.msra.mxu0 %v3552
    %v3554 = vand.u32 %v3431, 4294901760
    %3555 = vmatpush.msra.mxu0 %v3554
    %v3556 = vand.u32 %v3430, 4294901760
    %3557 = vmatpush.msra.mxu0 %v3556
    %v3558 = vand.u32 %v3436, 4294901760
    %v3559 = vsub.f32 %v3436, %v3558
    %v3560 = vand.u32 %v3559, 4294901760
    %3561 = vmatmul.f32.gmra.mxu0 %v3560
    %v3562 = vpop.f32.mrf.mxu0
    %v3563 = vadd.f32 %v3536, %v3562
    %3564 = vdwg.mxu0
    %3565 = vmatpush.msra.mxu0 0.0
    %3566 = vmatpush.msra.mxu0 0.0
    %3567 = vmatpush.msra.mxu0 0.0
    %3568 = vmatpush.msra.mxu0 0.0
    %3569 = vmatpush.msra.mxu0 0.0
    %3570 = vmatpush.msra.mxu0 0.0
    %3571 = vmatpush.msra.mxu0 0.0
    %3572 = vmatpush.msra.mxu0 0.0
    %3573 = vmatpush.msra.mxu0 0.0
    %3574 = vmatpush.msra.mxu0 0.0
    %3575 = vmatpush.msra.mxu0 0.0
    %3576 = vmatpush.msra.mxu0 0.0
    %v3577 = vand.u32 %v3433, 4294901760
    %v3578 = vsub.f32 %v3433, %v3577
    %v3579 = vand.u32 %v3578, 4294901760
    %3580 = vmatpush.msra.mxu0 %v3579
    %v3581 = vand.u32 %v3432, 4294901760
    %v3582 = vsub.f32 %v3432, %v3581
    %v3583 = vand.u32 %v3582, 4294901760
    %3584 = vmatpush.msra.mxu0 %v3583
    %v3585 = vand.u32 %v3431, 4294901760
    %v3586 = vsub.f32 %v3431, %v3585
    %v3587 = vand.u32 %v3586, 4294901760
    %3588 = vmatpush.msra.mxu0 %v3587
    %v3589 = vand.u32 %v3430, 4294901760
    %v3590 = vsub.f32 %v3430, %v3589
    %v3591 = vand.u32 %v3590, 4294901760
    %3592 = vmatpush.msra.mxu0 %v3591
    %v3593 = vand.u32 %v3436, 4294901760
    %3594 = vmatmul.f32.gmra.mxu0 %v3593
    %v3595 = vpop.f32.mrf.mxu0
    %v3596 = vadd.f32 %v3563, %v3595
    %3597 = vdwg.mxu0
    %3598 = vmatpush.msra.mxu0 0.0
    %3599 = vmatpush.msra.mxu0 0.0
    %3600 = vmatpush.msra.mxu0 0.0
    %3601 = vmatpush.msra.mxu0 0.0
    %3602 = vmatpush.msra.mxu0 0.0
    %3603 = vmatpush.msra.mxu0 0.0
    %3604 = vmatpush.msra.mxu0 0.0
    %3605 = vmatpush.msra.mxu0 0.0
    %3606 = vmatpush.msra.mxu0 0.0
    %3607 = vmatpush.msra.mxu0 0.0
    %3608 = vmatpush.msra.mxu0 0.0
    %3609 = vmatpush.msra.mxu0 0.0
    %v3610 = vand.u32 %v3433, 4294901760
    %3611 = vmatpush.msra.mxu0 %v3610
    %v3612 = vand.u32 %v3432, 4294901760
    %3613 = vmatpush.msra.mxu0 %v3612
    %v3614 = vand.u32 %v3431, 4294901760
    %3615 = vmatpush.msra.mxu0 %v3614
    %v3616 = vand.u32 %v3430, 4294901760
    %3617 = vmatpush.msra.mxu0 %v3616
    %v3618 = vand.u32 %v3436, 4294901760
    %3619 = vmatmul.f32.gmra.mxu0 %v3618
    %v3620 = vpop.f32.mrf.mxu0
    %v3621 = vadd.f32 %v3596, %v3620
    %3622 = vdwg.mxu0
    %3623 = vst.msk [vmem:[#allocation4] sm:$0xff] %vm2396, %v3621
    // Predicated region
    $region34: #{tpu_custom_call.1} parent=1 // pred_check
      _
    $region35: #{tpu_custom_call.1} parent=1 // pred_check_branch
      %3625 = sbr.rel (0) target = $region37
    $region36: #{tpu_custom_call.1} parent=1 // pred_region
      _
    $region37: #{tpu_custom_call.1} parent=1 // pred_fallthru
      _
    // Predicated region
    $region38: #{tpu_custom_call.1} parent=1 // pred_check
      _
    $region39: #{tpu_custom_call.1} parent=1 // pred_check_branch
      %3627 = sbr.rel (0) target = $region41
    $region40: #{tpu_custom_call.1} parent=1 // pred_region
      _
    $region41: #{tpu_custom_call.1} parent=1 // pred_fallthru
      _
    // Predicated region
    $region42: #{tpu_custom_call.1} parent=1 // pred_check
      _
    $region43: #{tpu_custom_call.1} parent=1 // pred_check_branch
      %3629 = sbr.rel (0) target = $region45
    $region44: #{tpu_custom_call.1} parent=1 // pred_region
      %3631 = vsyncadd [#allocation3], 0
      %s3632 = sshll.u32 [#allocation2], 4
      %s3633 = int_to_ptr.vmem [resolvable:$true] %s3632
      %s3634 = sshll.u32 %s10, 4
      %s3635 = int_to_ptr.hbm [resolvable:$true] %s3634
      %3640 = dma.vmem_to_hbm [thread:$0]  %s3633, 512, %s3635, [#allocation3], 128, 128, 8
    $region45: #{tpu_custom_call.1} parent=1 // pred_fallthru
      _
    // Predicated region
    $region46: #{tpu_custom_call.1} parent=1 // pred_check
      _
    $region47: #{tpu_custom_call.1} parent=1 // pred_check_branch
      %3642 = sbr.rel (0) target = $region49
    $region48: #{tpu_custom_call.1} parent=1 // pred_region
      %3644 = vsyncadd [#allocation5], 0
      %s3646 = sshll.u32 [#allocation4], 4
      %s3647 = int_to_ptr.vmem [resolvable:$true] %s3646
      %s3648 = sshll.u32 %s11, 4
      %s3649 = int_to_ptr.hbm [resolvable:$true] %s3648
      %3651 = dma.vmem_to_hbm [thread:$0]  %s3647, 128, %s3649, [#allocation5]
    $region49: #{tpu_custom_call.1} parent=1 // pred_fallthru
      _
    // Predicated region
    $region50: #{tpu_custom_call.1} parent=1 // pred_check
      _
    $region51: #{tpu_custom_call.1} parent=1 // pred_check_branch
      %3653 = sbr.rel (0) target = $region53
    $region52: #{tpu_custom_call.1} parent=1 // pred_region
      _
    $region53: #{tpu_custom_call.1} parent=1 // pred_fallthru
      _
    // Predicated region
    $region54: #{tpu_custom_call.1} parent=1 // pred_check
      _
    $region55: #{tpu_custom_call.1} parent=1 // pred_check_branch
      %3655 = sbr.rel (0) target = $region57
    $region56: #{tpu_custom_call.1} parent=1 // pred_region
      _
    $region57: #{tpu_custom_call.1} parent=1 // pred_fallthru
      _
    // Predicated region
    $region58: #{tpu_custom_call.1} parent=1 // pred_check
      _
    $region59: #{tpu_custom_call.1} parent=1 // pred_check_branch
      %3657 = sbr.rel (0) target = $region61
    $region60: #{tpu_custom_call.1} parent=1 // pred_region
      %3659 = dma.done [#allocation3], 512
    $region61: #{tpu_custom_call.1} parent=1 // pred_fallthru
      _
    // Predicated region
    $region62: #{tpu_custom_call.1} parent=1 // pred_check
      _
    $region63: #{tpu_custom_call.1} parent=1 // pred_check_branch
      %3661 = sbr.rel (0) target = $region65
    $region64: #{tpu_custom_call.1} parent=1 // pred_region
      %3663 = dma.done [#allocation5], 128
    $region65: #{tpu_custom_call.1} parent=1 // pred_fallthru
      _
    %3664 = vsyncpa [#allocation3], 1
    %3665 = vsyncpa [#allocation5], 1

</llo_original>
